<compile_context>
chip_gen: v5e
topology: v5e:2x2
jax: 0.10.0
libtpu: 0.0.40
codegen_flags: <defaults>
</compile_context>

<pallas_src>
import functools
import math

import jax
import jax.numpy as jnp
from jax.experimental import pallas as pl
from jax.experimental.pallas import tpu as pltpu

# ----------------------------- config ---------------------------------------
BATCH = 2
SEQ = 8
HIDDEN = 64
N_HEADS = 2
HEAD_DIM = HIDDEN // N_HEADS
N_LAYERS = 2
INTERMEDIATE = 256
VOCAB = 128
MAX_POS = 16
TYPE_VOCAB = 2
NUM_CLASSES = 3
LN_EPS = 1e-12

_LANE = 128                       # TPU lane width; head slabs padded to this.
_INV_SQRT2 = 0.7071067811865476


# ----------------------------- in-kernel helpers -----------------------------
def _ln(x, g, b):
    """LayerNorm over the last axis, stats in f32.  g/b are (1, D)."""
    mu = jnp.mean(x, axis=-1, keepdims=True)
    xc = x - mu
    var = jnp.mean(xc * xc, axis=-1, keepdims=True)
    return xc * jax.lax.rsqrt(var + LN_EPS) * g + b


def _gelu(x):
    """Exact (erf) GELU, as used by BERT."""
    return 0.5 * x * (1.0 + jax.lax.erf(x * jnp.float32(_INV_SQRT2)))


# ----------------------------- fused kernel ----------------------------------
def _fused_bert_kernel(x_ref, mask_ref, emb_g_ref, emb_b_ref,
                       wqkv_ref, bqkv_ref, wo_ref, bo_ref,
                       ln1_g_ref, ln1_b_ref, w1_ref, b1_ref,
                       w2_ref, b2_ref, ln2_g_ref, ln2_b_ref,
                       pool_w_ref, pool_b_ref, fc_w_ref, fc_b_ref,
                       att_w_ref, att_b_ref,
                       logits_ref, att_ref,
                       *, batch, seq, n_heads, head_dim, n_layers):
    """Whole BERT-for-classification forward on a (B*S, D) activation slab."""
    D = n_heads * head_dim
    scale = jnp.float32(1.0 / math.sqrt(head_dim))
    mask = mask_ref[...]                                   # (B, S) additive bias

    # Embedding LayerNorm (fused into the same kernel).
    h = _ln(x_ref[...], emb_g_ref[...], emb_b_ref[...])    # (M, D) f32

    for l in range(n_layers):                              # static unroll
        hb = h.astype(jnp.bfloat16)

        # Fused, head-padded QKV projection -> (M, n_heads*3*128) lane-dense slab.
        # Head h's Q/K/V slabs start at lane offsets (3h+{0,1,2})*128, so the
        # per-head slices below are lane-tile-aligned static views.
        qkv = jnp.dot(hb, wqkv_ref[l], preferred_element_type=jnp.float32)
        qkv = qkv + bqkv_ref[l]
        qkv_bf = qkv.astype(jnp.bfloat16)                  # single hoisted cast

        # Per-(batch, head) attention; ctx blocks stay in registers.
        # TODO(synk): a fully-masked row would produce a 0 softmax denominator;
        # fine for this data (every row has >= 1 unmasked key).
        ctx_rows = []
        for b in range(batch):
            r0 = b * seq
            bias_b = mask[b:b + 1, :]                      # (1, S) -> broadcast
            head_blocks = []
            for hh in range(n_heads):
                cq = (3 * hh + 0) * _LANE
                ck = (3 * hh + 1) * _LANE
                cv = (3 * hh + 2) * _LANE
                q = qkv_bf[r0:r0 + seq, cq:cq + head_dim]
                k = qkv_bf[r0:r0 + seq, ck:ck + head_dim]
                v = qkv_bf[r0:r0 + seq, cv:cv + head_dim]
                # scores = q @ k^T (contract head dim, no explicit transpose)
                s = jax.lax.dot_general(
                    q, k, (((1,), (1,)), ((), ())),
                    preferred_element_type=jnp.float32) * scale
                s = s + bias_b
                m = jnp.max(s, axis=-1, keepdims=True)
                p = jnp.exp(s - m)
                p = p / jnp.sum(p, axis=-1, keepdims=True)  # exact softmax
                head_blocks.append(
                    jnp.dot(p.astype(jnp.bfloat16), v,
                            preferred_element_type=jnp.float32))
            ctx_rows.append(jnp.concatenate(head_blocks, axis=1))   # lanes
        ctx = jnp.concatenate(ctx_rows, axis=0)             # (M, D) f32, vregs

        # Output projection + residual + LN1.
        attn_out = jnp.dot(ctx.astype(jnp.bfloat16), wo_ref[l],
                           preferred_element_type=jnp.float32) + bo_ref[l]
        h1 = _ln(attn_out + h, ln1_g_ref[l], ln1_b_ref[l])

        # FFN (gelu) + residual + LN2.
        ff = jnp.dot(h1.astype(jnp.bfloat16), w1_ref[l],
                     preferred_element_type=jnp.float32) + b1_ref[l]
        ff = _gelu(ff)
        ff2 = jnp.dot(ff.astype(jnp.bfloat16), w2_ref[l],
                      preferred_element_type=jnp.float32) + b2_ref[l]
        h = _ln(ff2 + h1, ln2_g_ref[l], ln2_b_ref[l])

    # ---- heads: pooler (tanh) + classifier + token-attention, all in-kernel.
    # CLS rows extracted with static (sublane-aligned) slices of the slab.
    cls = jnp.concatenate([h[b * seq:b * seq + 1, :] for b in range(batch)],
                          axis=0)                           # (B, D)
    pooled = jnp.tanh(
        jnp.dot(cls.astype(jnp.bfloat16), pool_w_ref[...],
                preferred_element_type=jnp.float32) + pool_b_ref[...])
    # fc / attention weights are zero-padded to 128 output columns so both
    # output stores are full-lane (unmasked) and MXU result pops are dense.
    logits_ref[...] = jnp.dot(
        pooled.astype(jnp.bfloat16), fc_w_ref[...],
        preferred_element_type=jnp.float32) + fc_b_ref[...]
    scores = jnp.dot(
        h.astype(jnp.bfloat16), att_w_ref[...],
        preferred_element_type=jnp.float32) + att_b_ref[...]
    att_ref[...] = jax.nn.sigmoid(scores)


# ----------------------------- parameters -----------------------------------
def _pack_qkv(wq, wk, wv, bq, bk, bv):
    """Repack per-head Q/K/V weights so every head slab is 128-lane aligned."""
    w = jnp.zeros((HIDDEN, N_HEADS * 3 * _LANE), jnp.float32)
    b = jnp.zeros((1, N_HEADS * 3 * _LANE), jnp.float32)
    for h in range(N_HEADS):
        for t, (wt, bt) in enumerate(((wq, bq), (wk, bk), (wv, bv))):
            c = (3 * h + t) * _LANE
            w = w.at[:, c:c + HEAD_DIM].set(wt[:, h * HEAD_DIM:(h + 1) * HEAD_DIM])
            b = b.at[:, c:c + HEAD_DIM].set(bt[:, h * HEAD_DIM:(h + 1) * HEAD_DIM])
    return w.astype(jnp.bfloat16), b


def init_params(key):
    std = 0.02

    def nrm(k, shape):
        return jax.random.normal(k, shape, jnp.float32) * std

    keys = iter(jax.random.split(key, 64))
    p = {}
    p["word_emb"] = nrm(next(keys), (VOCAB, HIDDEN))
    p["pos_emb"] = nrm(next(keys), (MAX_POS, HIDDEN))
    p["type_emb"] = nrm(next(keys), (TYPE_VOCAB, HIDDEN))
    p["emb_ln_g"] = jnp.ones((1, HIDDEN), jnp.float32)
    p["emb_ln_b"] = jnp.zeros((1, HIDDEN), jnp.float32)

    names = ("wqkv", "bqkv", "wo", "bo", "ln1_g", "ln1_b",
             "w1", "b1", "w2", "b2", "ln2_g", "ln2_b")
    stacks = {n: [] for n in names}
    zeros_h = jnp.zeros((1, HIDDEN), jnp.float32)
    for _ in range(N_LAYERS):
        wq = nrm(next(keys), (HIDDEN, HIDDEN))
        wk = nrm(next(keys), (HIDDEN, HIDDEN))
        wv = nrm(next(keys), (HIDDEN, HIDDEN))
        w_p, b_p = _pack_qkv(wq, wk, wv, zeros_h, zeros_h, zeros_h)
        stacks["wqkv"].append(w_p)
        stacks["bqkv"].append(b_p)
        stacks["wo"].append(nrm(next(keys), (HIDDEN, HIDDEN)).astype(jnp.bfloat16))
        stacks["bo"].append(zeros_h)
        stacks["ln1_g"].append(jnp.ones((1, HIDDEN), jnp.float32))
        stacks["ln1_b"].append(zeros_h)
        stacks["w1"].append(nrm(next(keys), (HIDDEN, INTERMEDIATE)).astype(jnp.bfloat16))
        stacks["b1"].append(jnp.zeros((1, INTERMEDIATE), jnp.float32))
        stacks["w2"].append(nrm(next(keys), (INTERMEDIATE, HIDDEN)).astype(jnp.bfloat16))
        stacks["b2"].append(zeros_h)
        stacks["ln2_g"].append(jnp.ones((1, HIDDEN), jnp.float32))
        stacks["ln2_b"].append(zeros_h)
    for n in names:
        p[n] = jnp.stack(stacks[n], axis=0)        # leading layer axis

    p["pool_w"] = nrm(next(keys), (HIDDEN, HIDDEN)).astype(jnp.bfloat16)
    p["pool_b"] = jnp.zeros((1, HIDDEN), jnp.float32)

    fc_w = nrm(next(keys), (HIDDEN, NUM_CLASSES))
    p["fc_w"] = (jnp.zeros((HIDDEN, _LANE), jnp.float32)
                 .at[:, :NUM_CLASSES].set(fc_w).astype(jnp.bfloat16))
    p["fc_b"] = jnp.zeros((1, _LANE), jnp.float32)
    att_w = nrm(next(keys), (HIDDEN, 1))
    p["att_w"] = (jnp.zeros((HIDDEN, _LANE), jnp.float32)
                  .at[:, :1].set(att_w).astype(jnp.bfloat16))
    p["att_b"] = jnp.zeros((1, _LANE), jnp.float32)
    return p


# ----------------------------- forward pass ---------------------------------
def bert_for_classification(params, input_ids, attention_mask, token_type_ids):
    B, S = input_ids.shape
    D = HIDDEN
    M = B * S

    # Embedding gathers are plain-JAX glue (data-dependent gather).
    positions = jnp.arange(S, dtype=jnp.int32)
    x = (jnp.take(params["word_emb"], input_ids, axis=0)
         + jnp.take(params["pos_emb"], positions, axis=0)[None, :, :]
         + jnp.take(params["type_emb"], token_type_ids, axis=0))
    x = x.reshape(M, D).astype(jnp.float32)

    # Additive attention-mask bias (B, S).
    mask_bias = (1.0 - attention_mask.astype(jnp.float32)) * -1e9

    args = (x, mask_bias, params["emb_ln_g"], params["emb_ln_b"],
            params["wqkv"], params["bqkv"], params["wo"], params["bo"],
            params["ln1_g"], params["ln1_b"], params["w1"], params["b1"],
            params["w2"], params["b2"], params["ln2_g"], params["ln2_b"],
            params["pool_w"], params["pool_b"], params["fc_w"], params["fc_b"],
            params["att_w"], params["att_b"])

    # Advisory cost estimate so XLA can overlap the gathers with the call.
    flops = N_LAYERS * (
        2 * M * D * (N_HEADS * 3 * _LANE)                # padded QKV proj
        + B * N_HEADS * (2 * S * S * HEAD_DIM) * 2       # scores + PV
        + 2 * M * D * D                                  # Wo
        + 2 * M * D * INTERMEDIATE                       # FFN in
        + 2 * M * INTERMEDIATE * D)                      # FFN out
    flops += 2 * B * D * D + 2 * B * D * _LANE + 2 * M * D * _LANE
    transcendentals = (N_LAYERS * (B * N_HEADS * S * S + M * INTERMEDIATE)
                       + B * D + M * _LANE)
    bytes_accessed = (sum(int(a.size) * a.dtype.itemsize for a in args)
                      + (B * _LANE + M * _LANE) * 4)

    kernel = functools.partial(_fused_bert_kernel, batch=B, seq=S,
                               n_heads=N_HEADS, head_dim=HEAD_DIM,
                               n_layers=N_LAYERS)
    logits_pad, att_pad = pl.pallas_call(
        kernel,
        out_shape=(jax.ShapeDtypeStruct((B, _LANE), jnp.float32),
                   jax.ShapeDtypeStruct((M, _LANE), jnp.float32)),
        cost_estimate=pl.CostEstimate(flops=int(flops),
                                      transcendentals=int(transcendentals),
                                      bytes_accessed=int(bytes_accessed)),
    )(*args)

    logits = logits_pad[:, :NUM_CLASSES]
    attention_weights = att_pad[:, 0].reshape(B, S)
    return logits, attention_weights


# ----------------------------- main ------------------------------------------
if __name__ == "__main__":
    key = jax.random.PRNGKey(0)
    k_param, k_ids, k_type = jax.random.split(key, 3)

    params = init_params(k_param)

    input_ids = jax.random.randint(k_ids, (BATCH, SEQ), 0, VOCAB, dtype=jnp.int32)
    token_type_ids = jax.random.randint(k_type, (BATCH, SEQ), 0, TYPE_VOCAB,
                                        dtype=jnp.int32)
    # Mask out the last two tokens of the second example.
    attention_mask = jnp.ones((BATCH, SEQ), jnp.int32).at[1, -2:].set(0)

    fwd = jax.jit(bert_for_classification)
    logits, attention_weights = fwd(params, input_ids, attention_mask,
                                    token_type_ids)
    jax.block_until_ready((logits, attention_weights))

    assert logits.shape == (BATCH, NUM_CLASSES)
    assert attention_weights.shape == (BATCH, SEQ)
    assert bool(jnp.all(jnp.isfinite(logits)))
    assert bool(jnp.all(jnp.isfinite(attention_weights)))
    assert bool(jnp.all((attention_weights >= 0) & (attention_weights <= 1)))
    print("KERNEL_OK")
</pallas_src>

<mosaic_0001>
module attributes {stable_mosaic.version = 11 : i64} {
  func.func @_fused_bert_kernel(%arg0: memref<16x64xf32, #tpu.memory_space<vmem>>, %arg1: memref<2x8xf32, #tpu.memory_space<vmem>>, %arg2: memref<1x64xf32, #tpu.memory_space<vmem>>, %arg3: memref<1x64xf32, #tpu.memory_space<vmem>>, %arg4: memref<2x64x768xbf16, #tpu.memory_space<vmem>>, %arg5: memref<2x1x768xf32, #tpu.memory_space<vmem>>, %arg6: memref<2x64x64xbf16, #tpu.memory_space<vmem>>, %arg7: memref<2x1x64xf32, #tpu.memory_space<vmem>>, %arg8: memref<2x1x64xf32, #tpu.memory_space<vmem>>, %arg9: memref<2x1x64xf32, #tpu.memory_space<vmem>>, %arg10: memref<2x64x256xbf16, #tpu.memory_space<vmem>>, %arg11: memref<2x1x256xf32, #tpu.memory_space<vmem>>, %arg12: memref<2x256x64xbf16, #tpu.memory_space<vmem>>, %arg13: memref<2x1x64xf32, #tpu.memory_space<vmem>>, %arg14: memref<2x1x64xf32, #tpu.memory_space<vmem>>, %arg15: memref<2x1x64xf32, #tpu.memory_space<vmem>>, %arg16: memref<64x64xbf16, #tpu.memory_space<vmem>>, %arg17: memref<1x64xf32, #tpu.memory_space<vmem>>, %arg18: memref<64x128xbf16, #tpu.memory_space<vmem>>, %arg19: memref<1x128xf32, #tpu.memory_space<vmem>>, %arg20: memref<64x128xbf16, #tpu.memory_space<vmem>>, %arg21: memref<1x128xf32, #tpu.memory_space<vmem>>, %arg22: memref<2x128xf32, #tpu.memory_space<vmem>>, %arg23: memref<16x128xf32, #tpu.memory_space<vmem>>) attributes {dimension_semantics = [], scalar_prefetch = 0 : i64, scratch_operands = 0 : i64, tpu.core_type = #tpu.core_type<tc>} {
    %c0 = arith.constant 0 : index
    %c0_0 = arith.constant 0 : index
    %0 = vector.load %arg1[%c0, %c0_0] : memref<2x8xf32, #tpu.memory_space<vmem>>, vector<2x8xf32>
    %c0_1 = arith.constant 0 : index
    %c0_2 = arith.constant 0 : index
    %1 = vector.load %arg0[%c0_1, %c0_2] : memref<16x64xf32, #tpu.memory_space<vmem>>, vector<16x64xf32>
    %c0_3 = arith.constant 0 : index
    %c0_4 = arith.constant 0 : index
    %2 = vector.load %arg2[%c0_3, %c0_4] : memref<1x64xf32, #tpu.memory_space<vmem>>, vector<1x64xf32>
    %c0_5 = arith.constant 0 : index
    %c0_6 = arith.constant 0 : index
    %3 = vector.load %arg3[%c0_5, %c0_6] : memref<1x64xf32, #tpu.memory_space<vmem>>, vector<1x64xf32>
    %cst = arith.constant dense<0.000000e+00> : vector<16xf32>
    %4 = vector.multi_reduction <add>, %1, %cst [1] : vector<16x64xf32> to vector<16xf32>
    %5 = vector.shape_cast %4 : vector<16xf32> to vector<16x1xf32>
    %cst_7 = arith.constant 6.400000e+01 : f32
    %6 = vector.broadcast %cst_7 : f32 to vector<16x1xf32>
    %7 = arith.divf %5, %6 : vector<16x1xf32>
    %8 = vector.broadcast %7 : vector<16x1xf32> to vector<16x64xf32>
    %9 = arith.subf %1, %8 : vector<16x64xf32>
    %10 = arith.mulf %9, %9 : vector<16x64xf32>
    %cst_8 = arith.constant dense<0.000000e+00> : vector<16xf32>
    %11 = vector.multi_reduction <add>, %10, %cst_8 [1] : vector<16x64xf32> to vector<16xf32>
    %12 = vector.shape_cast %11 : vector<16xf32> to vector<16x1xf32>
    %cst_9 = arith.constant 6.400000e+01 : f32
    %13 = vector.broadcast %cst_9 : f32 to vector<16x1xf32>
    %14 = arith.divf %12, %13 : vector<16x1xf32>
    %cst_10 = arith.constant 9.99999996E-13 : f32
    %15 = vector.broadcast %cst_10 : f32 to vector<16x1xf32>
    %16 = arith.addf %14, %15 : vector<16x1xf32>
    %17 = math.rsqrt %16 : vector<16x1xf32>
    %18 = vector.broadcast %17 : vector<16x1xf32> to vector<16x64xf32>
    %19 = arith.mulf %9, %18 : vector<16x64xf32>
    %20 = vector.broadcast %2 : vector<1x64xf32> to vector<16x64xf32>
    %21 = arith.mulf %19, %20 : vector<16x64xf32>
    %22 = vector.broadcast %3 : vector<1x64xf32> to vector<16x64xf32>
    %23 = arith.addf %21, %22 : vector<16x64xf32>
    %24 = arith.truncf %23 : vector<16x64xf32> to vector<16x64xbf16>
    %c0_11 = arith.constant 0 : index
    %c0_12 = arith.constant 0 : index
    %c0_13 = arith.constant 0 : index
    %25 = vector.load %arg4[%c0_11, %c0_12, %c0_13] : memref<2x64x768xbf16, #tpu.memory_space<vmem>>, vector<1x64x768xbf16>
    %26 = vector.shape_cast %25 : vector<1x64x768xbf16> to vector<64x768xbf16>
    %cst_14 = arith.constant dense<0.000000e+00> : vector<16x768xf32>
    %27 = tpu.matmul %24, %26, %cst_14 {dimension_numbers = #tpu.dot_dimension_numbers<[1], [0], [0], [1], [0, 0, 1, 1], [], []>} : vector<16x64xbf16>, vector<64x768xbf16>, vector<16x768xf32> -> vector<16x768xf32>
    %c0_15 = arith.constant 0 : index
    %c0_16 = arith.constant 0 : index
    %c0_17 = arith.constant 0 : index
    %28 = vector.load %arg5[%c0_15, %c0_16, %c0_17] : memref<2x1x768xf32, #tpu.memory_space<vmem>>, vector<1x1x768xf32>
    %29 = vector.shape_cast %28 : vector<1x1x768xf32> to vector<1x768xf32>
    %30 = vector.broadcast %29 : vector<1x768xf32> to vector<16x768xf32>
    %31 = arith.addf %27, %30 : vector<16x768xf32>
    %32 = arith.truncf %31 : vector<16x768xf32> to vector<16x768xbf16>
    %33 = vector.extract_strided_slice %0 {offsets = [0, 0], sizes = [1, 8], strides = [1, 1]} : vector<2x8xf32> to vector<1x8xf32>
    %34 = vector.extract_strided_slice %32 {offsets = [0, 0], sizes = [8, 32], strides = [1, 1]} : vector<16x768xbf16> to vector<8x32xbf16>
    %35 = vector.extract_strided_slice %32 {offsets = [0, 128], sizes = [8, 32], strides = [1, 1]} : vector<16x768xbf16> to vector<8x32xbf16>
    %36 = vector.extract_strided_slice %32 {offsets = [0, 256], sizes = [8, 32], strides = [1, 1]} : vector<16x768xbf16> to vector<8x32xbf16>
    %cst_18 = arith.constant dense<0.000000e+00> : vector<8x8xf32>
    %37 = tpu.matmul %34, %35, %cst_18 {dimension_numbers = #tpu.dot_dimension_numbers<[1], [1], [0], [0], [0, 0, 1, 0], [], []>} : vector<8x32xbf16>, vector<8x32xbf16>, vector<8x8xf32> -> vector<8x8xf32>
    %cst_19 = arith.constant 0.176776692 : f32
    %38 = vector.broadcast %cst_19 : f32 to vector<8x8xf32>
    %39 = arith.mulf %37, %38 : vector<8x8xf32>
    %40 = vector.broadcast %33 : vector<1x8xf32> to vector<8x8xf32>
    %41 = arith.addf %39, %40 : vector<8x8xf32>
    %cst_20 = arith.constant dense<0xFF800000> : vector<8xf32>
    %42 = vector.multi_reduction <maximumf>, %41, %cst_20 [1] : vector<8x8xf32> to vector<8xf32>
    %43 = vector.shape_cast %42 : vector<8xf32> to vector<8x1xf32>
    %44 = vector.broadcast %43 : vector<8x1xf32> to vector<8x8xf32>
    %45 = arith.subf %41, %44 : vector<8x8xf32>
    %46 = math.exp %45 : vector<8x8xf32>
    %cst_21 = arith.constant dense<0.000000e+00> : vector<8xf32>
    %47 = vector.multi_reduction <add>, %46, %cst_21 [1] : vector<8x8xf32> to vector<8xf32>
    %48 = vector.shape_cast %47 : vector<8xf32> to vector<8x1xf32>
    %49 = vector.broadcast %48 : vector<8x1xf32> to vector<8x8xf32>
    %50 = arith.divf %46, %49 : vector<8x8xf32>
    %51 = arith.truncf %50 : vector<8x8xf32> to vector<8x8xbf16>
    %cst_22 = arith.constant dense<0.000000e+00> : vector<8x32xf32>
    %52 = tpu.matmul %51, %36, %cst_22 {dimension_numbers = #tpu.dot_dimension_numbers<[1], [0], [0], [1], [0, 0, 1, 1], [], []>} : vector<8x8xbf16>, vector<8x32xbf16>, vector<8x32xf32> -> vector<8x32xf32>
    %53 = vector.extract_strided_slice %32 {offsets = [0, 384], sizes = [8, 32], strides = [1, 1]} : vector<16x768xbf16> to vector<8x32xbf16>
    %54 = vector.extract_strided_slice %32 {offsets = [0, 512], sizes = [8, 32], strides = [1, 1]} : vector<16x768xbf16> to vector<8x32xbf16>
    %55 = vector.extract_strided_slice %32 {offsets = [0, 640], sizes = [8, 32], strides = [1, 1]} : vector<16x768xbf16> to vector<8x32xbf16>
    %cst_23 = arith.constant dense<0.000000e+00> : vector<8x8xf32>
    %56 = tpu.matmul %53, %54, %cst_23 {dimension_numbers = #tpu.dot_dimension_numbers<[1], [1], [0], [0], [0, 0, 1, 0], [], []>} : vector<8x32xbf16>, vector<8x32xbf16>, vector<8x8xf32> -> vector<8x8xf32>
    %cst_24 = arith.constant 0.176776692 : f32
    %57 = vector.broadcast %cst_24 : f32 to vector<8x8xf32>
    %58 = arith.mulf %56, %57 : vector<8x8xf32>
    %59 = vector.broadcast %33 : vector<1x8xf32> to vector<8x8xf32>
    %60 = arith.addf %58, %59 : vector<8x8xf32>
    %cst_25 = arith.constant dense<0xFF800000> : vector<8xf32>
    %61 = vector.multi_reduction <maximumf>, %60, %cst_25 [1] : vector<8x8xf32> to vector<8xf32>
    %62 = vector.shape_cast %61 : vector<8xf32> to vector<8x1xf32>
    %63 = vector.broadcast %62 : vector<8x1xf32> to vector<8x8xf32>
    %64 = arith.subf %60, %63 : vector<8x8xf32>
    %65 = math.exp %64 : vector<8x8xf32>
    %cst_26 = arith.constant dense<0.000000e+00> : vector<8xf32>
    %66 = vector.multi_reduction <add>, %65, %cst_26 [1] : vector<8x8xf32> to vector<8xf32>
    %67 = vector.shape_cast %66 : vector<8xf32> to vector<8x1xf32>
    %68 = vector.broadcast %67 : vector<8x1xf32> to vector<8x8xf32>
    %69 = arith.divf %65, %68 : vector<8x8xf32>
    %70 = arith.truncf %69 : vector<8x8xf32> to vector<8x8xbf16>
    %cst_27 = arith.constant dense<0.000000e+00> : vector<8x32xf32>
    %71 = tpu.matmul %70, %55, %cst_27 {dimension_numbers = #tpu.dot_dimension_numbers<[1], [0], [0], [1], [0, 0, 1, 1], [], []>} : vector<8x8xbf16>, vector<8x32xbf16>, vector<8x32xf32> -> vector<8x32xf32>
    %72 = tpu.concatenate %52, %71 in 1 : vector<8x32xf32>, vector<8x32xf32> -> vector<8x64xf32>
    %73 = vector.extract_strided_slice %0 {offsets = [1, 0], sizes = [1, 8], strides = [1, 1]} : vector<2x8xf32> to vector<1x8xf32>
    %74 = vector.extract_strided_slice %32 {offsets = [8, 0], sizes = [8, 32], strides = [1, 1]} : vector<16x768xbf16> to vector<8x32xbf16>
    %75 = vector.extract_strided_slice %32 {offsets = [8, 128], sizes = [8, 32], strides = [1, 1]} : vector<16x768xbf16> to vector<8x32xbf16>
    %76 = vector.extract_strided_slice %32 {offsets = [8, 256], sizes = [8, 32], strides = [1, 1]} : vector<16x768xbf16> to vector<8x32xbf16>
    %cst_28 = arith.constant dense<0.000000e+00> : vector<8x8xf32>
    %77 = tpu.matmul %74, %75, %cst_28 {dimension_numbers = #tpu.dot_dimension_numbers<[1], [1], [0], [0], [0, 0, 1, 0], [], []>} : vector<8x32xbf16>, vector<8x32xbf16>, vector<8x8xf32> -> vector<8x8xf32>
    %cst_29 = arith.constant 0.176776692 : f32
    %78 = vector.broadcast %cst_29 : f32 to vector<8x8xf32>
    %79 = arith.mulf %77, %78 : vector<8x8xf32>
    %80 = vector.broadcast %73 : vector<1x8xf32> to vector<8x8xf32>
    %81 = arith.addf %79, %80 : vector<8x8xf32>
    %cst_30 = arith.constant dense<0xFF800000> : vector<8xf32>
    %82 = vector.multi_reduction <maximumf>, %81, %cst_30 [1] : vector<8x8xf32> to vector<8xf32>
    %83 = vector.shape_cast %82 : vector<8xf32> to vector<8x1xf32>
    %84 = vector.broadcast %83 : vector<8x1xf32> to vector<8x8xf32>
    %85 = arith.subf %81, %84 : vector<8x8xf32>
    %86 = math.exp %85 : vector<8x8xf32>
    %cst_31 = arith.constant dense<0.000000e+00> : vector<8xf32>
    %87 = vector.multi_reduction <add>, %86, %cst_31 [1] : vector<8x8xf32> to vector<8xf32>
    %88 = vector.shape_cast %87 : vector<8xf32> to vector<8x1xf32>
    %89 = vector.broadcast %88 : vector<8x1xf32> to vector<8x8xf32>
    %90 = arith.divf %86, %89 : vector<8x8xf32>
    %91 = arith.truncf %90 : vector<8x8xf32> to vector<8x8xbf16>
    %cst_32 = arith.constant dense<0.000000e+00> : vector<8x32xf32>
    %92 = tpu.matmul %91, %76, %cst_32 {dimension_numbers = #tpu.dot_dimension_numbers<[1], [0], [0], [1], [0, 0, 1, 1], [], []>} : vector<8x8xbf16>, vector<8x32xbf16>, vector<8x32xf32> -> vector<8x32xf32>
    %93 = vector.extract_strided_slice %32 {offsets = [8, 384], sizes = [8, 32], strides = [1, 1]} : vector<16x768xbf16> to vector<8x32xbf16>
    %94 = vector.extract_strided_slice %32 {offsets = [8, 512], sizes = [8, 32], strides = [1, 1]} : vector<16x768xbf16> to vector<8x32xbf16>
    %95 = vector.extract_strided_slice %32 {offsets = [8, 640], sizes = [8, 32], strides = [1, 1]} : vector<16x768xbf16> to vector<8x32xbf16>
    %cst_33 = arith.constant dense<0.000000e+00> : vector<8x8xf32>
    %96 = tpu.matmul %93, %94, %cst_33 {dimension_numbers = #tpu.dot_dimension_numbers<[1], [1], [0], [0], [0, 0, 1, 0], [], []>} : vector<8x32xbf16>, vector<8x32xbf16>, vector<8x8xf32> -> vector<8x8xf32>
    %cst_34 = arith.constant 0.176776692 : f32
    %97 = vector.broadcast %cst_34 : f32 to vector<8x8xf32>
    %98 = arith.mulf %96, %97 : vector<8x8xf32>
    %99 = vector.broadcast %73 : vector<1x8xf32> to vector<8x8xf32>
    %100 = arith.addf %98, %99 : vector<8x8xf32>
    %cst_35 = arith.constant dense<0xFF800000> : vector<8xf32>
    %101 = vector.multi_reduction <maximumf>, %100, %cst_35 [1] : vector<8x8xf32> to vector<8xf32>
    %102 = vector.shape_cast %101 : vector<8xf32> to vector<8x1xf32>
    %103 = vector.broadcast %102 : vector<8x1xf32> to vector<8x8xf32>
    %104 = arith.subf %100, %103 : vector<8x8xf32>
    %105 = math.exp %104 : vector<8x8xf32>
    %cst_36 = arith.constant dense<0.000000e+00> : vector<8xf32>
    %106 = vector.multi_reduction <add>, %105, %cst_36 [1] : vector<8x8xf32> to vector<8xf32>
    %107 = vector.shape_cast %106 : vector<8xf32> to vector<8x1xf32>
    %108 = vector.broadcast %107 : vector<8x1xf32> to vector<8x8xf32>
    %109 = arith.divf %105, %108 : vector<8x8xf32>
    %110 = arith.truncf %109 : vector<8x8xf32> to vector<8x8xbf16>
    %cst_37 = arith.constant dense<0.000000e+00> : vector<8x32xf32>
    %111 = tpu.matmul %110, %95, %cst_37 {dimension_numbers = #tpu.dot_dimension_numbers<[1], [0], [0], [1], [0, 0, 1, 1], [], []>} : vector<8x8xbf16>, vector<8x32xbf16>, vector<8x32xf32> -> vector<8x32xf32>
    %112 = tpu.concatenate %92, %111 in 1 : vector<8x32xf32>, vector<8x32xf32> -> vector<8x64xf32>
    %113 = tpu.concatenate %72, %112 in 0 : vector<8x64xf32>, vector<8x64xf32> -> vector<16x64xf32>
    %114 = arith.truncf %113 : vector<16x64xf32> to vector<16x64xbf16>
    %c0_38 = arith.constant 0 : index
    %c0_39 = arith.constant 0 : index
    %c0_40 = arith.constant 0 : index
    %115 = vector.load %arg6[%c0_38, %c0_39, %c0_40] : memref<2x64x64xbf16, #tpu.memory_space<vmem>>, vector<1x64x64xbf16>
    %116 = vector.shape_cast %115 : vector<1x64x64xbf16> to vector<64x64xbf16>
    %cst_41 = arith.constant dense<0.000000e+00> : vector<16x64xf32>
    %117 = tpu.matmul %114, %116, %cst_41 {dimension_numbers = #tpu.dot_dimension_numbers<[1], [0], [0], [1], [0, 0, 1, 1], [], []>} : vector<16x64xbf16>, vector<64x64xbf16>, vector<16x64xf32> -> vector<16x64xf32>
    %c0_42 = arith.constant 0 : index
    %c0_43 = arith.constant 0 : index
    %c0_44 = arith.constant 0 : index
    %118 = vector.load %arg7[%c0_42, %c0_43, %c0_44] : memref<2x1x64xf32, #tpu.memory_space<vmem>>, vector<1x1x64xf32>
    %119 = vector.shape_cast %118 : vector<1x1x64xf32> to vector<1x64xf32>
    %120 = vector.broadcast %119 : vector<1x64xf32> to vector<16x64xf32>
    %121 = arith.addf %117, %120 : vector<16x64xf32>
    %122 = arith.addf %121, %23 : vector<16x64xf32>
    %c0_45 = arith.constant 0 : index
    %c0_46 = arith.constant 0 : index
    %c0_47 = arith.constant 0 : index
    %123 = vector.load %arg8[%c0_45, %c0_46, %c0_47] : memref<2x1x64xf32, #tpu.memory_space<vmem>>, vector<1x1x64xf32>
    %124 = vector.shape_cast %123 : vector<1x1x64xf32> to vector<1x64xf32>
    %c0_48 = arith.constant 0 : index
    %c0_49 = arith.constant 0 : index
    %c0_50 = arith.constant 0 : index
    %125 = vector.load %arg9[%c0_48, %c0_49, %c0_50] : memref<2x1x64xf32, #tpu.memory_space<vmem>>, vector<1x1x64xf32>
    %126 = vector.shape_cast %125 : vector<1x1x64xf32> to vector<1x64xf32>
    %cst_51 = arith.constant dense<0.000000e+00> : vector<16xf32>
    %127 = vector.multi_reduction <add>, %122, %cst_51 [1] : vector<16x64xf32> to vector<16xf32>
    %128 = vector.shape_cast %127 : vector<16xf32> to vector<16x1xf32>
    %cst_52 = arith.constant 6.400000e+01 : f32
    %129 = vector.broadcast %cst_52 : f32 to vector<16x1xf32>
    %130 = arith.divf %128, %129 : vector<16x1xf32>
    %131 = vector.broadcast %130 : vector<16x1xf32> to vector<16x64xf32>
    %132 = arith.subf %122, %131 : vector<16x64xf32>
    %133 = arith.mulf %132, %132 : vector<16x64xf32>
    %cst_53 = arith.constant dense<0.000000e+00> : vector<16xf32>
    %134 = vector.multi_reduction <add>, %133, %cst_53 [1] : vector<16x64xf32> to vector<16xf32>
    %135 = vector.shape_cast %134 : vector<16xf32> to vector<16x1xf32>
    %cst_54 = arith.constant 6.400000e+01 : f32
    %136 = vector.broadcast %cst_54 : f32 to vector<16x1xf32>
    %137 = arith.divf %135, %136 : vector<16x1xf32>
    %cst_55 = arith.constant 9.99999996E-13 : f32
    %138 = vector.broadcast %cst_55 : f32 to vector<16x1xf32>
    %139 = arith.addf %137, %138 : vector<16x1xf32>
    %140 = math.rsqrt %139 : vector<16x1xf32>
    %141 = vector.broadcast %140 : vector<16x1xf32> to vector<16x64xf32>
    %142 = arith.mulf %132, %141 : vector<16x64xf32>
    %143 = vector.broadcast %124 : vector<1x64xf32> to vector<16x64xf32>
    %144 = arith.mulf %142, %143 : vector<16x64xf32>
    %145 = vector.broadcast %126 : vector<1x64xf32> to vector<16x64xf32>
    %146 = arith.addf %144, %145 : vector<16x64xf32>
    %147 = arith.truncf %146 : vector<16x64xf32> to vector<16x64xbf16>
    %c0_56 = arith.constant 0 : index
    %c0_57 = arith.constant 0 : index
    %c0_58 = arith.constant 0 : index
    %148 = vector.load %arg10[%c0_56, %c0_57, %c0_58] : memref<2x64x256xbf16, #tpu.memory_space<vmem>>, vector<1x64x256xbf16>
    %149 = vector.shape_cast %148 : vector<1x64x256xbf16> to vector<64x256xbf16>
    %cst_59 = arith.constant dense<0.000000e+00> : vector<16x256xf32>
    %150 = tpu.matmul %147, %149, %cst_59 {dimension_numbers = #tpu.dot_dimension_numbers<[1], [0], [0], [1], [0, 0, 1, 1], [], []>} : vector<16x64xbf16>, vector<64x256xbf16>, vector<16x256xf32> -> vector<16x256xf32>
    %c0_60 = arith.constant 0 : index
    %c0_61 = arith.constant 0 : index
    %c0_62 = arith.constant 0 : index
    %151 = vector.load %arg11[%c0_60, %c0_61, %c0_62] : memref<2x1x256xf32, #tpu.memory_space<vmem>>, vector<1x1x256xf32>
    %152 = vector.shape_cast %151 : vector<1x1x256xf32> to vector<1x256xf32>
    %153 = vector.broadcast %152 : vector<1x256xf32> to vector<16x256xf32>
    %154 = arith.addf %150, %153 : vector<16x256xf32>
    %cst_63 = arith.constant 5.000000e-01 : f32
    %155 = vector.broadcast %cst_63 : f32 to vector<16x256xf32>
    %156 = arith.mulf %155, %154 : vector<16x256xf32>
    %cst_64 = arith.constant 0.707106769 : f32
    %157 = vector.broadcast %cst_64 : f32 to vector<16x256xf32>
    %158 = arith.mulf %154, %157 : vector<16x256xf32>
    %159 = math.erf %158 : vector<16x256xf32>
    %cst_65 = arith.constant 1.000000e+00 : f32
    %160 = vector.broadcast %cst_65 : f32 to vector<16x256xf32>
    %161 = arith.addf %160, %159 : vector<16x256xf32>
    %162 = arith.mulf %156, %161 : vector<16x256xf32>
    %163 = arith.truncf %162 : vector<16x256xf32> to vector<16x256xbf16>
    %c0_66 = arith.constant 0 : index
    %c0_67 = arith.constant 0 : index
    %c0_68 = arith.constant 0 : index
    %164 = vector.load %arg12[%c0_66, %c0_67, %c0_68] : memref<2x256x64xbf16, #tpu.memory_space<vmem>>, vector<1x256x64xbf16>
    %165 = vector.shape_cast %164 : vector<1x256x64xbf16> to vector<256x64xbf16>
    %cst_69 = arith.constant dense<0.000000e+00> : vector<16x64xf32>
    %166 = tpu.matmul %163, %165, %cst_69 {dimension_numbers = #tpu.dot_dimension_numbers<[1], [0], [0], [1], [0, 0, 1, 1], [], []>} : vector<16x256xbf16>, vector<256x64xbf16>, vector<16x64xf32> -> vector<16x64xf32>
    %c0_70 = arith.constant 0 : index
    %c0_71 = arith.constant 0 : index
    %c0_72 = arith.constant 0 : index
    %167 = vector.load %arg13[%c0_70, %c0_71, %c0_72] : memref<2x1x64xf32, #tpu.memory_space<vmem>>, vector<1x1x64xf32>
    %168 = vector.shape_cast %167 : vector<1x1x64xf32> to vector<1x64xf32>
    %169 = vector.broadcast %168 : vector<1x64xf32> to vector<16x64xf32>
    %170 = arith.addf %166, %169 : vector<16x64xf32>
    %171 = arith.addf %170, %146 : vector<16x64xf32>
    %c0_73 = arith.constant 0 : index
    %c0_74 = arith.constant 0 : index
    %c0_75 = arith.constant 0 : index
    %172 = vector.load %arg14[%c0_73, %c0_74, %c0_75] : memref<2x1x64xf32, #tpu.memory_space<vmem>>, vector<1x1x64xf32>
    %173 = vector.shape_cast %172 : vector<1x1x64xf32> to vector<1x64xf32>
    %c0_76 = arith.constant 0 : index
    %c0_77 = arith.constant 0 : index
    %c0_78 = arith.constant 0 : index
    %174 = vector.load %arg15[%c0_76, %c0_77, %c0_78] : memref<2x1x64xf32, #tpu.memory_space<vmem>>, vector<1x1x64xf32>
    %175 = vector.shape_cast %174 : vector<1x1x64xf32> to vector<1x64xf32>
    %cst_79 = arith.constant dense<0.000000e+00> : vector<16xf32>
    %176 = vector.multi_reduction <add>, %171, %cst_79 [1] : vector<16x64xf32> to vector<16xf32>
    %177 = vector.shape_cast %176 : vector<16xf32> to vector<16x1xf32>
    %cst_80 = arith.constant 6.400000e+01 : f32
    %178 = vector.broadcast %cst_80 : f32 to vector<16x1xf32>
    %179 = arith.divf %177, %178 : vector<16x1xf32>
    %180 = vector.broadcast %179 : vector<16x1xf32> to vector<16x64xf32>
    %181 = arith.subf %171, %180 : vector<16x64xf32>
    %182 = arith.mulf %181, %181 : vector<16x64xf32>
    %cst_81 = arith.constant dense<0.000000e+00> : vector<16xf32>
    %183 = vector.multi_reduction <add>, %182, %cst_81 [1] : vector<16x64xf32> to vector<16xf32>
    %184 = vector.shape_cast %183 : vector<16xf32> to vector<16x1xf32>
    %cst_82 = arith.constant 6.400000e+01 : f32
    %185 = vector.broadcast %cst_82 : f32 to vector<16x1xf32>
    %186 = arith.divf %184, %185 : vector<16x1xf32>
    %cst_83 = arith.constant 9.99999996E-13 : f32
    %187 = vector.broadcast %cst_83 : f32 to vector<16x1xf32>
    %188 = arith.addf %186, %187 : vector<16x1xf32>
    %189 = math.rsqrt %188 : vector<16x1xf32>
    %190 = vector.broadcast %189 : vector<16x1xf32> to vector<16x64xf32>
    %191 = arith.mulf %181, %190 : vector<16x64xf32>
    %192 = vector.broadcast %173 : vector<1x64xf32> to vector<16x64xf32>
    %193 = arith.mulf %191, %192 : vector<16x64xf32>
    %194 = vector.broadcast %175 : vector<1x64xf32> to vector<16x64xf32>
    %195 = arith.addf %193, %194 : vector<16x64xf32>
    %196 = arith.truncf %195 : vector<16x64xf32> to vector<16x64xbf16>
    %c1 = arith.constant 1 : index
    %c0_84 = arith.constant 0 : index
    %c0_85 = arith.constant 0 : index
    %197 = vector.load %arg4[%c1, %c0_84, %c0_85] : memref<2x64x768xbf16, #tpu.memory_space<vmem>>, vector<1x64x768xbf16>
    %198 = vector.shape_cast %197 : vector<1x64x768xbf16> to vector<64x768xbf16>
    %cst_86 = arith.constant dense<0.000000e+00> : vector<16x768xf32>
    %199 = tpu.matmul %196, %198, %cst_86 {dimension_numbers = #tpu.dot_dimension_numbers<[1], [0], [0], [1], [0, 0, 1, 1], [], []>} : vector<16x64xbf16>, vector<64x768xbf16>, vector<16x768xf32> -> vector<16x768xf32>
    %c1_87 = arith.constant 1 : index
    %c0_88 = arith.constant 0 : index
    %c0_89 = arith.constant 0 : index
    %200 = vector.load %arg5[%c1_87, %c0_88, %c0_89] : memref<2x1x768xf32, #tpu.memory_space<vmem>>, vector<1x1x768xf32>
    %201 = vector.shape_cast %200 : vector<1x1x768xf32> to vector<1x768xf32>
    %202 = vector.broadcast %201 : vector<1x768xf32> to vector<16x768xf32>
    %203 = arith.addf %199, %202 : vector<16x768xf32>
    %204 = arith.truncf %203 : vector<16x768xf32> to vector<16x768xbf16>
    %205 = vector.extract_strided_slice %0 {offsets = [0, 0], sizes = [1, 8], strides = [1, 1]} : vector<2x8xf32> to vector<1x8xf32>
    %206 = vector.extract_strided_slice %204 {offsets = [0, 0], sizes = [8, 32], strides = [1, 1]} : vector<16x768xbf16> to vector<8x32xbf16>
    %207 = vector.extract_strided_slice %204 {offsets = [0, 128], sizes = [8, 32], strides = [1, 1]} : vector<16x768xbf16> to vector<8x32xbf16>
    %208 = vector.extract_strided_slice %204 {offsets = [0, 256], sizes = [8, 32], strides = [1, 1]} : vector<16x768xbf16> to vector<8x32xbf16>
    %cst_90 = arith.constant dense<0.000000e+00> : vector<8x8xf32>
    %209 = tpu.matmul %206, %207, %cst_90 {dimension_numbers = #tpu.dot_dimension_numbers<[1], [1], [0], [0], [0, 0, 1, 0], [], []>} : vector<8x32xbf16>, vector<8x32xbf16>, vector<8x8xf32> -> vector<8x8xf32>
    %cst_91 = arith.constant 0.176776692 : f32
    %210 = vector.broadcast %cst_91 : f32 to vector<8x8xf32>
    %211 = arith.mulf %209, %210 : vector<8x8xf32>
    %212 = vector.broadcast %205 : vector<1x8xf32> to vector<8x8xf32>
    %213 = arith.addf %211, %212 : vector<8x8xf32>
    %cst_92 = arith.constant dense<0xFF800000> : vector<8xf32>
    %214 = vector.multi_reduction <maximumf>, %213, %cst_92 [1] : vector<8x8xf32> to vector<8xf32>
    %215 = vector.shape_cast %214 : vector<8xf32> to vector<8x1xf32>
    %216 = vector.broadcast %215 : vector<8x1xf32> to vector<8x8xf32>
    %217 = arith.subf %213, %216 : vector<8x8xf32>
    %218 = math.exp %217 : vector<8x8xf32>
    %cst_93 = arith.constant dense<0.000000e+00> : vector<8xf32>
    %219 = vector.multi_reduction <add>, %218, %cst_93 [1] : vector<8x8xf32> to vector<8xf32>
    %220 = vector.shape_cast %219 : vector<8xf32> to vector<8x1xf32>
    %221 = vector.broadcast %220 : vector<8x1xf32> to vector<8x8xf32>
    %222 = arith.divf %218, %221 : vector<8x8xf32>
    %223 = arith.truncf %222 : vector<8x8xf32> to vector<8x8xbf16>
    %cst_94 = arith.constant dense<0.000000e+00> : vector<8x32xf32>
    %224 = tpu.matmul %223, %208, %cst_94 {dimension_numbers = #tpu.dot_dimension_numbers<[1], [0], [0], [1], [0, 0, 1, 1], [], []>} : vector<8x8xbf16>, vector<8x32xbf16>, vector<8x32xf32> -> vector<8x32xf32>
    %225 = vector.extract_strided_slice %204 {offsets = [0, 384], sizes = [8, 32], strides = [1, 1]} : vector<16x768xbf16> to vector<8x32xbf16>
    %226 = vector.extract_strided_slice %204 {offsets = [0, 512], sizes = [8, 32], strides = [1, 1]} : vector<16x768xbf16> to vector<8x32xbf16>
    %227 = vector.extract_strided_slice %204 {offsets = [0, 640], sizes = [8, 32], strides = [1, 1]} : vector<16x768xbf16> to vector<8x32xbf16>
    %cst_95 = arith.constant dense<0.000000e+00> : vector<8x8xf32>
    %228 = tpu.matmul %225, %226, %cst_95 {dimension_numbers = #tpu.dot_dimension_numbers<[1], [1], [0], [0], [0, 0, 1, 0], [], []>} : vector<8x32xbf16>, vector<8x32xbf16>, vector<8x8xf32> -> vector<8x8xf32>
    %cst_96 = arith.constant 0.176776692 : f32
    %229 = vector.broadcast %cst_96 : f32 to vector<8x8xf32>
    %230 = arith.mulf %228, %229 : vector<8x8xf32>
    %231 = vector.broadcast %205 : vector<1x8xf32> to vector<8x8xf32>
    %232 = arith.addf %230, %231 : vector<8x8xf32>
    %cst_97 = arith.constant dense<0xFF800000> : vector<8xf32>
    %233 = vector.multi_reduction <maximumf>, %232, %cst_97 [1] : vector<8x8xf32> to vector<8xf32>
    %234 = vector.shape_cast %233 : vector<8xf32> to vector<8x1xf32>
    %235 = vector.broadcast %234 : vector<8x1xf32> to vector<8x8xf32>
    %236 = arith.subf %232, %235 : vector<8x8xf32>
    %237 = math.exp %236 : vector<8x8xf32>
    %cst_98 = arith.constant dense<0.000000e+00> : vector<8xf32>
    %238 = vector.multi_reduction <add>, %237, %cst_98 [1] : vector<8x8xf32> to vector<8xf32>
    %239 = vector.shape_cast %238 : vector<8xf32> to vector<8x1xf32>
    %240 = vector.broadcast %239 : vector<8x1xf32> to vector<8x8xf32>
    %241 = arith.divf %237, %240 : vector<8x8xf32>
    %242 = arith.truncf %241 : vector<8x8xf32> to vector<8x8xbf16>
    %cst_99 = arith.constant dense<0.000000e+00> : vector<8x32xf32>
    %243 = tpu.matmul %242, %227, %cst_99 {dimension_numbers = #tpu.dot_dimension_numbers<[1], [0], [0], [1], [0, 0, 1, 1], [], []>} : vector<8x8xbf16>, vector<8x32xbf16>, vector<8x32xf32> -> vector<8x32xf32>
    %244 = tpu.concatenate %224, %243 in 1 : vector<8x32xf32>, vector<8x32xf32> -> vector<8x64xf32>
    %245 = vector.extract_strided_slice %0 {offsets = [1, 0], sizes = [1, 8], strides = [1, 1]} : vector<2x8xf32> to vector<1x8xf32>
    %246 = vector.extract_strided_slice %204 {offsets = [8, 0], sizes = [8, 32], strides = [1, 1]} : vector<16x768xbf16> to vector<8x32xbf16>
    %247 = vector.extract_strided_slice %204 {offsets = [8, 128], sizes = [8, 32], strides = [1, 1]} : vector<16x768xbf16> to vector<8x32xbf16>
    %248 = vector.extract_strided_slice %204 {offsets = [8, 256], sizes = [8, 32], strides = [1, 1]} : vector<16x768xbf16> to vector<8x32xbf16>
    %cst_100 = arith.constant dense<0.000000e+00> : vector<8x8xf32>
    %249 = tpu.matmul %246, %247, %cst_100 {dimension_numbers = #tpu.dot_dimension_numbers<[1], [1], [0], [0], [0, 0, 1, 0], [], []>} : vector<8x32xbf16>, vector<8x32xbf16>, vector<8x8xf32> -> vector<8x8xf32>
    %cst_101 = arith.constant 0.176776692 : f32
    %250 = vector.broadcast %cst_101 : f32 to vector<8x8xf32>
    %251 = arith.mulf %249, %250 : vector<8x8xf32>
    %252 = vector.broadcast %245 : vector<1x8xf32> to vector<8x8xf32>
    %253 = arith.addf %251, %252 : vector<8x8xf32>
    %cst_102 = arith.constant dense<0xFF800000> : vector<8xf32>
    %254 = vector.multi_reduction <maximumf>, %253, %cst_102 [1] : vector<8x8xf32> to vector<8xf32>
    %255 = vector.shape_cast %254 : vector<8xf32> to vector<8x1xf32>
    %256 = vector.broadcast %255 : vector<8x1xf32> to vector<8x8xf32>
    %257 = arith.subf %253, %256 : vector<8x8xf32>
    %258 = math.exp %257 : vector<8x8xf32>
    %cst_103 = arith.constant dense<0.000000e+00> : vector<8xf32>
    %259 = vector.multi_reduction <add>, %258, %cst_103 [1] : vector<8x8xf32> to vector<8xf32>
    %260 = vector.shape_cast %259 : vector<8xf32> to vector<8x1xf32>
    %261 = vector.broadcast %260 : vector<8x1xf32> to vector<8x8xf32>
    %262 = arith.divf %258, %261 : vector<8x8xf32>
    %263 = arith.truncf %262 : vector<8x8xf32> to vector<8x8xbf16>
    %cst_104 = arith.constant dense<0.000000e+00> : vector<8x32xf32>
    %264 = tpu.matmul %263, %248, %cst_104 {dimension_numbers = #tpu.dot_dimension_numbers<[1], [0], [0], [1], [0, 0, 1, 1], [], []>} : vector<8x8xbf16>, vector<8x32xbf16>, vector<8x32xf32> -> vector<8x32xf32>
    %265 = vector.extract_strided_slice %204 {offsets = [8, 384], sizes = [8, 32], strides = [1, 1]} : vector<16x768xbf16> to vector<8x32xbf16>
    %266 = vector.extract_strided_slice %204 {offsets = [8, 512], sizes = [8, 32], strides = [1, 1]} : vector<16x768xbf16> to vector<8x32xbf16>
    %267 = vector.extract_strided_slice %204 {offsets = [8, 640], sizes = [8, 32], strides = [1, 1]} : vector<16x768xbf16> to vector<8x32xbf16>
    %cst_105 = arith.constant dense<0.000000e+00> : vector<8x8xf32>
    %268 = tpu.matmul %265, %266, %cst_105 {dimension_numbers = #tpu.dot_dimension_numbers<[1], [1], [0], [0], [0, 0, 1, 0], [], []>} : vector<8x32xbf16>, vector<8x32xbf16>, vector<8x8xf32> -> vector<8x8xf32>
    %cst_106 = arith.constant 0.176776692 : f32
    %269 = vector.broadcast %cst_106 : f32 to vector<8x8xf32>
    %270 = arith.mulf %268, %269 : vector<8x8xf32>
    %271 = vector.broadcast %245 : vector<1x8xf32> to vector<8x8xf32>
    %272 = arith.addf %270, %271 : vector<8x8xf32>
    %cst_107 = arith.constant dense<0xFF800000> : vector<8xf32>
    %273 = vector.multi_reduction <maximumf>, %272, %cst_107 [1] : vector<8x8xf32> to vector<8xf32>
    %274 = vector.shape_cast %273 : vector<8xf32> to vector<8x1xf32>
    %275 = vector.broadcast %274 : vector<8x1xf32> to vector<8x8xf32>
    %276 = arith.subf %272, %275 : vector<8x8xf32>
    %277 = math.exp %276 : vector<8x8xf32>
    %cst_108 = arith.constant dense<0.000000e+00> : vector<8xf32>
    %278 = vector.multi_reduction <add>, %277, %cst_108 [1] : vector<8x8xf32> to vector<8xf32>
    %279 = vector.shape_cast %278 : vector<8xf32> to vector<8x1xf32>
    %280 = vector.broadcast %279 : vector<8x1xf32> to vector<8x8xf32>
    %281 = arith.divf %277, %280 : vector<8x8xf32>
    %282 = arith.truncf %281 : vector<8x8xf32> to vector<8x8xbf16>
    %cst_109 = arith.constant dense<0.000000e+00> : vector<8x32xf32>
    %283 = tpu.matmul %282, %267, %cst_109 {dimension_numbers = #tpu.dot_dimension_numbers<[1], [0], [0], [1], [0, 0, 1, 1], [], []>} : vector<8x8xbf16>, vector<8x32xbf16>, vector<8x32xf32> -> vector<8x32xf32>
    %284 = tpu.concatenate %264, %283 in 1 : vector<8x32xf32>, vector<8x32xf32> -> vector<8x64xf32>
    %285 = tpu.concatenate %244, %284 in 0 : vector<8x64xf32>, vector<8x64xf32> -> vector<16x64xf32>
    %286 = arith.truncf %285 : vector<16x64xf32> to vector<16x64xbf16>
    %c1_110 = arith.constant 1 : index
    %c0_111 = arith.constant 0 : index
    %c0_112 = arith.constant 0 : index
    %287 = vector.load %arg6[%c1_110, %c0_111, %c0_112] : memref<2x64x64xbf16, #tpu.memory_space<vmem>>, vector<1x64x64xbf16>
    %288 = vector.shape_cast %287 : vector<1x64x64xbf16> to vector<64x64xbf16>
    %cst_113 = arith.constant dense<0.000000e+00> : vector<16x64xf32>
    %289 = tpu.matmul %286, %288, %cst_113 {dimension_numbers = #tpu.dot_dimension_numbers<[1], [0], [0], [1], [0, 0, 1, 1], [], []>} : vector<16x64xbf16>, vector<64x64xbf16>, vector<16x64xf32> -> vector<16x64xf32>
    %c1_114 = arith.constant 1 : index
    %c0_115 = arith.constant 0 : index
    %c0_116 = arith.constant 0 : index
    %290 = vector.load %arg7[%c1_114, %c0_115, %c0_116] : memref<2x1x64xf32, #tpu.memory_space<vmem>>, vector<1x1x64xf32>
    %291 = vector.shape_cast %290 : vector<1x1x64xf32> to vector<1x64xf32>
    %292 = vector.broadcast %291 : vector<1x64xf32> to vector<16x64xf32>
    %293 = arith.addf %289, %292 : vector<16x64xf32>
    %294 = arith.addf %293, %195 : vector<16x64xf32>
    %c1_117 = arith.constant 1 : index
    %c0_118 = arith.constant 0 : index
    %c0_119 = arith.constant 0 : index
    %295 = vector.load %arg8[%c1_117, %c0_118, %c0_119] : memref<2x1x64xf32, #tpu.memory_space<vmem>>, vector<1x1x64xf32>
    %296 = vector.shape_cast %295 : vector<1x1x64xf32> to vector<1x64xf32>
    %c1_120 = arith.constant 1 : index
    %c0_121 = arith.constant 0 : index
    %c0_122 = arith.constant 0 : index
    %297 = vector.load %arg9[%c1_120, %c0_121, %c0_122] : memref<2x1x64xf32, #tpu.memory_space<vmem>>, vector<1x1x64xf32>
    %298 = vector.shape_cast %297 : vector<1x1x64xf32> to vector<1x64xf32>
    %cst_123 = arith.constant dense<0.000000e+00> : vector<16xf32>
    %299 = vector.multi_reduction <add>, %294, %cst_123 [1] : vector<16x64xf32> to vector<16xf32>
    %300 = vector.shape_cast %299 : vector<16xf32> to vector<16x1xf32>
    %cst_124 = arith.constant 6.400000e+01 : f32
    %301 = vector.broadcast %cst_124 : f32 to vector<16x1xf32>
    %302 = arith.divf %300, %301 : vector<16x1xf32>
    %303 = vector.broadcast %302 : vector<16x1xf32> to vector<16x64xf32>
    %304 = arith.subf %294, %303 : vector<16x64xf32>
    %305 = arith.mulf %304, %304 : vector<16x64xf32>
    %cst_125 = arith.constant dense<0.000000e+00> : vector<16xf32>
    %306 = vector.multi_reduction <add>, %305, %cst_125 [1] : vector<16x64xf32> to vector<16xf32>
    %307 = vector.shape_cast %306 : vector<16xf32> to vector<16x1xf32>
    %cst_126 = arith.constant 6.400000e+01 : f32
    %308 = vector.broadcast %cst_126 : f32 to vector<16x1xf32>
    %309 = arith.divf %307, %308 : vector<16x1xf32>
    %cst_127 = arith.constant 9.99999996E-13 : f32
    %310 = vector.broadcast %cst_127 : f32 to vector<16x1xf32>
    %311 = arith.addf %309, %310 : vector<16x1xf32>
    %312 = math.rsqrt %311 : vector<16x1xf32>
    %313 = vector.broadcast %312 : vector<16x1xf32> to vector<16x64xf32>
    %314 = arith.mulf %304, %313 : vector<16x64xf32>
    %315 = vector.broadcast %296 : vector<1x64xf32> to vector<16x64xf32>
    %316 = arith.mulf %314, %315 : vector<16x64xf32>
    %317 = vector.broadcast %298 : vector<1x64xf32> to vector<16x64xf32>
    %318 = arith.addf %316, %317 : vector<16x64xf32>
    %319 = arith.truncf %318 : vector<16x64xf32> to vector<16x64xbf16>
    %c1_128 = arith.constant 1 : index
    %c0_129 = arith.constant 0 : index
    %c0_130 = arith.constant 0 : index
    %320 = vector.load %arg10[%c1_128, %c0_129, %c0_130] : memref<2x64x256xbf16, #tpu.memory_space<vmem>>, vector<1x64x256xbf16>
    %321 = vector.shape_cast %320 : vector<1x64x256xbf16> to vector<64x256xbf16>
    %cst_131 = arith.constant dense<0.000000e+00> : vector<16x256xf32>
    %322 = tpu.matmul %319, %321, %cst_131 {dimension_numbers = #tpu.dot_dimension_numbers<[1], [0], [0], [1], [0, 0, 1, 1], [], []>} : vector<16x64xbf16>, vector<64x256xbf16>, vector<16x256xf32> -> vector<16x256xf32>
    %c1_132 = arith.constant 1 : index
    %c0_133 = arith.constant 0 : index
    %c0_134 = arith.constant 0 : index
    %323 = vector.load %arg11[%c1_132, %c0_133, %c0_134] : memref<2x1x256xf32, #tpu.memory_space<vmem>>, vector<1x1x256xf32>
    %324 = vector.shape_cast %323 : vector<1x1x256xf32> to vector<1x256xf32>
    %325 = vector.broadcast %324 : vector<1x256xf32> to vector<16x256xf32>
    %326 = arith.addf %322, %325 : vector<16x256xf32>
    %cst_135 = arith.constant 5.000000e-01 : f32
    %327 = vector.broadcast %cst_135 : f32 to vector<16x256xf32>
    %328 = arith.mulf %327, %326 : vector<16x256xf32>
    %cst_136 = arith.constant 0.707106769 : f32
    %329 = vector.broadcast %cst_136 : f32 to vector<16x256xf32>
    %330 = arith.mulf %326, %329 : vector<16x256xf32>
    %331 = math.erf %330 : vector<16x256xf32>
    %cst_137 = arith.constant 1.000000e+00 : f32
    %332 = vector.broadcast %cst_137 : f32 to vector<16x256xf32>
    %333 = arith.addf %332, %331 : vector<16x256xf32>
    %334 = arith.mulf %328, %333 : vector<16x256xf32>
    %335 = arith.truncf %334 : vector<16x256xf32> to vector<16x256xbf16>
    %c1_138 = arith.constant 1 : index
    %c0_139 = arith.constant 0 : index
    %c0_140 = arith.constant 0 : index
    %336 = vector.load %arg12[%c1_138, %c0_139, %c0_140] : memref<2x256x64xbf16, #tpu.memory_space<vmem>>, vector<1x256x64xbf16>
    %337 = vector.shape_cast %336 : vector<1x256x64xbf16> to vector<256x64xbf16>
    %cst_141 = arith.constant dense<0.000000e+00> : vector<16x64xf32>
    %338 = tpu.matmul %335, %337, %cst_141 {dimension_numbers = #tpu.dot_dimension_numbers<[1], [0], [0], [1], [0, 0, 1, 1], [], []>} : vector<16x256xbf16>, vector<256x64xbf16>, vector<16x64xf32> -> vector<16x64xf32>
    %c1_142 = arith.constant 1 : index
    %c0_143 = arith.constant 0 : index
    %c0_144 = arith.constant 0 : index
    %339 = vector.load %arg13[%c1_142, %c0_143, %c0_144] : memref<2x1x64xf32, #tpu.memory_space<vmem>>, vector<1x1x64xf32>
    %340 = vector.shape_cast %339 : vector<1x1x64xf32> to vector<1x64xf32>
    %341 = vector.broadcast %340 : vector<1x64xf32> to vector<16x64xf32>
    %342 = arith.addf %338, %341 : vector<16x64xf32>
    %343 = arith.addf %342, %318 : vector<16x64xf32>
    %c1_145 = arith.constant 1 : index
    %c0_146 = arith.constant 0 : index
    %c0_147 = arith.constant 0 : index
    %344 = vector.load %arg14[%c1_145, %c0_146, %c0_147] : memref<2x1x64xf32, #tpu.memory_space<vmem>>, vector<1x1x64xf32>
    %345 = vector.shape_cast %344 : vector<1x1x64xf32> to vector<1x64xf32>
    %c1_148 = arith.constant 1 : index
    %c0_149 = arith.constant 0 : index
    %c0_150 = arith.constant 0 : index
    %346 = vector.load %arg15[%c1_148, %c0_149, %c0_150] : memref<2x1x64xf32, #tpu.memory_space<vmem>>, vector<1x1x64xf32>
    %347 = vector.shape_cast %346 : vector<1x1x64xf32> to vector<1x64xf32>
    %cst_151 = arith.constant dense<0.000000e+00> : vector<16xf32>
    %348 = vector.multi_reduction <add>, %343, %cst_151 [1] : vector<16x64xf32> to vector<16xf32>
    %349 = vector.shape_cast %348 : vector<16xf32> to vector<16x1xf32>
    %cst_152 = arith.constant 6.400000e+01 : f32
    %350 = vector.broadcast %cst_152 : f32 to vector<16x1xf32>
    %351 = arith.divf %349, %350 : vector<16x1xf32>
    %352 = vector.broadcast %351 : vector<16x1xf32> to vector<16x64xf32>
    %353 = arith.subf %343, %352 : vector<16x64xf32>
    %354 = arith.mulf %353, %353 : vector<16x64xf32>
    %cst_153 = arith.constant dense<0.000000e+00> : vector<16xf32>
    %355 = vector.multi_reduction <add>, %354, %cst_153 [1] : vector<16x64xf32> to vector<16xf32>
    %356 = vector.shape_cast %355 : vector<16xf32> to vector<16x1xf32>
    %cst_154 = arith.constant 6.400000e+01 : f32
    %357 = vector.broadcast %cst_154 : f32 to vector<16x1xf32>
    %358 = arith.divf %356, %357 : vector<16x1xf32>
    %cst_155 = arith.constant 9.99999996E-13 : f32
    %359 = vector.broadcast %cst_155 : f32 to vector<16x1xf32>
    %360 = arith.addf %358, %359 : vector<16x1xf32>
    %361 = math.rsqrt %360 : vector<16x1xf32>
    %362 = vector.broadcast %361 : vector<16x1xf32> to vector<16x64xf32>
    %363 = arith.mulf %353, %362 : vector<16x64xf32>
    %364 = vector.broadcast %345 : vector<1x64xf32> to vector<16x64xf32>
    %365 = arith.mulf %363, %364 : vector<16x64xf32>
    %366 = vector.broadcast %347 : vector<1x64xf32> to vector<16x64xf32>
    %367 = arith.addf %365, %366 : vector<16x64xf32>
    %368 = vector.extract_strided_slice %367 {offsets = [0, 0], sizes = [1, 64], strides = [1, 1]} : vector<16x64xf32> to vector<1x64xf32>
    %369 = vector.extract_strided_slice %367 {offsets = [8, 0], sizes = [1, 64], strides = [1, 1]} : vector<16x64xf32> to vector<1x64xf32>
    %370 = tpu.concatenate %368, %369 in 0 : vector<1x64xf32>, vector<1x64xf32> -> vector<2x64xf32>
    %371 = arith.truncf %370 : vector<2x64xf32> to vector<2x64xbf16>
    %c0_156 = arith.constant 0 : index
    %c0_157 = arith.constant 0 : index
    %372 = vector.load %arg16[%c0_156, %c0_157] : memref<64x64xbf16, #tpu.memory_space<vmem>>, vector<64x64xbf16>
    %cst_158 = arith.constant dense<0.000000e+00> : vector<2x64xf32>
    %373 = tpu.matmul %371, %372, %cst_158 {dimension_numbers = #tpu.dot_dimension_numbers<[1], [0], [0], [1], [0, 0, 1, 1], [], []>} : vector<2x64xbf16>, vector<64x64xbf16>, vector<2x64xf32> -> vector<2x64xf32>
    %c0_159 = arith.constant 0 : index
    %c0_160 = arith.constant 0 : index
    %374 = vector.load %arg17[%c0_159, %c0_160] : memref<1x64xf32, #tpu.memory_space<vmem>>, vector<1x64xf32>
    %375 = vector.broadcast %374 : vector<1x64xf32> to vector<2x64xf32>
    %376 = arith.addf %373, %375 : vector<2x64xf32>
    %377 = math.tanh %376 : vector<2x64xf32>
    %378 = arith.truncf %377 : vector<2x64xf32> to vector<2x64xbf16>
    %c0_161 = arith.constant 0 : index
    %c0_162 = arith.constant 0 : index
    %379 = vector.load %arg18[%c0_161, %c0_162] : memref<64x128xbf16, #tpu.memory_space<vmem>>, vector<64x128xbf16>
    %cst_163 = arith.constant dense<0.000000e+00> : vector<2x128xf32>
    %380 = tpu.matmul %378, %379, %cst_163 {dimension_numbers = #tpu.dot_dimension_numbers<[1], [0], [0], [1], [0, 0, 1, 1], [], []>} : vector<2x64xbf16>, vector<64x128xbf16>, vector<2x128xf32> -> vector<2x128xf32>
    %c0_164 = arith.constant 0 : index
    %c0_165 = arith.constant 0 : index
    %381 = vector.load %arg19[%c0_164, %c0_165] : memref<1x128xf32, #tpu.memory_space<vmem>>, vector<1x128xf32>
    %382 = vector.broadcast %381 : vector<1x128xf32> to vector<2x128xf32>
    %383 = arith.addf %380, %382 : vector<2x128xf32>
    %c0_166 = arith.constant 0 : index
    %c0_167 = arith.constant 0 : index
    %384 = vector.load %arg22[%c0_166, %c0_167] : memref<2x128xf32, #tpu.memory_space<vmem>>, vector<2x128xf32>
    tpu.vector_store %arg22[%c0_166, %c0_167], %383 {strides = array<i32>} : memref<2x128xf32, #tpu.memory_space<vmem>>, vector<2x128xf32>,
    %385 = arith.truncf %367 : vector<16x64xf32> to vector<16x64xbf16>
    %c0_168 = arith.constant 0 : index
    %c0_169 = arith.constant 0 : index
    %386 = vector.load %arg20[%c0_168, %c0_169] : memref<64x128xbf16, #tpu.memory_space<vmem>>, vector<64x128xbf16>
    %cst_170 = arith.constant dense<0.000000e+00> : vector<16x128xf32>
    %387 = tpu.matmul %385, %386, %cst_170 {dimension_numbers = #tpu.dot_dimension_numbers<[1], [0], [0], [1], [0, 0, 1, 1], [], []>} : vector<16x64xbf16>, vector<64x128xbf16>, vector<16x128xf32> -> vector<16x128xf32>
    %c0_171 = arith.constant 0 : index
    %c0_172 = arith.constant 0 : index
    %388 = vector.load %arg21[%c0_171, %c0_172] : memref<1x128xf32, #tpu.memory_space<vmem>>, vector<1x128xf32>
    %389 = vector.broadcast %388 : vector<1x128xf32> to vector<16x128xf32>
    %390 = arith.addf %387, %389 : vector<16x128xf32>
    %391 = arith.negf %390 : vector<16x128xf32>
    %392 = math.exp %391 : vector<16x128xf32>
    %cst_173 = arith.constant 1.000000e+00 : f32
    %393 = vector.broadcast %cst_173 : f32 to vector<16x128xf32>
    %394 = arith.addf %393, %392 : vector<16x128xf32>
    %395 = arith.divf %393, %394 : vector<16x128xf32>
    %c0_174 = arith.constant 0 : index
    %c0_175 = arith.constant 0 : index
    %396 = vector.load %arg23[%c0_174, %c0_175] : memref<16x128xf32, #tpu.memory_space<vmem>>, vector<16x128xf32>
    tpu.vector_store %arg23[%c0_174, %c0_175], %395 {strides = array<i32>} : memref<16x128xf32, #tpu.memory_space<vmem>>, vector<16x128xf32>,
    return
  }
}

</mosaic_0001>

<llo_original>
// kernel: squeeze.1
$region0: #{squeeze.1}
  %s0 = inlined_call_operand.vmem [shape: f32[16], index: 0, kind: input, shape index: {}]
  %s1 = inlined_call_operand.hbm [shape: f32[2,8], index: 1, kind: output, shape index: {}]
  $region1: #{squeeze.1} parent=0
    #allocation0 [shape = 'u8[1024]{0}', space=vmem, size = 0x400, scoped, tag = 'operand span for operand 1']
    #allocation1 [shape = 's32[1]{0}', space=sflag, size = 0x4, scoped, tag = 'scoped memory for squeeze.1']
    #allocation2 [shape = 'u8[4096]{0}', space=vmem, size = 0x1000, scoped, tag = 'scoped mem for output reshape']
    #allocation3 [shape = 'u8[4096]{0}', space=vmem, size = 0x1000, scoped, tag = 'scoped mem for input reshape']
    %2 = vsyncpa [#allocation1], 0
    %s4 = ssub.s32 2, 1
    %v5 = vld [vmem:[%s0] sm:%s4]
    %6 = vst [vmem:[#allocation3] sm:%s4] %v5
    %v7 = vld [vmem:[#allocation3] sm:$0x1]
    %vm8 = vcmask 64512
    %9 = vst.msk [vmem:[#allocation2] sm:$0x1] %vm8, %v7
    %v10 = vld [vmem:[#allocation3] sm:$0x1]
    %11 = vrot.lane.b32.xlu0 %v10, 120
    %v12 = vpop.permute.xlu0 %11
    %vm13 = vcmask 64512
    %s14 = scalar_lea.vmem [#allocation2], 1
    %15 = vst.msk [vmem:[%s14] sm:$0x1] %vm13, %v12
    %s17 = ssub.s32 4, 1
    %v18 = vld [vmem:[#allocation2] sm:%s17]
    %s20 = ssub.s32 4, 1
    %21 = vst [vmem:[#allocation0] sm:%s20] %v18
    %23 = vsyncadd [#allocation1], 0
    %s25 = sshll.u32 [#allocation0], 4
    %s26 = int_to_ptr.vmem [resolvable:$true] %s25
    %s27 = sshll.u32 %s1, 4
    %s28 = int_to_ptr.hbm [resolvable:$true] %s27
    %30 = dma.vmem_to_hbm [thread:$0]  %s26, 32, %s28, [#allocation1]
    %32 = dma.done [#allocation1], 32
    %33 = vsyncpa [#allocation1], 1

// kernel: bert_for_classification.1
$region0: #{bert_for_classification.1}
  #allocation0 [shape = 'u32[]', space=smem, size = 0x4, offset = 0x4, fixed_abs, tag = 'smem constant byte address 0x4 - core index']
  #allocation1 [shape = 'u32[72,128]{1,0:T(1,128)}', space=vmem, size = 0x9000, scoped, tag = 'internal scratch']
  %s0 = inlined_call_operand.vmem [shape: f32[16,64], index: 0, kind: input, shape index: {}]
  %s1 = inlined_call_operand.vmem [shape: f32[2,8], index: 1, kind: input, shape index: {}]
  %s2 = inlined_call_operand.vmem [shape: f32[1,64], index: 2, kind: input, shape index: {}]
  %s3 = inlined_call_operand.vmem [shape: f32[1,64], index: 3, kind: input, shape index: {}]
  %s4 = inlined_call_operand.vmem [shape: bf16[2,64,768], index: 4, kind: input, shape index: {}]
  %s5 = inlined_call_operand.vmem [shape: f32[2,1,768], index: 5, kind: input, shape index: {}]
  %s6 = inlined_call_operand.vmem [shape: bf16[2,64,64], index: 6, kind: input, shape index: {}]
  %s7 = inlined_call_operand.vmem [shape: f32[2,1,64], index: 7, kind: input, shape index: {}]
  %s8 = inlined_call_operand.vmem [shape: f32[2,1,64], index: 8, kind: input, shape index: {}]
  %s9 = inlined_call_operand.vmem [shape: f32[2,1,64], index: 9, kind: input, shape index: {}]
  %s10 = inlined_call_operand.vmem [shape: bf16[2,64,256], index: 10, kind: input, shape index: {}]
  %s11 = inlined_call_operand.vmem [shape: f32[2,1,256], index: 11, kind: input, shape index: {}]
  %s12 = inlined_call_operand.vmem [shape: bf16[2,256,64], index: 12, kind: input, shape index: {}]
  %s13 = inlined_call_operand.vmem [shape: f32[2,1,64], index: 13, kind: input, shape index: {}]
  %s14 = inlined_call_operand.vmem [shape: f32[2,1,64], index: 14, kind: input, shape index: {}]
  %s15 = inlined_call_operand.vmem [shape: f32[2,1,64], index: 15, kind: input, shape index: {}]
  %s16 = inlined_call_operand.vmem [shape: bf16[64,64], index: 16, kind: input, shape index: {}]
  %s17 = inlined_call_operand.vmem [shape: f32[1,64], index: 17, kind: input, shape index: {}]
  %s18 = inlined_call_operand.vmem [shape: bf16[64,128], index: 18, kind: input, shape index: {}]
  %s19 = inlined_call_operand.vmem [shape: f32[1,128], index: 19, kind: input, shape index: {}]
  %s20 = inlined_call_operand.vmem [shape: bf16[64,128], index: 20, kind: input, shape index: {}]
  %s21 = inlined_call_operand.vmem [shape: f32[1,128], index: 21, kind: input, shape index: {}]
  %s22 = inlined_call_operand.hbm [shape: f32[2,128], index: 22, kind: output, shape index: {0}]
  %s23 = inlined_call_operand.vmem [shape: f32[16,128], index: 23, kind: output, shape index: {1}]
  %24 = xla_tuple %s22, %s23
  %s25 = sld [smem:[#allocation0]]
  $region106: #{bert_for_classification.1} parent=0
    _
  %s27 = ssub.s32 1, %s25
  %s28 = scalar_select 0, %s27, %s25
  $region1: #{bert_for_classification.1} parent=0
    #allocation2 [shape = 'u8[1024]{0}', space=vmem, size = 0x400, scoped, tag = 'output window, operand 0, single buffered']
    #allocation3 [shape = 's32[1]{0}', space=sflag, size = 0x4, scoped, tag = 'scoped memory for bert_for_classification.1']
    %29 = vsyncpa [#allocation3], 0
    // Predicated region
    $region2: #{bert_for_classification.1} parent=1 // pred_check
      _
    $region3: #{bert_for_classification.1} parent=1 // pred_check_branch
      %31 = sbr.rel (0) target = $region5
    $region4: #{bert_for_classification.1} parent=1 // pred_region
      _
    $region5: #{bert_for_classification.1} parent=1 // pred_fallthru
      _
    // Predicated region
    $region6: #{bert_for_classification.1} parent=1 // pred_check
      _
    $region7: #{bert_for_classification.1} parent=1 // pred_check_branch
      %33 = sbr.rel (0) target = $region9
    $region8: #{bert_for_classification.1} parent=1 // pred_region
      _
    $region9: #{bert_for_classification.1} parent=1 // pred_fallthru
      _
    // Predicated region
    $region10: #{bert_for_classification.1} parent=1 // pred_check
      _
    $region11: #{bert_for_classification.1} parent=1 // pred_check_branch
      %35 = sbr.rel (0) target = $region13
    $region12: #{bert_for_classification.1} parent=1 // pred_region
      _
    $region13: #{bert_for_classification.1} parent=1 // pred_fallthru
      _
    // Predicated region
    $region14: #{bert_for_classification.1} parent=1 // pred_check
      _
    $region15: #{bert_for_classification.1} parent=1 // pred_check_branch
      %37 = sbr.rel (0) target = $region17
    $region16: #{bert_for_classification.1} parent=1 // pred_region
      _
    $region17: #{bert_for_classification.1} parent=1 // pred_fallthru
      _
    // Predicated region
    $region18: #{bert_for_classification.1} parent=1 // pred_check
      _
    $region19: #{bert_for_classification.1} parent=1 // pred_check_branch
      %39 = sbr.rel (0) target = $region21
    $region20: #{bert_for_classification.1} parent=1 // pred_region
      _
    $region21: #{bert_for_classification.1} parent=1 // pred_fallthru
      _
    // Predicated region
    $region22: #{bert_for_classification.1} parent=1 // pred_check
      _
    $region23: #{bert_for_classification.1} parent=1 // pred_check_branch
      %41 = sbr.rel (0) target = $region25
    $region24: #{bert_for_classification.1} parent=1 // pred_region
      _
    $region25: #{bert_for_classification.1} parent=1 // pred_fallthru
      _
    // Predicated region
    $region26: #{bert_for_classification.1} parent=1 // pred_check
      _
    $region27: #{bert_for_classification.1} parent=1 // pred_check_branch
      %43 = sbr.rel (0) target = $region29
    $region28: #{bert_for_classification.1} parent=1 // pred_region
      _
    $region29: #{bert_for_classification.1} parent=1 // pred_fallthru
      _
    // Predicated region
    $region30: #{bert_for_classification.1} parent=1 // pred_check
      _
    $region31: #{bert_for_classification.1} parent=1 // pred_check_branch
      %45 = sbr.rel (0) target = $region33
    $region32: #{bert_for_classification.1} parent=1 // pred_region
      _
    $region33: #{bert_for_classification.1} parent=1 // pred_fallthru
      _
    // Predicated region
    $region34: #{bert_for_classification.1} parent=1 // pred_check
      _
    $region35: #{bert_for_classification.1} parent=1 // pred_check_branch
      %47 = sbr.rel (0) target = $region37
    $region36: #{bert_for_classification.1} parent=1 // pred_region
      _
    $region37: #{bert_for_classification.1} parent=1 // pred_fallthru
      _
    // Predicated region
    $region38: #{bert_for_classification.1} parent=1 // pred_check
      _
    $region39: #{bert_for_classification.1} parent=1 // pred_check_branch
      %49 = sbr.rel (0) target = $region41
    $region40: #{bert_for_classification.1} parent=1 // pred_region
      _
    $region41: #{bert_for_classification.1} parent=1 // pred_fallthru
      _
    // Predicated region
    $region42: #{bert_for_classification.1} parent=1 // pred_check
      _
    $region43: #{bert_for_classification.1} parent=1 // pred_check_branch
      %51 = sbr.rel (0) target = $region45
    $region44: #{bert_for_classification.1} parent=1 // pred_region
      _
    $region45: #{bert_for_classification.1} parent=1 // pred_fallthru
      _
    // Predicated region
    $region46: #{bert_for_classification.1} parent=1 // pred_check
      _
    $region47: #{bert_for_classification.1} parent=1 // pred_check_branch
      %53 = sbr.rel (0) target = $region49
    $region48: #{bert_for_classification.1} parent=1 // pred_region
      _
    $region49: #{bert_for_classification.1} parent=1 // pred_fallthru
      _
    // Predicated region
    $region50: #{bert_for_classification.1} parent=1 // pred_check
      _
    $region51: #{bert_for_classification.1} parent=1 // pred_check_branch
      %55 = sbr.rel (0) target = $region53
    $region52: #{bert_for_classification.1} parent=1 // pred_region
      _
    $region53: #{bert_for_classification.1} parent=1 // pred_fallthru
      _
    // Predicated region
    $region54: #{bert_for_classification.1} parent=1 // pred_check
      _
    $region55: #{bert_for_classification.1} parent=1 // pred_check_branch
      %57 = sbr.rel (0) target = $region57
    $region56: #{bert_for_classification.1} parent=1 // pred_region
      _
    $region57: #{bert_for_classification.1} parent=1 // pred_fallthru
      _
    // Predicated region
    $region58: #{bert_for_classification.1} parent=1 // pred_check
      _
    $region59: #{bert_for_classification.1} parent=1 // pred_check_branch
      %59 = sbr.rel (0) target = $region61
    $region60: #{bert_for_classification.1} parent=1 // pred_region
      _
    $region61: #{bert_for_classification.1} parent=1 // pred_fallthru
      _
    // Predicated region
    $region62: #{bert_for_classification.1} parent=1 // pred_check
      _
    $region63: #{bert_for_classification.1} parent=1 // pred_check_branch
      %61 = sbr.rel (0) target = $region65
    $region64: #{bert_for_classification.1} parent=1 // pred_region
      _
    $region65: #{bert_for_classification.1} parent=1 // pred_fallthru
      _
    // Predicated region
    $region66: #{bert_for_classification.1} parent=1 // pred_check
      _
    $region67: #{bert_for_classification.1} parent=1 // pred_check_branch
      %63 = sbr.rel (0) target = $region69
    $region68: #{bert_for_classification.1} parent=1 // pred_region
      _
    $region69: #{bert_for_classification.1} parent=1 // pred_fallthru
      _
    // Predicated region
    $region70: #{bert_for_classification.1} parent=1 // pred_check
      _
    $region71: #{bert_for_classification.1} parent=1 // pred_check_branch
      %65 = sbr.rel (0) target = $region73
    $region72: #{bert_for_classification.1} parent=1 // pred_region
      _
    $region73: #{bert_for_classification.1} parent=1 // pred_fallthru
      _
    // Predicated region
    $region74: #{bert_for_classification.1} parent=1 // pred_check
      _
    $region75: #{bert_for_classification.1} parent=1 // pred_check_branch
      %67 = sbr.rel (0) target = $region77
    $region76: #{bert_for_classification.1} parent=1 // pred_region
      _
    $region77: #{bert_for_classification.1} parent=1 // pred_fallthru
      _
    // Predicated region
    $region78: #{bert_for_classification.1} parent=1 // pred_check
      _
    $region79: #{bert_for_classification.1} parent=1 // pred_check_branch
      %69 = sbr.rel (0) target = $region81
    $region80: #{bert_for_classification.1} parent=1 // pred_region
      _
    $region81: #{bert_for_classification.1} parent=1 // pred_fallthru
      _
    // Predicated region
    $region82: #{bert_for_classification.1} parent=1 // pred_check
      _
    $region83: #{bert_for_classification.1} parent=1 // pred_check_branch
      %71 = sbr.rel (0) target = $region85
    $region84: #{bert_for_classification.1} parent=1 // pred_region
      _
    $region85: #{bert_for_classification.1} parent=1 // pred_fallthru
      _
    // Predicated region
    $region86: #{bert_for_classification.1} parent=1 // pred_check
      _
    $region87: #{bert_for_classification.1} parent=1 // pred_check_branch
      %73 = sbr.rel (0) target = $region89
    $region88: #{bert_for_classification.1} parent=1 // pred_region
      _
    $region89: #{bert_for_classification.1} parent=1 // pred_fallthru
      _
    %v75 = vld [vmem:[%s1] sm:$0x3]
    %v76 = vld [vmem:[%s0] sm:$0xff]
    %v77 = vld [vmem:[%s0 + $0x8] sm:$0xff]
    %v78 = vld [vmem:[%s2] sm:$0x1]
    %v79 = vld [vmem:[%s3] sm:$0x1]
    %vm80 = vcmask 523264
    %v81 = vsel %vm80, %v76, 0.0
    %82 = vadd.xlane.f32.xlu0 %v81
    %v83 = vpop.xlane.xlu0 %82
    %v84 = vsel %vm80, %v77, 0.0
    %85 = vadd.xlane.f32.xlu0 %v84
    %v86 = vpop.xlane.xlu0 %85
    %v87 = vrcp.pop 64.0
    %v88 = vmul.f32 64.0, %v87
    %v89 = vsub.f32 1.0, %v88
    %v90 = vmul.f32 %v87, %v89
    %v91 = vadd.f32 %v87, %v90
    %vm92 = vweird.f32 %v87
    %v93 = vsel %vm92, %v87, %v91
    %v94 = vmul.f32 %v83, %v93
    %v95 = vmul.f32 %v86, %v93
    %v96 = vsub.f32 %v76, %v94
    %v97 = vsub.f32 %v77, %v95
    %v98 = vmul.f32 %v96, %v96
    %v99 = vmul.f32 %v97, %v97
    %v100 = vsel %vm80, %v98, 0.0
    %101 = vadd.xlane.f32.xlu0 %v100
    %v102 = vpop.xlane.xlu0 %101
    %v103 = vsel %vm80, %v99, 0.0
    %104 = vadd.xlane.f32.xlu0 %v103
    %v105 = vpop.xlane.xlu0 %104
    %v106 = vmul.f32 %v102, %v93
    %v107 = vmul.f32 %v105, %v93
    %v108 = vadd.f32 %v106, 1e-12
    %v109 = vadd.f32 %v107, 1e-12
    %v110 = vrsqrt.pop %v108
    %v111 = vmul.f32 %v110, %v108
    %v112 = vmul.f32 %v111, %v110
    %v113 = vmul.f32 0.5, %v112
    %v114 = vsub.f32 1.5, %v113
    %v115 = vmul.f32 %v110, %v114
    %vm116 = vweird.f32 %v108
    %vm117 = vweird.f32 %v110
    %vm118 = vmor %vm116, %vm117
    %v119 = vsel %vm118, %v110, %v115
    %v120 = vrsqrt.pop %v109
    %v121 = vmul.f32 %v120, %v109
    %v122 = vmul.f32 %v121, %v120
    %v123 = vmul.f32 0.5, %v122
    %v124 = vsub.f32 1.5, %v123
    %v125 = vmul.f32 %v120, %v124
    %vm126 = vweird.f32 %v109
    %vm127 = vweird.f32 %v120
    %vm128 = vmor %vm126, %vm127
    %v129 = vsel %vm128, %v120, %v125
    %v130 = vmul.f32 %v96, %v119
    %v131 = vmul.f32 %v97, %v129
    %v133 = vperm.slane %v78, 0
    %v135 = vmul.f32 %v130, %v133
    %v136 = vmul.f32 %v131, %v133
    %v138 = vperm.slane %v79, 0
    %v140 = vadd.f32 %v135, %v138
    %v141 = vadd.f32 %v136, %v138
    %v142 = vpack.c.bf16 %v141, %v140
    %v143 = vld [vmem:[%s4] sm:$0xff]
    %v144 = vld [vmem:[%s4 + $0x8] sm:$0xff]
    %v145 = vld [vmem:[%s4 + $0x10] sm:$0xff]
    %v146 = vld [vmem:[%s4 + $0x18] sm:$0xff]
    %v147 = vld [vmem:[%s4 + $0x20] sm:$0xff]
    %v148 = vld [vmem:[%s4 + $0x28] sm:$0xff]
    %v149 = vld [vmem:[%s4 + $0x30] sm:$0xff]
    %v150 = vld [vmem:[%s4 + $0x38] sm:$0xff]
    %v151 = vld [vmem:[%s4 + $0x40] sm:$0xff]
    %v152 = vld [vmem:[%s4 + $0x48] sm:$0xff]
    %v153 = vld [vmem:[%s4 + $0x50] sm:$0xff]
    %v154 = vld [vmem:[%s4 + $0x58] sm:$0xff]
    %v155 = vld [vmem:[%s4 + $0x60] sm:$0xff]
    %v156 = vld [vmem:[%s4 + $0x68] sm:$0xff]
    %v157 = vld [vmem:[%s4 + $0x70] sm:$0xff]
    %v158 = vld [vmem:[%s4 + $0x78] sm:$0xff]
    %v159 = vld [vmem:[%s4 + $0x80] sm:$0xff]
    %v160 = vld [vmem:[%s4 + $0x88] sm:$0xff]
    %v161 = vld [vmem:[%s4 + $0x90] sm:$0xff]
    %v162 = vld [vmem:[%s4 + $0x98] sm:$0xff]
    %v163 = vld [vmem:[%s4 + $0xa0] sm:$0xff]
    %v164 = vld [vmem:[%s4 + $0xa8] sm:$0xff]
    %v165 = vld [vmem:[%s4 + $0xb0] sm:$0xff]
    %v166 = vld [vmem:[%s4 + $0xb8] sm:$0xff]
    %v167 = vld [vmem:[%s5] sm:$0x3f]
    %v169 = vperm.slane %v167, 0
    %v170 = vperm.slane %v167, 1
    %v171 = vperm.slane %v167, 2
    %v172 = vperm.slane %v167, 3
    %v173 = vperm.slane %v167, 4
    %v174 = vperm.slane %v167, 5
    %v205 = vunpack.c.l.b16 %v143
    %v206 = vunpack.c.h.b16 %v143
    %v207 = vunpack.c.l.b16 %v144
    %v208 = vunpack.c.h.b16 %v144
    %v209 = vunpack.c.l.b16 %v145
    %v210 = vunpack.c.h.b16 %v145
    %v211 = vunpack.c.l.b16 %v146
    %v212 = vunpack.c.h.b16 %v146
    %v213 = vunpack.c.l.b16 %v147
    %v214 = vunpack.c.h.b16 %v147
    %v215 = vunpack.c.l.b16 %v148
    %v216 = vunpack.c.h.b16 %v148
    %v217 = vunpack.c.l.b16 %v149
    %v218 = vunpack.c.h.b16 %v149
    %v219 = vunpack.c.l.b16 %v150
    %v220 = vunpack.c.h.b16 %v150
    %v221 = vunpack.c.l.b16 %v151
    %v222 = vunpack.c.h.b16 %v151
    %v223 = vunpack.c.l.b16 %v152
    %v224 = vunpack.c.h.b16 %v152
    %v225 = vunpack.c.l.b16 %v153
    %v226 = vunpack.c.h.b16 %v153
    %v227 = vunpack.c.l.b16 %v154
    %v228 = vunpack.c.h.b16 %v154
    %v229 = vunpack.c.l.b16 %v155
    %v230 = vunpack.c.h.b16 %v155
    %v231 = vunpack.c.l.b16 %v156
    %v232 = vunpack.c.h.b16 %v156
    %v233 = vunpack.c.l.b16 %v157
    %v234 = vunpack.c.h.b16 %v157
    %v235 = vunpack.c.l.b16 %v158
    %v236 = vunpack.c.h.b16 %v158
    %v237 = vunpack.c.l.b16 %v159
    %v238 = vunpack.c.h.b16 %v159
    %v239 = vunpack.c.l.b16 %v160
    %v240 = vunpack.c.h.b16 %v160
    %v241 = vunpack.c.l.b16 %v161
    %v242 = vunpack.c.h.b16 %v161
    %v243 = vunpack.c.l.b16 %v162
    %v244 = vunpack.c.h.b16 %v162
    %v245 = vunpack.c.l.b16 %v163
    %v246 = vunpack.c.h.b16 %v163
    %v247 = vunpack.c.l.b16 %v164
    %v248 = vunpack.c.h.b16 %v164
    %v249 = vunpack.c.l.b16 %v165
    %v250 = vunpack.c.h.b16 %v165
    %v251 = vunpack.c.l.b16 %v166
    %v252 = vunpack.c.h.b16 %v166
    %v253 = vpack.c.b16 %v211, %v205
    %v254 = vpack.c.b16 %v212, %v206
    %v255 = vpack.c.b16 %v213, %v207
    %v256 = vpack.c.b16 %v214, %v208
    %v257 = vpack.c.b16 %v215, %v209
    %v258 = vpack.c.b16 %v216, %v210
    %v259 = vpack.c.b16 %v223, %v217
    %v260 = vpack.c.b16 %v224, %v218
    %v261 = vpack.c.b16 %v225, %v219
    %v262 = vpack.c.b16 %v226, %v220
    %v263 = vpack.c.b16 %v227, %v221
    %v264 = vpack.c.b16 %v228, %v222
    %v265 = vpack.c.b16 %v235, %v229
    %v266 = vpack.c.b16 %v236, %v230
    %v267 = vpack.c.b16 %v237, %v231
    %v268 = vpack.c.b16 %v238, %v232
    %v269 = vpack.c.b16 %v239, %v233
    %v270 = vpack.c.b16 %v240, %v234
    %v271 = vpack.c.b16 %v247, %v241
    %v272 = vpack.c.b16 %v248, %v242
    %v273 = vpack.c.b16 %v249, %v243
    %v274 = vpack.c.b16 %v250, %v244
    %v275 = vpack.c.b16 %v251, %v245
    %v276 = vpack.c.b16 %v252, %v246
    %v302 = vsel %vm80, %v142, 0
    %304 = vmatpush.bf16.msra.mxu0 0
    %305 = vmatpush.bf16.msra.mxu0 0
    %306 = vmatpush.bf16.msra.mxu0 0
    %307 = vmatpush.bf16.msra.mxu0 0
    %308 = vmatpush.bf16.msra.mxu0 %v271
    %309 = vmatpush.bf16.msra.mxu0 %v265
    %310 = vmatpush.bf16.msra.mxu0 %v259
    %311 = vmatpush.bf16.msra.mxu0 %v253
    %312 = vmatmul.bf16.gmra.mxu0 %v302
    %v313 = vpop.f32.mrf.mxu0
    %v314 = vadd.f32 %v169, %v313
    %v315 = vpop.f32.mrf.mxu0
    %v316 = vadd.f32 %v169, %v315
    %317 = vdwg.mxu0
    %318 = vmatpush.bf16.msra.mxu0 0
    %319 = vmatpush.bf16.msra.mxu0 0
    %320 = vmatpush.bf16.msra.mxu0 0
    %321 = vmatpush.bf16.msra.mxu0 0
    %322 = vmatpush.bf16.msra.mxu0 %v272
    %323 = vmatpush.bf16.msra.mxu0 %v266
    %324 = vmatpush.bf16.msra.mxu0 %v260
    %325 = vmatpush.bf16.msra.mxu0 %v254
    %326 = vmatmul.bf16.gmra.mxu0 %v302
    %v327 = vpop.f32.mrf.mxu0
    %v328 = vadd.f32 %v170, %v327
    %v329 = vpop.f32.mrf.mxu0
    %v330 = vadd.f32 %v170, %v329
    %331 = vdwg.mxu0
    %332 = vmatpush.bf16.msra.mxu0 0
    %333 = vmatpush.bf16.msra.mxu0 0
    %334 = vmatpush.bf16.msra.mxu0 0
    %335 = vmatpush.bf16.msra.mxu0 0
    %336 = vmatpush.bf16.msra.mxu0 %v273
    %337 = vmatpush.bf16.msra.mxu0 %v267
    %338 = vmatpush.bf16.msra.mxu0 %v261
    %339 = vmatpush.bf16.msra.mxu0 %v255
    %340 = vmatmul.bf16.gmra.mxu0 %v302
    %v341 = vpop.f32.mrf.mxu0
    %v342 = vadd.f32 %v171, %v341
    %v343 = vpop.f32.mrf.mxu0
    %v344 = vadd.f32 %v171, %v343
    %345 = vdwg.mxu0
    %346 = vmatpush.bf16.msra.mxu0 0
    %347 = vmatpush.bf16.msra.mxu0 0
    %348 = vmatpush.bf16.msra.mxu0 0
    %349 = vmatpush.bf16.msra.mxu0 0
    %350 = vmatpush.bf16.msra.mxu0 %v274
    %351 = vmatpush.bf16.msra.mxu0 %v268
    %352 = vmatpush.bf16.msra.mxu0 %v262
    %353 = vmatpush.bf16.msra.mxu0 %v256
    %354 = vmatmul.bf16.gmra.mxu0 %v302
    %v355 = vpop.f32.mrf.mxu0
    %v356 = vadd.f32 %v172, %v355
    %v357 = vpop.f32.mrf.mxu0
    %v358 = vadd.f32 %v172, %v357
    %359 = vdwg.mxu0
    %360 = vmatpush.bf16.msra.mxu0 0
    %361 = vmatpush.bf16.msra.mxu0 0
    %362 = vmatpush.bf16.msra.mxu0 0
    %363 = vmatpush.bf16.msra.mxu0 0
    %364 = vmatpush.bf16.msra.mxu0 %v275
    %365 = vmatpush.bf16.msra.mxu0 %v269
    %366 = vmatpush.bf16.msra.mxu0 %v263
    %367 = vmatpush.bf16.msra.mxu0 %v257
    %368 = vmatmul.bf16.gmra.mxu0 %v302
    %v369 = vpop.f32.mrf.mxu0
    %v370 = vadd.f32 %v173, %v369
    %v371 = vpop.f32.mrf.mxu0
    %v372 = vadd.f32 %v173, %v371
    %373 = vdwg.mxu0
    %374 = vmatpush.bf16.msra.mxu0 0
    %375 = vmatpush.bf16.msra.mxu0 0
    %376 = vmatpush.bf16.msra.mxu0 0
    %377 = vmatpush.bf16.msra.mxu0 0
    %378 = vmatpush.bf16.msra.mxu0 %v276
    %379 = vmatpush.bf16.msra.mxu0 %v270
    %380 = vmatpush.bf16.msra.mxu0 %v264
    %381 = vmatpush.bf16.msra.mxu0 %v258
    %382 = vmatmul.bf16.gmra.mxu0 %v302
    %v383 = vpop.f32.mrf.mxu0
    %v384 = vadd.f32 %v174, %v383
    %v385 = vpop.f32.mrf.mxu0
    %v386 = vadd.f32 %v174, %v385
    %387 = vdwg.mxu0
    %v388 = vpack.c.bf16 %v328, %v314
    %v389 = vpack.c.bf16 %v356, %v342
    %v390 = vpack.c.bf16 %v384, %v370
    %v391 = vpack.c.bf16 %v330, %v316
    %v392 = vpack.c.bf16 %v358, %v344
    %v393 = vpack.c.bf16 %v386, %v372
    %v395 = vunpack.c.h.b16 %v388
    %v396 = vpack.c.b16 %v395, %v395
    %vm397 = vcmask 261120
    %v399 = vsel %vm397, %v388, 0
    %v402 = vsel %vm397, %v396, 0
    %404 = vmatpush.bf16.xpose.msra.mxu0 0
    %405 = vmatpush.bf16.xpose.msra.mxu0 0
    %406 = vmatpush.bf16.xpose.msra.mxu0 0
    %407 = vmatpush.bf16.xpose.msra.mxu0 0
    %408 = vmatpush.bf16.xpose.msra.mxu0 0
    %409 = vmatpush.bf16.xpose.msra.mxu0 0
    %410 = vmatpush.bf16.xpose.msra.mxu0 0
    %411 = vmatpush.bf16.xpose.msra.mxu0 %v402
    %412 = vmatmul.bf16.gmra.mxu0 %v399
    %v413 = vpop.f32.mrf.mxu0
    %v414 = vadd.f32 0.0, %v413
    %v415 = vpop.f32.mrf.mxu0
    %416 = vdwg.mxu0
    %v417 = vmul.f32 %v414, 0.17677669
    %v418 = vperm.slane %v75, 0
    %v419 = vadd.f32 %v417, %v418
    %vm420 = vcmask 64512
    %v421 = vsel %vm420, %v419, -inf
    %422 = vmax.xlane.f32.xlu0 %v421
    %v423 = vpop.xlane.xlu0 %422
    %v424 = vsub.f32 %v419, %v423
    %v425 = vmul.f32 %v424, 1.442695
    %v426 = vpow.pop %v425
    %v427 = vsel %vm420, %v426, 0.0
    %428 = vadd.xlane.f32.xlu0 %v427
    %v429 = vpop.xlane.xlu0 %428
    %v430 = vrcp.pop %v429
    %v431 = vmul.f32 %v429, %v430
    %v432 = vsub.f32 1.0, %v431
    %v433 = vmul.f32 %v430, %v432
    %v434 = vadd.f32 %v430, %v433
    %vm435 = vweird.f32 %v429
    %vm436 = vweird.f32 %v430
    %vm437 = vmor %vm435, %vm436
    %v438 = vsel %vm437, %v430, %v434
    %v439 = vand.u32 2147483647, %v429
    %vm440 = vcmp.eq.f32.partialorder %v439, 8.507059e+37
    %v441 = vand.u32 %v429, 2147483648
    %v442 = vor.u32 1.1754944e-38, %v441
    %v443 = vsel %vm440, %v442, %v438
    %v444 = vmul.f32 %v426, %v443
    %v445 = vpack.c.bf16 %v444, %v444
    %v447 = vsel %vm420, %v445, 0
    %vm449 = vcmask 1043456
    %v451 = vsel %vm449, %v389, 0
    %453 = vmatpush.bf16.msra.mxu0 0
    %454 = vmatpush.bf16.msra.mxu0 0
    %455 = vmatpush.bf16.msra.mxu0 0
    %456 = vmatpush.bf16.msra.mxu0 0
    %457 = vmatpush.bf16.msra.mxu0 0
    %458 = vmatpush.bf16.msra.mxu0 0
    %459 = vmatpush.bf16.msra.mxu0 0
    %460 = vmatpush.bf16.msra.mxu0 %v451
    %461 = vmatmul.bf16.gmra.mxu0 %v447
    %v462 = vpop.f32.mrf.mxu0
    %v463 = vadd.f32 0.0, %v462
    %v464 = vpop.f32.mrf.mxu0
    %465 = vdwg.mxu0
    %v467 = vunpack.c.h.b16 %v389
    %v468 = vpack.c.b16 %v467, %v467
    %v470 = vsel %vm397, %v468, 0
    %v473 = vsel %vm397, %v390, 0
    %475 = vmatpush.bf16.xpose.msra.mxu0 0
    %476 = vmatpush.bf16.xpose.msra.mxu0 0
    %477 = vmatpush.bf16.xpose.msra.mxu0 0
    %478 = vmatpush.bf16.xpose.msra.mxu0 0
    %479 = vmatpush.bf16.xpose.msra.mxu0 0
    %480 = vmatpush.bf16.xpose.msra.mxu0 0
    %481 = vmatpush.bf16.xpose.msra.mxu0 0
    %482 = vmatpush.bf16.xpose.msra.mxu0 %v473
    %483 = vmatmul.bf16.gmra.mxu0 %v470
    %v484 = vpop.f32.mrf.mxu0
    %v485 = vadd.f32 0.0, %v484
    %v486 = vpop.f32.mrf.mxu0
    %487 = vdwg.mxu0
    %v488 = vmul.f32 %v485, 0.17677669
    %v489 = vadd.f32 %v488, %v418
    %v490 = vsel %vm420, %v489, -inf
    %491 = vmax.xlane.f32.xlu0 %v490
    %v492 = vpop.xlane.xlu0 %491
    %v493 = vsub.f32 %v489, %v492
    %v494 = vmul.f32 %v493, 1.442695
    %v495 = vpow.pop %v494
    %v496 = vsel %vm420, %v495, 0.0
    %497 = vadd.xlane.f32.xlu0 %v496
    %v498 = vpop.xlane.xlu0 %497
    %v499 = vrcp.pop %v498
    %v500 = vmul.f32 %v498, %v499
    %v501 = vsub.f32 1.0, %v500
    %v502 = vmul.f32 %v499, %v501
    %v503 = vadd.f32 %v499, %v502
    %vm504 = vweird.f32 %v498
    %vm505 = vweird.f32 %v499
    %vm506 = vmor %vm504, %vm505
    %v507 = vsel %vm506, %v499, %v503
    %v508 = vand.u32 2147483647, %v498
    %vm509 = vcmp.eq.f32.partialorder %v508, 8.507059e+37
    %v510 = vand.u32 %v498, 2147483648
    %v511 = vor.u32 1.1754944e-38, %v510
    %v512 = vsel %vm509, %v511, %v507
    %v513 = vmul.f32 %v495, %v512
    %v514 = vpack.c.bf16 %v513, %v513
    %v516 = vunpack.c.h.b16 %v390
    %v517 = vpack.c.b16 %v516, %v516
    %v519 = vsel %vm420, %v514, 0
    %v522 = vsel %vm449, %v517, 0
    %524 = vmatpush.bf16.msra.mxu0 0
    %525 = vmatpush.bf16.msra.mxu0 0
    %526 = vmatpush.bf16.msra.mxu0 0
    %527 = vmatpush.bf16.msra.mxu0 0
    %528 = vmatpush.bf16.msra.mxu0 0
    %529 = vmatpush.bf16.msra.mxu0 0
    %530 = vmatpush.bf16.msra.mxu0 0
    %531 = vmatpush.bf16.msra.mxu0 %v522
    %532 = vmatmul.bf16.gmra.mxu0 %v519
    %v533 = vpop.f32.mrf.mxu0
    %v534 = vadd.f32 0.0, %v533
    %v535 = vpop.f32.mrf.mxu0
    %536 = vdwg.mxu0
    %538 = vrot.lane.b32.xlu0 %v534, 32
    %v539 = vpop.permute.xlu0 %538
    %v541 = vsel %vm397, %v463, %v539
    %v543 = vunpack.c.h.b16 %v391
    %v544 = vpack.c.b16 %v543, %v543
    %v546 = vsel %vm397, %v391, 0
    %v549 = vsel %vm397, %v544, 0
    %551 = vmatpush.bf16.xpose.msra.mxu0 0
    %552 = vmatpush.bf16.xpose.msra.mxu0 0
    %553 = vmatpush.bf16.xpose.msra.mxu0 0
    %554 = vmatpush.bf16.xpose.msra.mxu0 0
    %555 = vmatpush.bf16.xpose.msra.mxu0 0
    %556 = vmatpush.bf16.xpose.msra.mxu0 0
    %557 = vmatpush.bf16.xpose.msra.mxu0 0
    %558 = vmatpush.bf16.xpose.msra.mxu0 %v549
    %559 = vmatmul.bf16.gmra.mxu0 %v546
    %v560 = vpop.f32.mrf.mxu0
    %v561 = vadd.f32 0.0, %v560
    %v562 = vpop.f32.mrf.mxu0
    %563 = vdwg.mxu0
    %v564 = vmul.f32 %v561, 0.17677669
    %v565 = vperm.slane %v75, 1
    %v566 = vadd.f32 %v564, %v565
    %v567 = vsel %vm420, %v566, -inf
    %568 = vmax.xlane.f32.xlu0 %v567
    %v569 = vpop.xlane.xlu0 %568
    %v570 = vsub.f32 %v566, %v569
    %v571 = vmul.f32 %v570, 1.442695
    %v572 = vpow.pop %v571
    %v573 = vsel %vm420, %v572, 0.0
    %574 = vadd.xlane.f32.xlu0 %v573
    %v575 = vpop.xlane.xlu0 %574
    %v576 = vrcp.pop %v575
    %v577 = vmul.f32 %v575, %v576
    %v578 = vsub.f32 1.0, %v577
    %v579 = vmul.f32 %v576, %v578
    %v580 = vadd.f32 %v576, %v579
    %vm581 = vweird.f32 %v575
    %vm582 = vweird.f32 %v576
    %vm583 = vmor %vm581, %vm582
    %v584 = vsel %vm583, %v576, %v580
    %v585 = vand.u32 2147483647, %v575
    %vm586 = vcmp.eq.f32.partialorder %v585, 8.507059e+37
    %v587 = vand.u32 %v575, 2147483648
    %v588 = vor.u32 1.1754944e-38, %v587
    %v589 = vsel %vm586, %v588, %v584
    %v590 = vmul.f32 %v572, %v589
    %v591 = vpack.c.bf16 %v590, %v590
    %v593 = vsel %vm420, %v591, 0
    %v596 = vsel %vm449, %v392, 0
    %598 = vmatpush.bf16.msra.mxu0 0
    %599 = vmatpush.bf16.msra.mxu0 0
    %600 = vmatpush.bf16.msra.mxu0 0
    %601 = vmatpush.bf16.msra.mxu0 0
    %602 = vmatpush.bf16.msra.mxu0 0
    %603 = vmatpush.bf16.msra.mxu0 0
    %604 = vmatpush.bf16.msra.mxu0 0
    %605 = vmatpush.bf16.msra.mxu0 %v596
    %606 = vmatmul.bf16.gmra.mxu0 %v593
    %v607 = vpop.f32.mrf.mxu0
    %v608 = vadd.f32 0.0, %v607
    %v609 = vpop.f32.mrf.mxu0
    %610 = vdwg.mxu0
    %v612 = vunpack.c.h.b16 %v392
    %v613 = vpack.c.b16 %v612, %v612
    %v615 = vsel %vm397, %v613, 0
    %v618 = vsel %vm397, %v393, 0
    %620 = vmatpush.bf16.xpose.msra.mxu0 0
    %621 = vmatpush.bf16.xpose.msra.mxu0 0
    %622 = vmatpush.bf16.xpose.msra.mxu0 0
    %623 = vmatpush.bf16.xpose.msra.mxu0 0
    %624 = vmatpush.bf16.xpose.msra.mxu0 0
    %625 = vmatpush.bf16.xpose.msra.mxu0 0
    %626 = vmatpush.bf16.xpose.msra.mxu0 0
    %627 = vmatpush.bf16.xpose.msra.mxu0 %v618
    %628 = vmatmul.bf16.gmra.mxu0 %v615
    %v629 = vpop.f32.mrf.mxu0
    %v630 = vadd.f32 0.0, %v629
    %v631 = vpop.f32.mrf.mxu0
    %632 = vdwg.mxu0
    %v633 = vmul.f32 %v630, 0.17677669
    %v634 = vadd.f32 %v633, %v565
    %v635 = vsel %vm420, %v634, -inf
    %636 = vmax.xlane.f32.xlu0 %v635
    %v637 = vpop.xlane.xlu0 %636
    %v638 = vsub.f32 %v634, %v637
    %v639 = vmul.f32 %v638, 1.442695
    %v640 = vpow.pop %v639
    %v641 = vsel %vm420, %v640, 0.0
    %642 = vadd.xlane.f32.xlu0 %v641
    %v643 = vpop.xlane.xlu0 %642
    %v644 = vrcp.pop %v643
    %v645 = vmul.f32 %v643, %v644
    %v646 = vsub.f32 1.0, %v645
    %v647 = vmul.f32 %v644, %v646
    %v648 = vadd.f32 %v644, %v647
    %vm649 = vweird.f32 %v643
    %vm650 = vweird.f32 %v644
    %vm651 = vmor %vm649, %vm650
    %v652 = vsel %vm651, %v644, %v648
    %v653 = vand.u32 2147483647, %v643
    %vm654 = vcmp.eq.f32.partialorder %v653, 8.507059e+37
    %v655 = vand.u32 %v643, 2147483648
    %v656 = vor.u32 1.1754944e-38, %v655
    %v657 = vsel %vm654, %v656, %v652
    %v658 = vmul.f32 %v640, %v657
    %v659 = vpack.c.bf16 %v658, %v658
    %v661 = vunpack.c.h.b16 %v393
    %v662 = vpack.c.b16 %v661, %v661
    %v664 = vsel %vm420, %v659, 0
    %v667 = vsel %vm449, %v662, 0
    %669 = vmatpush.bf16.msra.mxu0 0
    %670 = vmatpush.bf16.msra.mxu0 0
    %671 = vmatpush.bf16.msra.mxu0 0
    %672 = vmatpush.bf16.msra.mxu0 0
    %673 = vmatpush.bf16.msra.mxu0 0
    %674 = vmatpush.bf16.msra.mxu0 0
    %675 = vmatpush.bf16.msra.mxu0 0
    %676 = vmatpush.bf16.msra.mxu0 %v667
    %677 = vmatmul.bf16.gmra.mxu0 %v664
    %v678 = vpop.f32.mrf.mxu0
    %v679 = vadd.f32 0.0, %v678
    %v680 = vpop.f32.mrf.mxu0
    %681 = vdwg.mxu0
    %683 = vrot.lane.b32.xlu0 %v679, 32
    %v684 = vpop.permute.xlu0 %683
    %v686 = vsel %vm397, %v608, %v684
    %v687 = vpack.c.bf16 %v686, %v541
    %v688 = vld [vmem:[%s6] sm:$0xf]
    %v689 = vld [vmem:[%s6 + $0x4] sm:$0xf]
    %v690 = vld [vmem:[%s6 + $0x8] sm:$0xf]
    %v691 = vld [vmem:[%s6 + $0xc] sm:$0xf]
    %v692 = vld [vmem:[%s6 + $0x10] sm:$0xf]
    %v693 = vld [vmem:[%s6 + $0x14] sm:$0xf]
    %v694 = vld [vmem:[%s6 + $0x18] sm:$0xf]
    %v695 = vld [vmem:[%s6 + $0x1c] sm:$0xf]
    %v696 = vld [vmem:[%s7] sm:$0x1]
    %v698 = vperm.slane %v696, 0
    %v708 = vunpack.c.l.b16 %v688
    %v709 = vunpack.c.l.b16 %v689
    %v710 = vunpack.c.l.b16 %v690
    %v711 = vunpack.c.l.b16 %v691
    %v712 = vunpack.c.l.b16 %v692
    %v713 = vunpack.c.l.b16 %v693
    %v714 = vunpack.c.l.b16 %v694
    %v715 = vunpack.c.l.b16 %v695
    %v716 = vpack.c.b16 %v709, %v708
    %v717 = vpack.c.b16 %v711, %v710
    %v718 = vpack.c.b16 %v713, %v712
    %v719 = vpack.c.b16 %v715, %v714
    %v725 = vsel %vm80, %v687, 0
    %727 = vmatpush.bf16.msra.mxu0 0
    %728 = vmatpush.bf16.msra.mxu0 0
    %729 = vmatpush.bf16.msra.mxu0 0
    %730 = vmatpush.bf16.msra.mxu0 0
    %731 = vmatpush.bf16.msra.mxu0 %v719
    %732 = vmatpush.bf16.msra.mxu0 %v718
    %733 = vmatpush.bf16.msra.mxu0 %v717
    %734 = vmatpush.bf16.msra.mxu0 %v716
    %735 = vmatmul.bf16.gmra.mxu0 %v725
    %v736 = vpop.f32.mrf.mxu0
    %v737 = vadd.f32 %v698, %v736
    %v738 = vpop.f32.mrf.mxu0
    %v739 = vadd.f32 %v698, %v738
    %740 = vdwg.mxu0
    %v741 = vadd.f32 %v737, %v140
    %v742 = vadd.f32 %v739, %v141
    %v743 = vld [vmem:[%s8] sm:$0x1]
    %v744 = vld [vmem:[%s9] sm:$0x1]
    %v745 = vsel %vm80, %v741, 0.0
    %746 = vadd.xlane.f32.xlu0 %v745
    %v747 = vpop.xlane.xlu0 %746
    %v748 = vsel %vm80, %v742, 0.0
    %749 = vadd.xlane.f32.xlu0 %v748
    %v750 = vpop.xlane.xlu0 %749
    %v751 = vmul.f32 %v747, %v93
    %v752 = vmul.f32 %v750, %v93
    %v753 = vsub.f32 %v741, %v751
    %v754 = vsub.f32 %v742, %v752
    %v755 = vmul.f32 %v753, %v753
    %v756 = vmul.f32 %v754, %v754
    %v757 = vsel %vm80, %v755, 0.0
    %758 = vadd.xlane.f32.xlu0 %v757
    %v759 = vpop.xlane.xlu0 %758
    %v760 = vsel %vm80, %v756, 0.0
    %761 = vadd.xlane.f32.xlu0 %v760
    %v762 = vpop.xlane.xlu0 %761
    %v763 = vmul.f32 %v759, %v93
    %v764 = vmul.f32 %v762, %v93
    %v765 = vadd.f32 %v763, 1e-12
    %v766 = vadd.f32 %v764, 1e-12
    %v767 = vrsqrt.pop %v765
    %v768 = vmul.f32 %v767, %v765
    %v769 = vmul.f32 %v768, %v767
    %v770 = vmul.f32 0.5, %v769
    %v771 = vsub.f32 1.5, %v770
    %v772 = vmul.f32 %v767, %v771
    %vm773 = vweird.f32 %v765
    %vm774 = vweird.f32 %v767
    %vm775 = vmor %vm773, %vm774
    %v776 = vsel %vm775, %v767, %v772
    %v777 = vrsqrt.pop %v766
    %v778 = vmul.f32 %v777, %v766
    %v779 = vmul.f32 %v778, %v777
    %v780 = vmul.f32 0.5, %v779
    %v781 = vsub.f32 1.5, %v780
    %v782 = vmul.f32 %v777, %v781
    %vm783 = vweird.f32 %v766
    %vm784 = vweird.f32 %v777
    %vm785 = vmor %vm783, %vm784
    %v786 = vsel %vm785, %v777, %v782
    %v787 = vmul.f32 %v753, %v776
    %v788 = vmul.f32 %v754, %v786
    %v790 = vperm.slane %v743, 0
    %v792 = vmul.f32 %v787, %v790
    %v793 = vmul.f32 %v788, %v790
    %v795 = vperm.slane %v744, 0
    %v797 = vadd.f32 %v792, %v795
    %v798 = vadd.f32 %v793, %v795
    %v799 = vpack.c.bf16 %v798, %v797
    %v800 = vld [vmem:[%s10] sm:$0xff]
    %v801 = vld [vmem:[%s10 + $0x8] sm:$0xff]
    %v802 = vld [vmem:[%s10 + $0x10] sm:$0xff]
    %v803 = vld [vmem:[%s10 + $0x18] sm:$0xff]
    %v804 = vld [vmem:[%s10 + $0x20] sm:$0xff]
    %v805 = vld [vmem:[%s10 + $0x28] sm:$0xff]
    %v806 = vld [vmem:[%s10 + $0x30] sm:$0xff]
    %v807 = vld [vmem:[%s10 + $0x38] sm:$0xff]
    %v808 = vld [vmem:[%s11] sm:$0x3]
    %v810 = vperm.slane %v808, 0
    %v811 = vperm.slane %v808, 1
    %v822 = vunpack.c.l.b16 %v800
    %v823 = vunpack.c.h.b16 %v800
    %v824 = vunpack.c.l.b16 %v801
    %v825 = vunpack.c.h.b16 %v801
    %v826 = vunpack.c.l.b16 %v802
    %v827 = vunpack.c.h.b16 %v802
    %v828 = vunpack.c.l.b16 %v803
    %v829 = vunpack.c.h.b16 %v803
    %v830 = vunpack.c.l.b16 %v804
    %v831 = vunpack.c.h.b16 %v804
    %v832 = vunpack.c.l.b16 %v805
    %v833 = vunpack.c.h.b16 %v805
    %v834 = vunpack.c.l.b16 %v806
    %v835 = vunpack.c.h.b16 %v806
    %v836 = vunpack.c.l.b16 %v807
    %v837 = vunpack.c.h.b16 %v807
    %v838 = vpack.c.b16 %v824, %v822
    %v839 = vpack.c.b16 %v825, %v823
    %v840 = vpack.c.b16 %v828, %v826
    %v841 = vpack.c.b16 %v829, %v827
    %v842 = vpack.c.b16 %v832, %v830
    %v843 = vpack.c.b16 %v833, %v831
    %v844 = vpack.c.b16 %v836, %v834
    %v845 = vpack.c.b16 %v837, %v835
    %v855 = vsel %vm80, %v799, 0
    %857 = vmatpush.bf16.msra.mxu0 0
    %858 = vmatpush.bf16.msra.mxu0 0
    %859 = vmatpush.bf16.msra.mxu0 0
    %860 = vmatpush.bf16.msra.mxu0 0
    %861 = vmatpush.bf16.msra.mxu0 %v844
    %862 = vmatpush.bf16.msra.mxu0 %v842
    %863 = vmatpush.bf16.msra.mxu0 %v840
    %864 = vmatpush.bf16.msra.mxu0 %v838
    %865 = vmatmul.bf16.gmra.mxu0 %v855
    %v866 = vpop.f32.mrf.mxu0
    %v867 = vadd.f32 %v810, %v866
    %v868 = vpop.f32.mrf.mxu0
    %v869 = vadd.f32 %v810, %v868
    %870 = vdwg.mxu0
    %871 = vmatpush.bf16.msra.mxu0 0
    %872 = vmatpush.bf16.msra.mxu0 0
    %873 = vmatpush.bf16.msra.mxu0 0
    %874 = vmatpush.bf16.msra.mxu0 0
    %875 = vmatpush.bf16.msra.mxu0 %v845
    %876 = vmatpush.bf16.msra.mxu0 %v843
    %877 = vmatpush.bf16.msra.mxu0 %v841
    %878 = vmatpush.bf16.msra.mxu0 %v839
    %879 = vmatmul.bf16.gmra.mxu0 %v855
    %v880 = vpop.f32.mrf.mxu0
    %v881 = vadd.f32 %v811, %v880
    %v882 = vpop.f32.mrf.mxu0
    %v883 = vadd.f32 %v811, %v882
    %884 = vdwg.mxu0
    %v885 = vmul.f32 %v867, 0.5
    %v886 = vmul.f32 %v881, 0.5
    %v887 = vmul.f32 %v869, 0.5
    %v888 = vmul.f32 %v883, 0.5
    %v889 = vmul.f32 %v867, 0.70710677
    %v890 = vmul.f32 %v881, 0.70710677
    %v891 = vmul.f32 %v869, 0.70710677
    %v892 = vmul.f32 %v883, 0.70710677
    %v893 = vmul.f32 %v889, %v889
    %v894 = vmin.f32 16.0, %v893
    %v895 = vmul.f32 %v894, 2.1237322e-06
    %v896 = vadd.f32 %v895, 0.00028619796
    %v897 = vmul.f32 %v894, %v896
    %v898 = vadd.f32 %v897, 0.0036580483
    %v899 = vmul.f32 %v894, %v898
    %v900 = vadd.f32 %v899, 0.05243302
    %v901 = vmul.f32 %v894, %v900
    %v902 = vadd.f32 %v901, 0.18741608
    %v903 = vmul.f32 %v894, %v902
    %v904 = vadd.f32 %v903, 1.1283791
    %v905 = vmul.f32 %v889, %v904
    %v906 = vmul.f32 %v894, 3.8918573e-05
    %v907 = vadd.f32 %v906, 0.001143296
    %v908 = vmul.f32 %v894, %v907
    %v909 = vadd.f32 %v908, 0.014752088
    %v910 = vmul.f32 %v894, %v909
    %v911 = vadd.f32 %v910, 0.112945676
    %v912 = vmul.f32 %v894, %v911
    %v913 = vadd.f32 %v912, 0.4994258
    %v914 = vmul.f32 %v894, %v913
    %v915 = vadd.f32 %v914, 1.0
    %v916 = vrcp.pop %v915
    %v917 = vmul.f32 %v915, %v916
    %v918 = vsub.f32 1.0, %v917
    %v919 = vmul.f32 %v916, %v918
    %v920 = vadd.f32 %v916, %v919
    %vm921 = vweird.f32 %v915
    %vm922 = vweird.f32 %v916
    %vm923 = vmor %vm921, %vm922
    %v924 = vsel %vm923, %v916, %v920
    %v925 = vand.u32 2147483647, %v915
    %vm926 = vcmp.eq.f32.partialorder %v925, 8.507059e+37
    %v927 = vand.u32 %v915, 2147483648
    %v928 = vor.u32 1.1754944e-38, %v927
    %v929 = vsel %vm926, %v928, %v924
    %v930 = vmul.f32 %v905, %v929
    %v931 = vmin.f32 %v930, 1.0
    %v932 = vmax.f32 %v931, -1.0
    %v933 = vmul.f32 %v890, %v890
    %v934 = vmin.f32 16.0, %v933
    %v935 = vmul.f32 %v934, 2.1237322e-06
    %v936 = vadd.f32 %v935, 0.00028619796
    %v937 = vmul.f32 %v934, %v936
    %v938 = vadd.f32 %v937, 0.0036580483
    %v939 = vmul.f32 %v934, %v938
    %v940 = vadd.f32 %v939, 0.05243302
    %v941 = vmul.f32 %v934, %v940
    %v942 = vadd.f32 %v941, 0.18741608
    %v943 = vmul.f32 %v934, %v942
    %v944 = vadd.f32 %v943, 1.1283791
    %v945 = vmul.f32 %v890, %v944
    %v946 = vmul.f32 %v934, 3.8918573e-05
    %v947 = vadd.f32 %v946, 0.001143296
    %v948 = vmul.f32 %v934, %v947
    %v949 = vadd.f32 %v948, 0.014752088
    %v950 = vmul.f32 %v934, %v949
    %v951 = vadd.f32 %v950, 0.112945676
    %v952 = vmul.f32 %v934, %v951
    %v953 = vadd.f32 %v952, 0.4994258
    %v954 = vmul.f32 %v934, %v953
    %v955 = vadd.f32 %v954, 1.0
    %v956 = vrcp.pop %v955
    %v957 = vmul.f32 %v955, %v956
    %v958 = vsub.f32 1.0, %v957
    %v959 = vmul.f32 %v956, %v958
    %v960 = vadd.f32 %v956, %v959
    %vm961 = vweird.f32 %v955
    %vm962 = vweird.f32 %v956
    %vm963 = vmor %vm961, %vm962
    %v964 = vsel %vm963, %v956, %v960
    %v965 = vand.u32 2147483647, %v955
    %vm966 = vcmp.eq.f32.partialorder %v965, 8.507059e+37
    %v967 = vand.u32 %v955, 2147483648
    %v968 = vor.u32 1.1754944e-38, %v967
    %v969 = vsel %vm966, %v968, %v964
    %v970 = vmul.f32 %v945, %v969
    %v971 = vmin.f32 %v970, 1.0
    %v972 = vmax.f32 %v971, -1.0
    %v973 = vmul.f32 %v891, %v891
    %v974 = vmin.f32 16.0, %v973
    %v975 = vmul.f32 %v974, 2.1237322e-06
    %v976 = vadd.f32 %v975, 0.00028619796
    %v977 = vmul.f32 %v974, %v976
    %v978 = vadd.f32 %v977, 0.0036580483
    %v979 = vmul.f32 %v974, %v978
    %v980 = vadd.f32 %v979, 0.05243302
    %v981 = vmul.f32 %v974, %v980
    %v982 = vadd.f32 %v981, 0.18741608
    %v983 = vmul.f32 %v974, %v982
    %v984 = vadd.f32 %v983, 1.1283791
    %v985 = vmul.f32 %v891, %v984
    %v986 = vmul.f32 %v974, 3.8918573e-05
    %v987 = vadd.f32 %v986, 0.001143296
    %v988 = vmul.f32 %v974, %v987
    %v989 = vadd.f32 %v988, 0.014752088
    %v990 = vmul.f32 %v974, %v989
    %v991 = vadd.f32 %v990, 0.112945676
    %v992 = vmul.f32 %v974, %v991
    %v993 = vadd.f32 %v992, 0.4994258
    %v994 = vmul.f32 %v974, %v993
    %v995 = vadd.f32 %v994, 1.0
    %v996 = vrcp.pop %v995
    %v997 = vmul.f32 %v995, %v996
    %v998 = vsub.f32 1.0, %v997
    %v999 = vmul.f32 %v996, %v998
    %v1000 = vadd.f32 %v996, %v999
    %vm1001 = vweird.f32 %v995
    %vm1002 = vweird.f32 %v996
    %vm1003 = vmor %vm1001, %vm1002
    %v1004 = vsel %vm1003, %v996, %v1000
    %v1005 = vand.u32 2147483647, %v995
    %vm1006 = vcmp.eq.f32.partialorder %v1005, 8.507059e+37
    %v1007 = vand.u32 %v995, 2147483648
    %v1008 = vor.u32 1.1754944e-38, %v1007
    %v1009 = vsel %vm1006, %v1008, %v1004
    %v1010 = vmul.f32 %v985, %v1009
    %v1011 = vmin.f32 %v1010, 1.0
    %v1012 = vmax.f32 %v1011, -1.0
    %v1013 = vmul.f32 %v892, %v892
    %v1014 = vmin.f32 16.0, %v1013
    %v1015 = vmul.f32 %v1014, 2.1237322e-06
    %v1016 = vadd.f32 %v1015, 0.00028619796
    %v1017 = vmul.f32 %v1014, %v1016
    %v1018 = vadd.f32 %v1017, 0.0036580483
    %v1019 = vmul.f32 %v1014, %v1018
    %v1020 = vadd.f32 %v1019, 0.05243302
    %v1021 = vmul.f32 %v1014, %v1020
    %v1022 = vadd.f32 %v1021, 0.18741608
    %v1023 = vmul.f32 %v1014, %v1022
    %v1024 = vadd.f32 %v1023, 1.1283791
    %v1025 = vmul.f32 %v892, %v1024
    %v1026 = vmul.f32 %v1014, 3.8918573e-05
    %v1027 = vadd.f32 %v1026, 0.001143296
    %v1028 = vmul.f32 %v1014, %v1027
    %v1029 = vadd.f32 %v1028, 0.014752088
    %v1030 = vmul.f32 %v1014, %v1029
    %v1031 = vadd.f32 %v1030, 0.112945676
    %v1032 = vmul.f32 %v1014, %v1031
    %v1033 = vadd.f32 %v1032, 0.4994258
    %v1034 = vmul.f32 %v1014, %v1033
    %v1035 = vadd.f32 %v1034, 1.0
    %v1036 = vrcp.pop %v1035
    %v1037 = vmul.f32 %v1035, %v1036
    %v1038 = vsub.f32 1.0, %v1037
    %v1039 = vmul.f32 %v1036, %v1038
    %v1040 = vadd.f32 %v1036, %v1039
    %vm1041 = vweird.f32 %v1035
    %vm1042 = vweird.f32 %v1036
    %vm1043 = vmor %vm1041, %vm1042
    %v1044 = vsel %vm1043, %v1036, %v1040
    %v1045 = vand.u32 2147483647, %v1035
    %vm1046 = vcmp.eq.f32.partialorder %v1045, 8.507059e+37
    %v1047 = vand.u32 %v1035, 2147483648
    %v1048 = vor.u32 1.1754944e-38, %v1047
    %v1049 = vsel %vm1046, %v1048, %v1044
    %v1050 = vmul.f32 %v1025, %v1049
    %v1051 = vmin.f32 %v1050, 1.0
    %v1052 = vmax.f32 %v1051, -1.0
    %v1053 = vadd.f32 %v932, 1.0
    %v1054 = vadd.f32 %v972, 1.0
    %v1055 = vadd.f32 %v1012, 1.0
    %v1056 = vadd.f32 %v1052, 1.0
    %v1057 = vmul.f32 %v885, %v1053
    %v1058 = vmul.f32 %v886, %v1054
    %v1059 = vmul.f32 %v887, %v1055
    %v1060 = vmul.f32 %v888, %v1056
    %v1061 = vpack.c.bf16 %v1059, %v1057
    %v1062 = vpack.c.bf16 %v1060, %v1058
    %v1063 = vld [vmem:[%s12] sm:$0xf]
    %v1064 = vld [vmem:[%s12 + $0x4] sm:$0xf]
    %v1065 = vld [vmem:[%s12 + $0x8] sm:$0xf]
    %v1066 = vld [vmem:[%s12 + $0xc] sm:$0xf]
    %v1067 = vld [vmem:[%s12 + $0x10] sm:$0xf]
    %v1068 = vld [vmem:[%s12 + $0x14] sm:$0xf]
    %v1069 = vld [vmem:[%s12 + $0x18] sm:$0xf]
    %v1070 = vld [vmem:[%s12 + $0x1c] sm:$0xf]
    %v1071 = vld [vmem:[%s12 + $0x20] sm:$0xf]
    %v1072 = vld [vmem:[%s12 + $0x24] sm:$0xf]
    %v1073 = vld [vmem:[%s12 + $0x28] sm:$0xf]
    %v1074 = vld [vmem:[%s12 + $0x2c] sm:$0xf]
    %v1075 = vld [vmem:[%s12 + $0x30] sm:$0xf]
    %v1076 = vld [vmem:[%s12 + $0x34] sm:$0xf]
    %v1077 = vld [vmem:[%s12 + $0x38] sm:$0xf]
    %v1078 = vld [vmem:[%s12 + $0x3c] sm:$0xf]
    %v1079 = vld [vmem:[%s12 + $0x40] sm:$0xf]
    %v1080 = vld [vmem:[%s12 + $0x44] sm:$0xf]
    %v1081 = vld [vmem:[%s12 + $0x48] sm:$0xf]
    %v1082 = vld [vmem:[%s12 + $0x4c] sm:$0xf]
    %v1083 = vld [vmem:[%s12 + $0x50] sm:$0xf]
    %v1084 = vld [vmem:[%s12 + $0x54] sm:$0xf]
    %v1085 = vld [vmem:[%s12 + $0x58] sm:$0xf]
    %v1086 = vld [vmem:[%s12 + $0x5c] sm:$0xf]
    %v1087 = vld [vmem:[%s12 + $0x60] sm:$0xf]
    %v1088 = vld [vmem:[%s12 + $0x64] sm:$0xf]
    %v1089 = vld [vmem:[%s12 + $0x68] sm:$0xf]
    %v1090 = vld [vmem:[%s12 + $0x6c] sm:$0xf]
    %v1091 = vld [vmem:[%s12 + $0x70] sm:$0xf]
    %v1092 = vld [vmem:[%s12 + $0x74] sm:$0xf]
    %v1093 = vld [vmem:[%s12 + $0x78] sm:$0xf]
    %v1094 = vld [vmem:[%s12 + $0x7c] sm:$0xf]
    %v1095 = vld [vmem:[%s13] sm:$0x1]
    %v1097 = vperm.slane %v1095, 0
    %v1131 = vunpack.c.l.b16 %v1063
    %v1132 = vunpack.c.l.b16 %v1064
    %v1133 = vunpack.c.l.b16 %v1065
    %v1134 = vunpack.c.l.b16 %v1066
    %v1135 = vunpack.c.l.b16 %v1067
    %v1136 = vunpack.c.l.b16 %v1068
    %v1137 = vunpack.c.l.b16 %v1069
    %v1138 = vunpack.c.l.b16 %v1070
    %v1139 = vunpack.c.l.b16 %v1071
    %v1140 = vunpack.c.l.b16 %v1072
    %v1141 = vunpack.c.l.b16 %v1073
    %v1142 = vunpack.c.l.b16 %v1074
    %v1143 = vunpack.c.l.b16 %v1075
    %v1144 = vunpack.c.l.b16 %v1076
    %v1145 = vunpack.c.l.b16 %v1077
    %v1146 = vunpack.c.l.b16 %v1078
    %v1147 = vunpack.c.l.b16 %v1079
    %v1148 = vunpack.c.l.b16 %v1080
    %v1149 = vunpack.c.l.b16 %v1081
    %v1150 = vunpack.c.l.b16 %v1082
    %v1151 = vunpack.c.l.b16 %v1083
    %v1152 = vunpack.c.l.b16 %v1084
    %v1153 = vunpack.c.l.b16 %v1085
    %v1154 = vunpack.c.l.b16 %v1086
    %v1155 = vunpack.c.l.b16 %v1087
    %v1156 = vunpack.c.l.b16 %v1088
    %v1157 = vunpack.c.l.b16 %v1089
    %v1158 = vunpack.c.l.b16 %v1090
    %v1159 = vunpack.c.l.b16 %v1091
    %v1160 = vunpack.c.l.b16 %v1092
    %v1161 = vunpack.c.l.b16 %v1093
    %v1162 = vunpack.c.l.b16 %v1094
    %v1163 = vpack.c.b16 %v1132, %v1131
    %v1164 = vpack.c.b16 %v1134, %v1133
    %v1165 = vpack.c.b16 %v1136, %v1135
    %v1166 = vpack.c.b16 %v1138, %v1137
    %v1167 = vpack.c.b16 %v1140, %v1139
    %v1168 = vpack.c.b16 %v1142, %v1141
    %v1169 = vpack.c.b16 %v1144, %v1143
    %v1170 = vpack.c.b16 %v1146, %v1145
    %v1171 = vpack.c.b16 %v1148, %v1147
    %v1172 = vpack.c.b16 %v1150, %v1149
    %v1173 = vpack.c.b16 %v1152, %v1151
    %v1174 = vpack.c.b16 %v1154, %v1153
    %v1175 = vpack.c.b16 %v1156, %v1155
    %v1176 = vpack.c.b16 %v1158, %v1157
    %v1177 = vpack.c.b16 %v1160, %v1159
    %v1178 = vpack.c.b16 %v1162, %v1161
    %1195 = vmatpush.bf16.msra.mxu0 %v1170
    %1196 = vmatpush.bf16.msra.mxu0 %v1169
    %1197 = vmatpush.bf16.msra.mxu0 %v1168
    %1198 = vmatpush.bf16.msra.mxu0 %v1167
    %1199 = vmatpush.bf16.msra.mxu0 %v1166
    %1200 = vmatpush.bf16.msra.mxu0 %v1165
    %1201 = vmatpush.bf16.msra.mxu0 %v1164
    %1202 = vmatpush.bf16.msra.mxu0 %v1163
    %1203 = vmatmul.bf16.gmra.mxu0 %v1061
    %v1204 = vpop.f32.mrf.mxu0
    %v1205 = vadd.f32 %v1097, %v1204
    %v1206 = vpop.f32.mrf.mxu0
    %v1207 = vadd.f32 %v1097, %v1206
    %1208 = vdwg.mxu0
    %1209 = vmatpush.bf16.msra.mxu0 %v1178
    %1210 = vmatpush.bf16.msra.mxu0 %v1177
    %1211 = vmatpush.bf16.msra.mxu0 %v1176
    %1212 = vmatpush.bf16.msra.mxu0 %v1175
    %1213 = vmatpush.bf16.msra.mxu0 %v1174
    %1214 = vmatpush.bf16.msra.mxu0 %v1173
    %1215 = vmatpush.bf16.msra.mxu0 %v1172
    %1216 = vmatpush.bf16.msra.mxu0 %v1171
    %1217 = vmatmul.bf16.gmra.mxu0 %v1062
    %v1218 = vpop.f32.mrf.mxu0
    %v1219 = vadd.f32 %v1205, %v1218
    %v1220 = vpop.f32.mrf.mxu0
    %v1221 = vadd.f32 %v1207, %v1220
    %1222 = vdwg.mxu0
    %v1223 = vadd.f32 %v1219, %v797
    %v1224 = vadd.f32 %v1221, %v798
    %v1225 = vld [vmem:[%s14] sm:$0x1]
    %v1226 = vld [vmem:[%s15] sm:$0x1]
    %v1227 = vsel %vm80, %v1223, 0.0
    %1228 = vadd.xlane.f32.xlu0 %v1227
    %v1229 = vpop.xlane.xlu0 %1228
    %v1230 = vsel %vm80, %v1224, 0.0
    %1231 = vadd.xlane.f32.xlu0 %v1230
    %v1232 = vpop.xlane.xlu0 %1231
    %v1233 = vmul.f32 %v1229, %v93
    %v1234 = vmul.f32 %v1232, %v93
    %v1235 = vsub.f32 %v1223, %v1233
    %v1236 = vsub.f32 %v1224, %v1234
    %v1237 = vmul.f32 %v1235, %v1235
    %v1238 = vmul.f32 %v1236, %v1236
    %v1239 = vsel %vm80, %v1237, 0.0
    %1240 = vadd.xlane.f32.xlu0 %v1239
    %v1241 = vpop.xlane.xlu0 %1240
    %v1242 = vsel %vm80, %v1238, 0.0
    %1243 = vadd.xlane.f32.xlu0 %v1242
    %v1244 = vpop.xlane.xlu0 %1243
    %v1245 = vmul.f32 %v1241, %v93
    %v1246 = vmul.f32 %v1244, %v93
    %v1247 = vadd.f32 %v1245, 1e-12
    %v1248 = vadd.f32 %v1246, 1e-12
    %v1249 = vrsqrt.pop %v1247
    %v1250 = vmul.f32 %v1249, %v1247
    %v1251 = vmul.f32 %v1250, %v1249
    %v1252 = vmul.f32 0.5, %v1251
    %v1253 = vsub.f32 1.5, %v1252
    %v1254 = vmul.f32 %v1249, %v1253
    %vm1255 = vweird.f32 %v1247
    %vm1256 = vweird.f32 %v1249
    %vm1257 = vmor %vm1255, %vm1256
    %v1258 = vsel %vm1257, %v1249, %v1254
    %v1259 = vrsqrt.pop %v1248
    %v1260 = vmul.f32 %v1259, %v1248
    %v1261 = vmul.f32 %v1260, %v1259
    %v1262 = vmul.f32 0.5, %v1261
    %v1263 = vsub.f32 1.5, %v1262
    %v1264 = vmul.f32 %v1259, %v1263
    %vm1265 = vweird.f32 %v1248
    %vm1266 = vweird.f32 %v1259
    %vm1267 = vmor %vm1265, %vm1266
    %v1268 = vsel %vm1267, %v1259, %v1264
    %v1269 = vmul.f32 %v1235, %v1258
    %v1270 = vmul.f32 %v1236, %v1268
    %v1272 = vperm.slane %v1225, 0
    %v1274 = vmul.f32 %v1269, %v1272
    %v1275 = vmul.f32 %v1270, %v1272
    %v1277 = vperm.slane %v1226, 0
    %v1279 = vadd.f32 %v1274, %v1277
    %v1280 = vadd.f32 %v1275, %v1277
    %v1281 = vpack.c.bf16 %v1280, %v1279
    %s1282 = scalar_lea.vmem %s4, 192
    %v1283 = vld [vmem:[%s1282] sm:$0xff]
    %v1284 = vld [vmem:[%s1282 + $0x8] sm:$0xff]
    %v1285 = vld [vmem:[%s1282 + $0x10] sm:$0xff]
    %v1286 = vld [vmem:[%s1282 + $0x18] sm:$0xff]
    %v1287 = vld [vmem:[%s1282 + $0x20] sm:$0xff]
    %v1288 = vld [vmem:[%s1282 + $0x28] sm:$0xff]
    %v1289 = vld [vmem:[%s1282 + $0x30] sm:$0xff]
    %v1290 = vld [vmem:[%s1282 + $0x38] sm:$0xff]
    %v1291 = vld [vmem:[%s1282 + $0x40] sm:$0xff]
    %v1292 = vld [vmem:[%s1282 + $0x48] sm:$0xff]
    %v1293 = vld [vmem:[%s1282 + $0x50] sm:$0xff]
    %v1294 = vld [vmem:[%s1282 + $0x58] sm:$0xff]
    %v1295 = vld [vmem:[%s1282 + $0x60] sm:$0xff]
    %v1296 = vld [vmem:[%s1282 + $0x68] sm:$0xff]
    %v1297 = vld [vmem:[%s1282 + $0x70] sm:$0xff]
    %v1298 = vld [vmem:[%s1282 + $0x78] sm:$0xff]
    %v1299 = vld [vmem:[%s1282 + $0x80] sm:$0xff]
    %v1300 = vld [vmem:[%s1282 + $0x88] sm:$0xff]
    %v1301 = vld [vmem:[%s1282 + $0x90] sm:$0xff]
    %v1302 = vld [vmem:[%s1282 + $0x98] sm:$0xff]
    %v1303 = vld [vmem:[%s1282 + $0xa0] sm:$0xff]
    %v1304 = vld [vmem:[%s1282 + $0xa8] sm:$0xff]
    %v1305 = vld [vmem:[%s1282 + $0xb0] sm:$0xff]
    %v1306 = vld [vmem:[%s1282 + $0xb8] sm:$0xff]
    %s1307 = scalar_lea.vmem %s5, 6
    %v1308 = vld [vmem:[%s1307] sm:$0x3f]
    %v1310 = vperm.slane %v1308, 0
    %v1311 = vperm.slane %v1308, 1
    %v1312 = vperm.slane %v1308, 2
    %v1313 = vperm.slane %v1308, 3
    %v1314 = vperm.slane %v1308, 4
    %v1315 = vperm.slane %v1308, 5
    %v1346 = vunpack.c.l.b16 %v1283
    %v1347 = vunpack.c.h.b16 %v1283
    %v1348 = vunpack.c.l.b16 %v1284
    %v1349 = vunpack.c.h.b16 %v1284
    %v1350 = vunpack.c.l.b16 %v1285
    %v1351 = vunpack.c.h.b16 %v1285
    %v1352 = vunpack.c.l.b16 %v1286
    %v1353 = vunpack.c.h.b16 %v1286
    %v1354 = vunpack.c.l.b16 %v1287
    %v1355 = vunpack.c.h.b16 %v1287
    %v1356 = vunpack.c.l.b16 %v1288
    %v1357 = vunpack.c.h.b16 %v1288
    %v1358 = vunpack.c.l.b16 %v1289
    %v1359 = vunpack.c.h.b16 %v1289
    %v1360 = vunpack.c.l.b16 %v1290
    %v1361 = vunpack.c.h.b16 %v1290
    %v1362 = vunpack.c.l.b16 %v1291
    %v1363 = vunpack.c.h.b16 %v1291
    %v1364 = vunpack.c.l.b16 %v1292
    %v1365 = vunpack.c.h.b16 %v1292
    %v1366 = vunpack.c.l.b16 %v1293
    %v1367 = vunpack.c.h.b16 %v1293
    %v1368 = vunpack.c.l.b16 %v1294
    %v1369 = vunpack.c.h.b16 %v1294
    %v1370 = vunpack.c.l.b16 %v1295
    %v1371 = vunpack.c.h.b16 %v1295
    %v1372 = vunpack.c.l.b16 %v1296
    %v1373 = vunpack.c.h.b16 %v1296
    %v1374 = vunpack.c.l.b16 %v1297
    %v1375 = vunpack.c.h.b16 %v1297
    %v1376 = vunpack.c.l.b16 %v1298
    %v1377 = vunpack.c.h.b16 %v1298
    %v1378 = vunpack.c.l.b16 %v1299
    %v1379 = vunpack.c.h.b16 %v1299
    %v1380 = vunpack.c.l.b16 %v1300
    %v1381 = vunpack.c.h.b16 %v1300
    %v1382 = vunpack.c.l.b16 %v1301
    %v1383 = vunpack.c.h.b16 %v1301
    %v1384 = vunpack.c.l.b16 %v1302
    %v1385 = vunpack.c.h.b16 %v1302
    %v1386 = vunpack.c.l.b16 %v1303
    %v1387 = vunpack.c.h.b16 %v1303
    %v1388 = vunpack.c.l.b16 %v1304
    %v1389 = vunpack.c.h.b16 %v1304
    %v1390 = vunpack.c.l.b16 %v1305
    %v1391 = vunpack.c.h.b16 %v1305
    %v1392 = vunpack.c.l.b16 %v1306
    %v1393 = vunpack.c.h.b16 %v1306
    %v1394 = vpack.c.b16 %v1352, %v1346
    %v1395 = vpack.c.b16 %v1353, %v1347
    %v1396 = vpack.c.b16 %v1354, %v1348
    %v1397 = vpack.c.b16 %v1355, %v1349
    %v1398 = vpack.c.b16 %v1356, %v1350
    %v1399 = vpack.c.b16 %v1357, %v1351
    %v1400 = vpack.c.b16 %v1364, %v1358
    %v1401 = vpack.c.b16 %v1365, %v1359
    %v1402 = vpack.c.b16 %v1366, %v1360
    %v1403 = vpack.c.b16 %v1367, %v1361
    %v1404 = vpack.c.b16 %v1368, %v1362
    %v1405 = vpack.c.b16 %v1369, %v1363
    %v1406 = vpack.c.b16 %v1376, %v1370
    %v1407 = vpack.c.b16 %v1377, %v1371
    %v1408 = vpack.c.b16 %v1378, %v1372
    %v1409 = vpack.c.b16 %v1379, %v1373
    %v1410 = vpack.c.b16 %v1380, %v1374
    %v1411 = vpack.c.b16 %v1381, %v1375
    %v1412 = vpack.c.b16 %v1388, %v1382
    %v1413 = vpack.c.b16 %v1389, %v1383
    %v1414 = vpack.c.b16 %v1390, %v1384
    %v1415 = vpack.c.b16 %v1391, %v1385
    %v1416 = vpack.c.b16 %v1392, %v1386
    %v1417 = vpack.c.b16 %v1393, %v1387
    %v1443 = vsel %vm80, %v1281, 0
    %1445 = vmatpush.bf16.msra.mxu0 0
    %1446 = vmatpush.bf16.msra.mxu0 0
    %1447 = vmatpush.bf16.msra.mxu0 0
    %1448 = vmatpush.bf16.msra.mxu0 0
    %1449 = vmatpush.bf16.msra.mxu0 %v1412
    %1450 = vmatpush.bf16.msra.mxu0 %v1406
    %1451 = vmatpush.bf16.msra.mxu0 %v1400
    %1452 = vmatpush.bf16.msra.mxu0 %v1394
    %1453 = vmatmul.bf16.gmra.mxu0 %v1443
    %v1454 = vpop.f32.mrf.mxu0
    %v1455 = vadd.f32 %v1310, %v1454
    %v1456 = vpop.f32.mrf.mxu0
    %v1457 = vadd.f32 %v1310, %v1456
    %1458 = vdwg.mxu0
    %1459 = vmatpush.bf16.msra.mxu0 0
    %1460 = vmatpush.bf16.msra.mxu0 0
    %1461 = vmatpush.bf16.msra.mxu0 0
    %1462 = vmatpush.bf16.msra.mxu0 0
    %1463 = vmatpush.bf16.msra.mxu0 %v1413
    %1464 = vmatpush.bf16.msra.mxu0 %v1407
    %1465 = vmatpush.bf16.msra.mxu0 %v1401
    %1466 = vmatpush.bf16.msra.mxu0 %v1395
    %1467 = vmatmul.bf16.gmra.mxu0 %v1443
    %v1468 = vpop.f32.mrf.mxu0
    %v1469 = vadd.f32 %v1311, %v1468
    %v1470 = vpop.f32.mrf.mxu0
    %v1471 = vadd.f32 %v1311, %v1470
    %1472 = vdwg.mxu0
    %1473 = vmatpush.bf16.msra.mxu0 0
    %1474 = vmatpush.bf16.msra.mxu0 0
    %1475 = vmatpush.bf16.msra.mxu0 0
    %1476 = vmatpush.bf16.msra.mxu0 0
    %1477 = vmatpush.bf16.msra.mxu0 %v1414
    %1478 = vmatpush.bf16.msra.mxu0 %v1408
    %1479 = vmatpush.bf16.msra.mxu0 %v1402
    %1480 = vmatpush.bf16.msra.mxu0 %v1396
    %1481 = vmatmul.bf16.gmra.mxu0 %v1443
    %v1482 = vpop.f32.mrf.mxu0
    %v1483 = vadd.f32 %v1312, %v1482
    %v1484 = vpop.f32.mrf.mxu0
    %v1485 = vadd.f32 %v1312, %v1484
    %1486 = vdwg.mxu0
    %1487 = vmatpush.bf16.msra.mxu0 0
    %1488 = vmatpush.bf16.msra.mxu0 0
    %1489 = vmatpush.bf16.msra.mxu0 0
    %1490 = vmatpush.bf16.msra.mxu0 0
    %1491 = vmatpush.bf16.msra.mxu0 %v1415
    %1492 = vmatpush.bf16.msra.mxu0 %v1409
    %1493 = vmatpush.bf16.msra.mxu0 %v1403
    %1494 = vmatpush.bf16.msra.mxu0 %v1397
    %1495 = vmatmul.bf16.gmra.mxu0 %v1443
    %v1496 = vpop.f32.mrf.mxu0
    %v1497 = vadd.f32 %v1313, %v1496
    %v1498 = vpop.f32.mrf.mxu0
    %v1499 = vadd.f32 %v1313, %v1498
    %1500 = vdwg.mxu0
    %1501 = vmatpush.bf16.msra.mxu0 0
    %1502 = vmatpush.bf16.msra.mxu0 0
    %1503 = vmatpush.bf16.msra.mxu0 0
    %1504 = vmatpush.bf16.msra.mxu0 0
    %1505 = vmatpush.bf16.msra.mxu0 %v1416
    %1506 = vmatpush.bf16.msra.mxu0 %v1410
    %1507 = vmatpush.bf16.msra.mxu0 %v1404
    %1508 = vmatpush.bf16.msra.mxu0 %v1398
    %1509 = vmatmul.bf16.gmra.mxu0 %v1443
    %v1510 = vpop.f32.mrf.mxu0
    %v1511 = vadd.f32 %v1314, %v1510
    %v1512 = vpop.f32.mrf.mxu0
    %v1513 = vadd.f32 %v1314, %v1512
    %1514 = vdwg.mxu0
    %1515 = vmatpush.bf16.msra.mxu0 0
    %1516 = vmatpush.bf16.msra.mxu0 0
    %1517 = vmatpush.bf16.msra.mxu0 0
    %1518 = vmatpush.bf16.msra.mxu0 0
    %1519 = vmatpush.bf16.msra.mxu0 %v1417
    %1520 = vmatpush.bf16.msra.mxu0 %v1411
    %1521 = vmatpush.bf16.msra.mxu0 %v1405
    %1522 = vmatpush.bf16.msra.mxu0 %v1399
    %1523 = vmatmul.bf16.gmra.mxu0 %v1443
    %v1524 = vpop.f32.mrf.mxu0
    %v1525 = vadd.f32 %v1315, %v1524
    %v1526 = vpop.f32.mrf.mxu0
    %v1527 = vadd.f32 %v1315, %v1526
    %1528 = vdwg.mxu0
    %v1529 = vpack.c.bf16 %v1469, %v1455
    %v1530 = vpack.c.bf16 %v1497, %v1483
    %v1531 = vpack.c.bf16 %v1525, %v1511
    %v1532 = vpack.c.bf16 %v1471, %v1457
    %v1533 = vpack.c.bf16 %v1499, %v1485
    %v1534 = vpack.c.bf16 %v1527, %v1513
    %v1536 = vunpack.c.h.b16 %v1529
    %v1537 = vpack.c.b16 %v1536, %v1536
    %v1539 = vsel %vm397, %v1529, 0
    %v1542 = vsel %vm397, %v1537, 0
    %1544 = vmatpush.bf16.xpose.msra.mxu0 0
    %1545 = vmatpush.bf16.xpose.msra.mxu0 0
    %1546 = vmatpush.bf16.xpose.msra.mxu0 0
    %1547 = vmatpush.bf16.xpose.msra.mxu0 0
    %1548 = vmatpush.bf16.xpose.msra.mxu0 0
    %1549 = vmatpush.bf16.xpose.msra.mxu0 0
    %1550 = vmatpush.bf16.xpose.msra.mxu0 0
    %1551 = vmatpush.bf16.xpose.msra.mxu0 %v1542
    %1552 = vmatmul.bf16.gmra.mxu0 %v1539
    %v1553 = vpop.f32.mrf.mxu0
    %v1554 = vadd.f32 0.0, %v1553
    %v1555 = vpop.f32.mrf.mxu0
    %1556 = vdwg.mxu0
    %v1557 = vmul.f32 %v1554, 0.17677669
    %v1558 = vadd.f32 %v1557, %v418
    %v1559 = vsel %vm420, %v1558, -inf
    %1560 = vmax.xlane.f32.xlu0 %v1559
    %v1561 = vpop.xlane.xlu0 %1560
    %v1562 = vsub.f32 %v1558, %v1561
    %v1563 = vmul.f32 %v1562, 1.442695
    %v1564 = vpow.pop %v1563
    %v1565 = vsel %vm420, %v1564, 0.0
    %1566 = vadd.xlane.f32.xlu0 %v1565
    %v1567 = vpop.xlane.xlu0 %1566
    %v1568 = vrcp.pop %v1567
    %v1569 = vmul.f32 %v1567, %v1568
    %v1570 = vsub.f32 1.0, %v1569
    %v1571 = vmul.f32 %v1568, %v1570
    %v1572 = vadd.f32 %v1568, %v1571
    %vm1573 = vweird.f32 %v1567
    %vm1574 = vweird.f32 %v1568
    %vm1575 = vmor %vm1573, %vm1574
    %v1576 = vsel %vm1575, %v1568, %v1572
    %v1577 = vand.u32 2147483647, %v1567
    %vm1578 = vcmp.eq.f32.partialorder %v1577, 8.507059e+37
    %v1579 = vand.u32 %v1567, 2147483648
    %v1580 = vor.u32 1.1754944e-38, %v1579
    %v1581 = vsel %vm1578, %v1580, %v1576
    %v1582 = vmul.f32 %v1564, %v1581
    %v1583 = vpack.c.bf16 %v1582, %v1582
    %v1585 = vsel %vm420, %v1583, 0
    %v1588 = vsel %vm449, %v1530, 0
    %1590 = vmatpush.bf16.msra.mxu0 0
    %1591 = vmatpush.bf16.msra.mxu0 0
    %1592 = vmatpush.bf16.msra.mxu0 0
    %1593 = vmatpush.bf16.msra.mxu0 0
    %1594 = vmatpush.bf16.msra.mxu0 0
    %1595 = vmatpush.bf16.msra.mxu0 0
    %1596 = vmatpush.bf16.msra.mxu0 0
    %1597 = vmatpush.bf16.msra.mxu0 %v1588
    %1598 = vmatmul.bf16.gmra.mxu0 %v1585
    %v1599 = vpop.f32.mrf.mxu0
    %v1600 = vadd.f32 0.0, %v1599
    %v1601 = vpop.f32.mrf.mxu0
    %1602 = vdwg.mxu0
    %v1604 = vunpack.c.h.b16 %v1530
    %v1605 = vpack.c.b16 %v1604, %v1604
    %v1607 = vsel %vm397, %v1605, 0
    %v1610 = vsel %vm397, %v1531, 0
    %1612 = vmatpush.bf16.xpose.msra.mxu0 0
    %1613 = vmatpush.bf16.xpose.msra.mxu0 0
    %1614 = vmatpush.bf16.xpose.msra.mxu0 0
    %1615 = vmatpush.bf16.xpose.msra.mxu0 0
    %1616 = vmatpush.bf16.xpose.msra.mxu0 0
    %1617 = vmatpush.bf16.xpose.msra.mxu0 0
    %1618 = vmatpush.bf16.xpose.msra.mxu0 0
    %1619 = vmatpush.bf16.xpose.msra.mxu0 %v1610
    %1620 = vmatmul.bf16.gmra.mxu0 %v1607
    %v1621 = vpop.f32.mrf.mxu0
    %v1622 = vadd.f32 0.0, %v1621
    %v1623 = vpop.f32.mrf.mxu0
    %1624 = vdwg.mxu0
    %v1625 = vmul.f32 %v1622, 0.17677669
    %v1626 = vadd.f32 %v1625, %v418
    %v1627 = vsel %vm420, %v1626, -inf
    %1628 = vmax.xlane.f32.xlu0 %v1627
    %v1629 = vpop.xlane.xlu0 %1628
    %v1630 = vsub.f32 %v1626, %v1629
    %v1631 = vmul.f32 %v1630, 1.442695
    %v1632 = vpow.pop %v1631
    %v1633 = vsel %vm420, %v1632, 0.0
    %1634 = vadd.xlane.f32.xlu0 %v1633
    %v1635 = vpop.xlane.xlu0 %1634
    %v1636 = vrcp.pop %v1635
    %v1637 = vmul.f32 %v1635, %v1636
    %v1638 = vsub.f32 1.0, %v1637
    %v1639 = vmul.f32 %v1636, %v1638
    %v1640 = vadd.f32 %v1636, %v1639
    %vm1641 = vweird.f32 %v1635
    %vm1642 = vweird.f32 %v1636
    %vm1643 = vmor %vm1641, %vm1642
    %v1644 = vsel %vm1643, %v1636, %v1640
    %v1645 = vand.u32 2147483647, %v1635
    %vm1646 = vcmp.eq.f32.partialorder %v1645, 8.507059e+37
    %v1647 = vand.u32 %v1635, 2147483648
    %v1648 = vor.u32 1.1754944e-38, %v1647
    %v1649 = vsel %vm1646, %v1648, %v1644
    %v1650 = vmul.f32 %v1632, %v1649
    %v1651 = vpack.c.bf16 %v1650, %v1650
    %v1653 = vunpack.c.h.b16 %v1531
    %v1654 = vpack.c.b16 %v1653, %v1653
    %v1656 = vsel %vm420, %v1651, 0
    %v1659 = vsel %vm449, %v1654, 0
    %1661 = vmatpush.bf16.msra.mxu0 0
    %1662 = vmatpush.bf16.msra.mxu0 0
    %1663 = vmatpush.bf16.msra.mxu0 0
    %1664 = vmatpush.bf16.msra.mxu0 0
    %1665 = vmatpush.bf16.msra.mxu0 0
    %1666 = vmatpush.bf16.msra.mxu0 0
    %1667 = vmatpush.bf16.msra.mxu0 0
    %1668 = vmatpush.bf16.msra.mxu0 %v1659
    %1669 = vmatmul.bf16.gmra.mxu0 %v1656
    %v1670 = vpop.f32.mrf.mxu0
    %v1671 = vadd.f32 0.0, %v1670
    %v1672 = vpop.f32.mrf.mxu0
    %1673 = vdwg.mxu0
    %1675 = vrot.lane.b32.xlu0 %v1671, 32
    %v1676 = vpop.permute.xlu0 %1675
    %v1678 = vsel %vm397, %v1600, %v1676
    %v1680 = vunpack.c.h.b16 %v1532
    %v1681 = vpack.c.b16 %v1680, %v1680
    %v1683 = vsel %vm397, %v1532, 0
    %v1686 = vsel %vm397, %v1681, 0
    %1688 = vmatpush.bf16.xpose.msra.mxu0 0
    %1689 = vmatpush.bf16.xpose.msra.mxu0 0
    %1690 = vmatpush.bf16.xpose.msra.mxu0 0
    %1691 = vmatpush.bf16.xpose.msra.mxu0 0
    %1692 = vmatpush.bf16.xpose.msra.mxu0 0
    %1693 = vmatpush.bf16.xpose.msra.mxu0 0
    %1694 = vmatpush.bf16.xpose.msra.mxu0 0
    %1695 = vmatpush.bf16.xpose.msra.mxu0 %v1686
    %1696 = vmatmul.bf16.gmra.mxu0 %v1683
    %v1697 = vpop.f32.mrf.mxu0
    %v1698 = vadd.f32 0.0, %v1697
    %v1699 = vpop.f32.mrf.mxu0
    %1700 = vdwg.mxu0
    %v1701 = vmul.f32 %v1698, 0.17677669
    %v1702 = vadd.f32 %v1701, %v565
    %v1703 = vsel %vm420, %v1702, -inf
    %1704 = vmax.xlane.f32.xlu0 %v1703
    %v1705 = vpop.xlane.xlu0 %1704
    %v1706 = vsub.f32 %v1702, %v1705
    %v1707 = vmul.f32 %v1706, 1.442695
    %v1708 = vpow.pop %v1707
    %v1709 = vsel %vm420, %v1708, 0.0
    %1710 = vadd.xlane.f32.xlu0 %v1709
    %v1711 = vpop.xlane.xlu0 %1710
    %v1712 = vrcp.pop %v1711
    %v1713 = vmul.f32 %v1711, %v1712
    %v1714 = vsub.f32 1.0, %v1713
    %v1715 = vmul.f32 %v1712, %v1714
    %v1716 = vadd.f32 %v1712, %v1715
    %vm1717 = vweird.f32 %v1711
    %vm1718 = vweird.f32 %v1712
    %vm1719 = vmor %vm1717, %vm1718
    %v1720 = vsel %vm1719, %v1712, %v1716
    %v1721 = vand.u32 2147483647, %v1711
    %vm1722 = vcmp.eq.f32.partialorder %v1721, 8.507059e+37
    %v1723 = vand.u32 %v1711, 2147483648
    %v1724 = vor.u32 1.1754944e-38, %v1723
    %v1725 = vsel %vm1722, %v1724, %v1720
    %v1726 = vmul.f32 %v1708, %v1725
    %v1727 = vpack.c.bf16 %v1726, %v1726
    %v1729 = vsel %vm420, %v1727, 0
    %v1732 = vsel %vm449, %v1533, 0
    %1734 = vmatpush.bf16.msra.mxu0 0
    %1735 = vmatpush.bf16.msra.mxu0 0
    %1736 = vmatpush.bf16.msra.mxu0 0
    %1737 = vmatpush.bf16.msra.mxu0 0
    %1738 = vmatpush.bf16.msra.mxu0 0
    %1739 = vmatpush.bf16.msra.mxu0 0
    %1740 = vmatpush.bf16.msra.mxu0 0
    %1741 = vmatpush.bf16.msra.mxu0 %v1732
    %1742 = vmatmul.bf16.gmra.mxu0 %v1729
    %v1743 = vpop.f32.mrf.mxu0
    %v1744 = vadd.f32 0.0, %v1743
    %v1745 = vpop.f32.mrf.mxu0
    %1746 = vdwg.mxu0
    %v1748 = vunpack.c.h.b16 %v1533
    %v1749 = vpack.c.b16 %v1748, %v1748
    %v1751 = vsel %vm397, %v1749, 0
    %v1754 = vsel %vm397, %v1534, 0
    %1756 = vmatpush.bf16.xpose.msra.mxu0 0
    %1757 = vmatpush.bf16.xpose.msra.mxu0 0
    %1758 = vmatpush.bf16.xpose.msra.mxu0 0
    %1759 = vmatpush.bf16.xpose.msra.mxu0 0
    %1760 = vmatpush.bf16.xpose.msra.mxu0 0
    %1761 = vmatpush.bf16.xpose.msra.mxu0 0
    %1762 = vmatpush.bf16.xpose.msra.mxu0 0
    %1763 = vmatpush.bf16.xpose.msra.mxu0 %v1754
    %1764 = vmatmul.bf16.gmra.mxu0 %v1751
    %v1765 = vpop.f32.mrf.mxu0
    %v1766 = vadd.f32 0.0, %v1765
    %v1767 = vpop.f32.mrf.mxu0
    %1768 = vdwg.mxu0
    %v1769 = vmul.f32 %v1766, 0.17677669
    %v1770 = vadd.f32 %v1769, %v565
    %v1771 = vsel %vm420, %v1770, -inf
    %1772 = vmax.xlane.f32.xlu0 %v1771
    %v1773 = vpop.xlane.xlu0 %1772
    %v1774 = vsub.f32 %v1770, %v1773
    %v1775 = vmul.f32 %v1774, 1.442695
    %v1776 = vpow.pop %v1775
    %v1777 = vsel %vm420, %v1776, 0.0
    %1778 = vadd.xlane.f32.xlu0 %v1777
    %v1779 = vpop.xlane.xlu0 %1778
    %v1780 = vrcp.pop %v1779
    %v1781 = vmul.f32 %v1779, %v1780
    %v1782 = vsub.f32 1.0, %v1781
    %v1783 = vmul.f32 %v1780, %v1782
    %v1784 = vadd.f32 %v1780, %v1783
    %vm1785 = vweird.f32 %v1779
    %vm1786 = vweird.f32 %v1780
    %vm1787 = vmor %vm1785, %vm1786
    %v1788 = vsel %vm1787, %v1780, %v1784
    %v1789 = vand.u32 2147483647, %v1779
    %vm1790 = vcmp.eq.f32.partialorder %v1789, 8.507059e+37
    %v1791 = vand.u32 %v1779, 2147483648
    %v1792 = vor.u32 1.1754944e-38, %v1791
    %v1793 = vsel %vm1790, %v1792, %v1788
    %v1794 = vmul.f32 %v1776, %v1793
    %v1795 = vpack.c.bf16 %v1794, %v1794
    %v1797 = vunpack.c.h.b16 %v1534
    %v1798 = vpack.c.b16 %v1797, %v1797
    %v1800 = vsel %vm420, %v1795, 0
    %v1803 = vsel %vm449, %v1798, 0
    %1805 = vmatpush.bf16.msra.mxu0 0
    %1806 = vmatpush.bf16.msra.mxu0 0
    %1807 = vmatpush.bf16.msra.mxu0 0
    %1808 = vmatpush.bf16.msra.mxu0 0
    %1809 = vmatpush.bf16.msra.mxu0 0
    %1810 = vmatpush.bf16.msra.mxu0 0
    %1811 = vmatpush.bf16.msra.mxu0 0
    %1812 = vmatpush.bf16.msra.mxu0 %v1803
    %1813 = vmatmul.bf16.gmra.mxu0 %v1800
    %v1814 = vpop.f32.mrf.mxu0
    %v1815 = vadd.f32 0.0, %v1814
    %v1816 = vpop.f32.mrf.mxu0
    %1817 = vdwg.mxu0
    %1819 = vrot.lane.b32.xlu0 %v1815, 32
    %v1820 = vpop.permute.xlu0 %1819
    %v1822 = vsel %vm397, %v1744, %v1820
    %v1823 = vpack.c.bf16 %v1822, %v1678
    %s1824 = scalar_lea.vmem %s6, 32
    %v1825 = vld [vmem:[%s1824] sm:$0xf]
    %v1826 = vld [vmem:[%s1824 + $0x4] sm:$0xf]
    %v1827 = vld [vmem:[%s1824 + $0x8] sm:$0xf]
    %v1828 = vld [vmem:[%s1824 + $0xc] sm:$0xf]
    %v1829 = vld [vmem:[%s1824 + $0x10] sm:$0xf]
    %v1830 = vld [vmem:[%s1824 + $0x14] sm:$0xf]
    %v1831 = vld [vmem:[%s1824 + $0x18] sm:$0xf]
    %v1832 = vld [vmem:[%s1824 + $0x1c] sm:$0xf]
    %s1833 = scalar_lea.vmem %s7, 1
    %v1834 = vld [vmem:[%s1833] sm:$0x1]
    %v1836 = vperm.slane %v1834, 0
    %v1846 = vunpack.c.l.b16 %v1825
    %v1847 = vunpack.c.l.b16 %v1826
    %v1848 = vunpack.c.l.b16 %v1827
    %v1849 = vunpack.c.l.b16 %v1828
    %v1850 = vunpack.c.l.b16 %v1829
    %v1851 = vunpack.c.l.b16 %v1830
    %v1852 = vunpack.c.l.b16 %v1831
    %v1853 = vunpack.c.l.b16 %v1832
    %v1854 = vpack.c.b16 %v1847, %v1846
    %v1855 = vpack.c.b16 %v1849, %v1848
    %v1856 = vpack.c.b16 %v1851, %v1850
    %v1857 = vpack.c.b16 %v1853, %v1852
    %v1863 = vsel %vm80, %v1823, 0
    %1865 = vmatpush.bf16.msra.mxu0 0
    %1866 = vmatpush.bf16.msra.mxu0 0
    %1867 = vmatpush.bf16.msra.mxu0 0
    %1868 = vmatpush.bf16.msra.mxu0 0
    %1869 = vmatpush.bf16.msra.mxu0 %v1857
    %1870 = vmatpush.bf16.msra.mxu0 %v1856
    %1871 = vmatpush.bf16.msra.mxu0 %v1855
    %1872 = vmatpush.bf16.msra.mxu0 %v1854
    %1873 = vmatmul.bf16.gmra.mxu0 %v1863
    %v1874 = vpop.f32.mrf.mxu0
    %v1875 = vadd.f32 %v1836, %v1874
    %v1876 = vpop.f32.mrf.mxu0
    %v1877 = vadd.f32 %v1836, %v1876
    %1878 = vdwg.mxu0
    %v1879 = vadd.f32 %v1875, %v1279
    %v1880 = vadd.f32 %v1877, %v1280
    %s1881 = scalar_lea.vmem %s8, 1
    %v1882 = vld [vmem:[%s1881] sm:$0x1]
    %s1883 = scalar_lea.vmem %s9, 1
    %v1884 = vld [vmem:[%s1883] sm:$0x1]
    %v1885 = vsel %vm80, %v1879, 0.0
    %1886 = vadd.xlane.f32.xlu0 %v1885
    %v1887 = vpop.xlane.xlu0 %1886
    %v1888 = vsel %vm80, %v1880, 0.0
    %1889 = vadd.xlane.f32.xlu0 %v1888
    %v1890 = vpop.xlane.xlu0 %1889
    %v1891 = vmul.f32 %v1887, %v93
    %v1892 = vmul.f32 %v1890, %v93
    %v1893 = vsub.f32 %v1879, %v1891
    %v1894 = vsub.f32 %v1880, %v1892
    %v1895 = vmul.f32 %v1893, %v1893
    %v1896 = vmul.f32 %v1894, %v1894
    %v1897 = vsel %vm80, %v1895, 0.0
    %1898 = vadd.xlane.f32.xlu0 %v1897
    %v1899 = vpop.xlane.xlu0 %1898
    %v1900 = vsel %vm80, %v1896, 0.0
    %1901 = vadd.xlane.f32.xlu0 %v1900
    %v1902 = vpop.xlane.xlu0 %1901
    %v1903 = vmul.f32 %v1899, %v93
    %v1904 = vmul.f32 %v1902, %v93
    %v1905 = vadd.f32 %v1903, 1e-12
    %v1906 = vadd.f32 %v1904, 1e-12
    %v1907 = vrsqrt.pop %v1905
    %v1908 = vmul.f32 %v1907, %v1905
    %v1909 = vmul.f32 %v1908, %v1907
    %v1910 = vmul.f32 0.5, %v1909
    %v1911 = vsub.f32 1.5, %v1910
    %v1912 = vmul.f32 %v1907, %v1911
    %vm1913 = vweird.f32 %v1905
    %vm1914 = vweird.f32 %v1907
    %vm1915 = vmor %vm1913, %vm1914
    %v1916 = vsel %vm1915, %v1907, %v1912
    %v1917 = vrsqrt.pop %v1906
    %v1918 = vmul.f32 %v1917, %v1906
    %v1919 = vmul.f32 %v1918, %v1917
    %v1920 = vmul.f32 0.5, %v1919
    %v1921 = vsub.f32 1.5, %v1920
    %v1922 = vmul.f32 %v1917, %v1921
    %vm1923 = vweird.f32 %v1906
    %vm1924 = vweird.f32 %v1917
    %vm1925 = vmor %vm1923, %vm1924
    %v1926 = vsel %vm1925, %v1917, %v1922
    %v1927 = vmul.f32 %v1893, %v1916
    %v1928 = vmul.f32 %v1894, %v1926
    %v1930 = vperm.slane %v1882, 0
    %v1932 = vmul.f32 %v1927, %v1930
    %v1933 = vmul.f32 %v1928, %v1930
    %v1935 = vperm.slane %v1884, 0
    %v1937 = vadd.f32 %v1932, %v1935
    %v1938 = vadd.f32 %v1933, %v1935
    %v1939 = vpack.c.bf16 %v1938, %v1937
    %s1940 = scalar_lea.vmem %s10, 64
    %v1941 = vld [vmem:[%s1940] sm:$0xff]
    %v1942 = vld [vmem:[%s1940 + $0x8] sm:$0xff]
    %v1943 = vld [vmem:[%s1940 + $0x10] sm:$0xff]
    %v1944 = vld [vmem:[%s1940 + $0x18] sm:$0xff]
    %v1945 = vld [vmem:[%s1940 + $0x20] sm:$0xff]
    %v1946 = vld [vmem:[%s1940 + $0x28] sm:$0xff]
    %v1947 = vld [vmem:[%s1940 + $0x30] sm:$0xff]
    %v1948 = vld [vmem:[%s1940 + $0x38] sm:$0xff]
    %s1949 = scalar_lea.vmem %s11, 2
    %v1950 = vld [vmem:[%s1949] sm:$0x3]
    %v1952 = vperm.slane %v1950, 0
    %v1953 = vperm.slane %v1950, 1
    %v1964 = vunpack.c.l.b16 %v1941
    %v1965 = vunpack.c.h.b16 %v1941
    %v1966 = vunpack.c.l.b16 %v1942
    %v1967 = vunpack.c.h.b16 %v1942
    %v1968 = vunpack.c.l.b16 %v1943
    %v1969 = vunpack.c.h.b16 %v1943
    %v1970 = vunpack.c.l.b16 %v1944
    %v1971 = vunpack.c.h.b16 %v1944
    %v1972 = vunpack.c.l.b16 %v1945
    %v1973 = vunpack.c.h.b16 %v1945
    %v1974 = vunpack.c.l.b16 %v1946
    %v1975 = vunpack.c.h.b16 %v1946
    %v1976 = vunpack.c.l.b16 %v1947
    %v1977 = vunpack.c.h.b16 %v1947
    %v1978 = vunpack.c.l.b16 %v1948
    %v1979 = vunpack.c.h.b16 %v1948
    %v1980 = vpack.c.b16 %v1966, %v1964
    %v1981 = vpack.c.b16 %v1967, %v1965
    %v1982 = vpack.c.b16 %v1970, %v1968
    %v1983 = vpack.c.b16 %v1971, %v1969
    %v1984 = vpack.c.b16 %v1974, %v1972
    %v1985 = vpack.c.b16 %v1975, %v1973
    %v1986 = vpack.c.b16 %v1978, %v1976
    %v1987 = vpack.c.b16 %v1979, %v1977
    %v1997 = vsel %vm80, %v1939, 0
    %1999 = vmatpush.bf16.msra.mxu0 0
    %2000 = vmatpush.bf16.msra.mxu0 0
    %2001 = vmatpush.bf16.msra.mxu0 0
    %2002 = vmatpush.bf16.msra.mxu0 0
    %2003 = vmatpush.bf16.msra.mxu0 %v1986
    %2004 = vmatpush.bf16.msra.mxu0 %v1984
    %2005 = vmatpush.bf16.msra.mxu0 %v1982
    %2006 = vmatpush.bf16.msra.mxu0 %v1980
    %2007 = vmatmul.bf16.gmra.mxu0 %v1997
    %v2008 = vpop.f32.mrf.mxu0
    %v2009 = vadd.f32 %v1952, %v2008
    %v2010 = vpop.f32.mrf.mxu0
    %v2011 = vadd.f32 %v1952, %v2010
    %2012 = vdwg.mxu0
    %2013 = vmatpush.bf16.msra.mxu0 0
    %2014 = vmatpush.bf16.msra.mxu0 0
    %2015 = vmatpush.bf16.msra.mxu0 0
    %2016 = vmatpush.bf16.msra.mxu0 0
    %2017 = vmatpush.bf16.msra.mxu0 %v1987
    %2018 = vmatpush.bf16.msra.mxu0 %v1985
    %2019 = vmatpush.bf16.msra.mxu0 %v1983
    %2020 = vmatpush.bf16.msra.mxu0 %v1981
    %2021 = vmatmul.bf16.gmra.mxu0 %v1997
    %v2022 = vpop.f32.mrf.mxu0
    %v2023 = vadd.f32 %v1953, %v2022
    %v2024 = vpop.f32.mrf.mxu0
    %v2025 = vadd.f32 %v1953, %v2024
    %2026 = vdwg.mxu0
    %v2027 = vmul.f32 %v2009, 0.5
    %v2028 = vmul.f32 %v2023, 0.5
    %v2029 = vmul.f32 %v2011, 0.5
    %v2030 = vmul.f32 %v2025, 0.5
    %v2031 = vmul.f32 %v2009, 0.70710677
    %v2032 = vmul.f32 %v2023, 0.70710677
    %v2033 = vmul.f32 %v2011, 0.70710677
    %v2034 = vmul.f32 %v2025, 0.70710677
    %v2035 = vmul.f32 %v2031, %v2031
    %v2036 = vmin.f32 16.0, %v2035
    %v2037 = vmul.f32 %v2036, 2.1237322e-06
    %v2038 = vadd.f32 %v2037, 0.00028619796
    %v2039 = vmul.f32 %v2036, %v2038
    %v2040 = vadd.f32 %v2039, 0.0036580483
    %v2041 = vmul.f32 %v2036, %v2040
    %v2042 = vadd.f32 %v2041, 0.05243302
    %v2043 = vmul.f32 %v2036, %v2042
    %v2044 = vadd.f32 %v2043, 0.18741608
    %v2045 = vmul.f32 %v2036, %v2044
    %v2046 = vadd.f32 %v2045, 1.1283791
    %v2047 = vmul.f32 %v2031, %v2046
    %v2048 = vmul.f32 %v2036, 3.8918573e-05
    %v2049 = vadd.f32 %v2048, 0.001143296
    %v2050 = vmul.f32 %v2036, %v2049
    %v2051 = vadd.f32 %v2050, 0.014752088
    %v2052 = vmul.f32 %v2036, %v2051
    %v2053 = vadd.f32 %v2052, 0.112945676
    %v2054 = vmul.f32 %v2036, %v2053
    %v2055 = vadd.f32 %v2054, 0.4994258
    %v2056 = vmul.f32 %v2036, %v2055
    %v2057 = vadd.f32 %v2056, 1.0
    %v2058 = vrcp.pop %v2057
    %v2059 = vmul.f32 %v2057, %v2058
    %v2060 = vsub.f32 1.0, %v2059
    %v2061 = vmul.f32 %v2058, %v2060
    %v2062 = vadd.f32 %v2058, %v2061
    %vm2063 = vweird.f32 %v2057
    %vm2064 = vweird.f32 %v2058
    %vm2065 = vmor %vm2063, %vm2064
    %v2066 = vsel %vm2065, %v2058, %v2062
    %v2067 = vand.u32 2147483647, %v2057
    %vm2068 = vcmp.eq.f32.partialorder %v2067, 8.507059e+37
    %v2069 = vand.u32 %v2057, 2147483648
    %v2070 = vor.u32 1.1754944e-38, %v2069
    %v2071 = vsel %vm2068, %v2070, %v2066
    %v2072 = vmul.f32 %v2047, %v2071
    %v2073 = vmin.f32 %v2072, 1.0
    %v2074 = vmax.f32 %v2073, -1.0
    %v2075 = vmul.f32 %v2032, %v2032
    %v2076 = vmin.f32 16.0, %v2075
    %v2077 = vmul.f32 %v2076, 2.1237322e-06
    %v2078 = vadd.f32 %v2077, 0.00028619796
    %v2079 = vmul.f32 %v2076, %v2078
    %v2080 = vadd.f32 %v2079, 0.0036580483
    %v2081 = vmul.f32 %v2076, %v2080
    %v2082 = vadd.f32 %v2081, 0.05243302
    %v2083 = vmul.f32 %v2076, %v2082
    %v2084 = vadd.f32 %v2083, 0.18741608
    %v2085 = vmul.f32 %v2076, %v2084
    %v2086 = vadd.f32 %v2085, 1.1283791
    %v2087 = vmul.f32 %v2032, %v2086
    %v2088 = vmul.f32 %v2076, 3.8918573e-05
    %v2089 = vadd.f32 %v2088, 0.001143296
    %v2090 = vmul.f32 %v2076, %v2089
    %v2091 = vadd.f32 %v2090, 0.014752088
    %v2092 = vmul.f32 %v2076, %v2091
    %v2093 = vadd.f32 %v2092, 0.112945676
    %v2094 = vmul.f32 %v2076, %v2093
    %v2095 = vadd.f32 %v2094, 0.4994258
    %v2096 = vmul.f32 %v2076, %v2095
    %v2097 = vadd.f32 %v2096, 1.0
    %v2098 = vrcp.pop %v2097
    %v2099 = vmul.f32 %v2097, %v2098
    %v2100 = vsub.f32 1.0, %v2099
    %v2101 = vmul.f32 %v2098, %v2100
    %v2102 = vadd.f32 %v2098, %v2101
    %vm2103 = vweird.f32 %v2097
    %vm2104 = vweird.f32 %v2098
    %vm2105 = vmor %vm2103, %vm2104
    %v2106 = vsel %vm2105, %v2098, %v2102
    %v2107 = vand.u32 2147483647, %v2097
    %vm2108 = vcmp.eq.f32.partialorder %v2107, 8.507059e+37
    %v2109 = vand.u32 %v2097, 2147483648
    %v2110 = vor.u32 1.1754944e-38, %v2109
    %v2111 = vsel %vm2108, %v2110, %v2106
    %v2112 = vmul.f32 %v2087, %v2111
    %v2113 = vmin.f32 %v2112, 1.0
    %v2114 = vmax.f32 %v2113, -1.0
    %v2115 = vmul.f32 %v2033, %v2033
    %v2116 = vmin.f32 16.0, %v2115
    %v2117 = vmul.f32 %v2116, 2.1237322e-06
    %v2118 = vadd.f32 %v2117, 0.00028619796
    %v2119 = vmul.f32 %v2116, %v2118
    %v2120 = vadd.f32 %v2119, 0.0036580483
    %v2121 = vmul.f32 %v2116, %v2120
    %v2122 = vadd.f32 %v2121, 0.05243302
    %v2123 = vmul.f32 %v2116, %v2122
    %v2124 = vadd.f32 %v2123, 0.18741608
    %v2125 = vmul.f32 %v2116, %v2124
    %v2126 = vadd.f32 %v2125, 1.1283791
    %v2127 = vmul.f32 %v2033, %v2126
    %v2128 = vmul.f32 %v2116, 3.8918573e-05
    %v2129 = vadd.f32 %v2128, 0.001143296
    %v2130 = vmul.f32 %v2116, %v2129
    %v2131 = vadd.f32 %v2130, 0.014752088
    %v2132 = vmul.f32 %v2116, %v2131
    %v2133 = vadd.f32 %v2132, 0.112945676
    %v2134 = vmul.f32 %v2116, %v2133
    %v2135 = vadd.f32 %v2134, 0.4994258
    %v2136 = vmul.f32 %v2116, %v2135
    %v2137 = vadd.f32 %v2136, 1.0
    %v2138 = vrcp.pop %v2137
    %v2139 = vmul.f32 %v2137, %v2138
    %v2140 = vsub.f32 1.0, %v2139
    %v2141 = vmul.f32 %v2138, %v2140
    %v2142 = vadd.f32 %v2138, %v2141
    %vm2143 = vweird.f32 %v2137
    %vm2144 = vweird.f32 %v2138
    %vm2145 = vmor %vm2143, %vm2144
    %v2146 = vsel %vm2145, %v2138, %v2142
    %v2147 = vand.u32 2147483647, %v2137
    %vm2148 = vcmp.eq.f32.partialorder %v2147, 8.507059e+37
    %v2149 = vand.u32 %v2137, 2147483648
    %v2150 = vor.u32 1.1754944e-38, %v2149
    %v2151 = vsel %vm2148, %v2150, %v2146
    %v2152 = vmul.f32 %v2127, %v2151
    %v2153 = vmin.f32 %v2152, 1.0
    %v2154 = vmax.f32 %v2153, -1.0
    %v2155 = vmul.f32 %v2034, %v2034
    %v2156 = vmin.f32 16.0, %v2155
    %v2157 = vmul.f32 %v2156, 2.1237322e-06
    %v2158 = vadd.f32 %v2157, 0.00028619796
    %v2159 = vmul.f32 %v2156, %v2158
    %v2160 = vadd.f32 %v2159, 0.0036580483
    %v2161 = vmul.f32 %v2156, %v2160
    %v2162 = vadd.f32 %v2161, 0.05243302
    %v2163 = vmul.f32 %v2156, %v2162
    %v2164 = vadd.f32 %v2163, 0.18741608
    %v2165 = vmul.f32 %v2156, %v2164
    %v2166 = vadd.f32 %v2165, 1.1283791
    %v2167 = vmul.f32 %v2034, %v2166
    %v2168 = vmul.f32 %v2156, 3.8918573e-05
    %v2169 = vadd.f32 %v2168, 0.001143296
    %v2170 = vmul.f32 %v2156, %v2169
    %v2171 = vadd.f32 %v2170, 0.014752088
    %v2172 = vmul.f32 %v2156, %v2171
    %v2173 = vadd.f32 %v2172, 0.112945676
    %v2174 = vmul.f32 %v2156, %v2173
    %v2175 = vadd.f32 %v2174, 0.4994258
    %v2176 = vmul.f32 %v2156, %v2175
    %v2177 = vadd.f32 %v2176, 1.0
    %v2178 = vrcp.pop %v2177
    %v2179 = vmul.f32 %v2177, %v2178
    %v2180 = vsub.f32 1.0, %v2179
    %v2181 = vmul.f32 %v2178, %v2180
    %v2182 = vadd.f32 %v2178, %v2181
    %vm2183 = vweird.f32 %v2177
    %vm2184 = vweird.f32 %v2178
    %vm2185 = vmor %vm2183, %vm2184
    %v2186 = vsel %vm2185, %v2178, %v2182
    %v2187 = vand.u32 2147483647, %v2177
    %vm2188 = vcmp.eq.f32.partialorder %v2187, 8.507059e+37
    %v2189 = vand.u32 %v2177, 2147483648
    %v2190 = vor.u32 1.1754944e-38, %v2189
    %v2191 = vsel %vm2188, %v2190, %v2186
    %v2192 = vmul.f32 %v2167, %v2191
    %v2193 = vmin.f32 %v2192, 1.0
    %v2194 = vmax.f32 %v2193, -1.0
    %v2195 = vadd.f32 %v2074, 1.0
    %v2196 = vadd.f32 %v2114, 1.0
    %v2197 = vadd.f32 %v2154, 1.0
    %v2198 = vadd.f32 %v2194, 1.0
    %v2199 = vmul.f32 %v2027, %v2195
    %v2200 = vmul.f32 %v2028, %v2196
    %v2201 = vmul.f32 %v2029, %v2197
    %v2202 = vmul.f32 %v2030, %v2198
    %v2203 = vpack.c.bf16 %v2201, %v2199
    %v2204 = vpack.c.bf16 %v2202, %v2200
    %s2205 = scalar_lea.vmem %s12, 128
    %v2206 = vld [vmem:[%s2205] sm:$0xf]
    %v2207 = vld [vmem:[%s2205 + $0x4] sm:$0xf]
    %v2208 = vld [vmem:[%s2205 + $0x8] sm:$0xf]
    %v2209 = vld [vmem:[%s2205 + $0xc] sm:$0xf]
    %v2210 = vld [vmem:[%s2205 + $0x10] sm:$0xf]
    %v2211 = vld [vmem:[%s2205 + $0x14] sm:$0xf]
    %v2212 = vld [vmem:[%s2205 + $0x18] sm:$0xf]
    %v2213 = vld [vmem:[%s2205 + $0x1c] sm:$0xf]
    %v2214 = vld [vmem:[%s2205 + $0x20] sm:$0xf]
    %v2215 = vld [vmem:[%s2205 + $0x24] sm:$0xf]
    %v2216 = vld [vmem:[%s2205 + $0x28] sm:$0xf]
    %v2217 = vld [vmem:[%s2205 + $0x2c] sm:$0xf]
    %v2218 = vld [vmem:[%s2205 + $0x30] sm:$0xf]
    %v2219 = vld [vmem:[%s2205 + $0x34] sm:$0xf]
    %v2220 = vld [vmem:[%s2205 + $0x38] sm:$0xf]
    %v2221 = vld [vmem:[%s2205 + $0x3c] sm:$0xf]
    %v2222 = vld [vmem:[%s2205 + $0x40] sm:$0xf]
    %v2223 = vld [vmem:[%s2205 + $0x44] sm:$0xf]
    %v2224 = vld [vmem:[%s2205 + $0x48] sm:$0xf]
    %v2225 = vld [vmem:[%s2205 + $0x4c] sm:$0xf]
    %v2226 = vld [vmem:[%s2205 + $0x50] sm:$0xf]
    %v2227 = vld [vmem:[%s2205 + $0x54] sm:$0xf]
    %v2228 = vld [vmem:[%s2205 + $0x58] sm:$0xf]
    %v2229 = vld [vmem:[%s2205 + $0x5c] sm:$0xf]
    %v2230 = vld [vmem:[%s2205 + $0x60] sm:$0xf]
    %v2231 = vld [vmem:[%s2205 + $0x64] sm:$0xf]
    %v2232 = vld [vmem:[%s2205 + $0x68] sm:$0xf]
    %v2233 = vld [vmem:[%s2205 + $0x6c] sm:$0xf]
    %v2234 = vld [vmem:[%s2205 + $0x70] sm:$0xf]
    %v2235 = vld [vmem:[%s2205 + $0x74] sm:$0xf]
    %v2236 = vld [vmem:[%s2205 + $0x78] sm:$0xf]
    %v2237 = vld [vmem:[%s2205 + $0x7c] sm:$0xf]
    %s2238 = scalar_lea.vmem %s13, 1
    %v2239 = vld [vmem:[%s2238] sm:$0x1]
    %v2241 = vperm.slane %v2239, 0
    %v2275 = vunpack.c.l.b16 %v2206
    %v2276 = vunpack.c.l.b16 %v2207
    %v2277 = vunpack.c.l.b16 %v2208
    %v2278 = vunpack.c.l.b16 %v2209
    %v2279 = vunpack.c.l.b16 %v2210
    %v2280 = vunpack.c.l.b16 %v2211
    %v2281 = vunpack.c.l.b16 %v2212
    %v2282 = vunpack.c.l.b16 %v2213
    %v2283 = vunpack.c.l.b16 %v2214
    %v2284 = vunpack.c.l.b16 %v2215
    %v2285 = vunpack.c.l.b16 %v2216
    %v2286 = vunpack.c.l.b16 %v2217
    %v2287 = vunpack.c.l.b16 %v2218
    %v2288 = vunpack.c.l.b16 %v2219
    %v2289 = vunpack.c.l.b16 %v2220
    %v2290 = vunpack.c.l.b16 %v2221
    %v2291 = vunpack.c.l.b16 %v2222
    %v2292 = vunpack.c.l.b16 %v2223
    %v2293 = vunpack.c.l.b16 %v2224
    %v2294 = vunpack.c.l.b16 %v2225
    %v2295 = vunpack.c.l.b16 %v2226
    %v2296 = vunpack.c.l.b16 %v2227
    %v2297 = vunpack.c.l.b16 %v2228
    %v2298 = vunpack.c.l.b16 %v2229
    %v2299 = vunpack.c.l.b16 %v2230
    %v2300 = vunpack.c.l.b16 %v2231
    %v2301 = vunpack.c.l.b16 %v2232
    %v2302 = vunpack.c.l.b16 %v2233
    %v2303 = vunpack.c.l.b16 %v2234
    %v2304 = vunpack.c.l.b16 %v2235
    %v2305 = vunpack.c.l.b16 %v2236
    %v2306 = vunpack.c.l.b16 %v2237
    %v2307 = vpack.c.b16 %v2276, %v2275
    %v2308 = vpack.c.b16 %v2278, %v2277
    %v2309 = vpack.c.b16 %v2280, %v2279
    %v2310 = vpack.c.b16 %v2282, %v2281
    %v2311 = vpack.c.b16 %v2284, %v2283
    %v2312 = vpack.c.b16 %v2286, %v2285
    %v2313 = vpack.c.b16 %v2288, %v2287
    %v2314 = vpack.c.b16 %v2290, %v2289
    %v2315 = vpack.c.b16 %v2292, %v2291
    %v2316 = vpack.c.b16 %v2294, %v2293
    %v2317 = vpack.c.b16 %v2296, %v2295
    %v2318 = vpack.c.b16 %v2298, %v2297
    %v2319 = vpack.c.b16 %v2300, %v2299
    %v2320 = vpack.c.b16 %v2302, %v2301
    %v2321 = vpack.c.b16 %v2304, %v2303
    %v2322 = vpack.c.b16 %v2306, %v2305
    %2339 = vmatpush.bf16.msra.mxu0 %v2314
    %2340 = vmatpush.bf16.msra.mxu0 %v2313
    %2341 = vmatpush.bf16.msra.mxu0 %v2312
    %2342 = vmatpush.bf16.msra.mxu0 %v2311
    %2343 = vmatpush.bf16.msra.mxu0 %v2310
    %2344 = vmatpush.bf16.msra.mxu0 %v2309
    %2345 = vmatpush.bf16.msra.mxu0 %v2308
    %2346 = vmatpush.bf16.msra.mxu0 %v2307
    %2347 = vmatmul.bf16.gmra.mxu0 %v2203
    %v2348 = vpop.f32.mrf.mxu0
    %v2349 = vadd.f32 %v2241, %v2348
    %v2350 = vpop.f32.mrf.mxu0
    %v2351 = vadd.f32 %v2241, %v2350
    %2352 = vdwg.mxu0
    %2353 = vmatpush.bf16.msra.mxu0 %v2322
    %2354 = vmatpush.bf16.msra.mxu0 %v2321
    %2355 = vmatpush.bf16.msra.mxu0 %v2320
    %2356 = vmatpush.bf16.msra.mxu0 %v2319
    %2357 = vmatpush.bf16.msra.mxu0 %v2318
    %2358 = vmatpush.bf16.msra.mxu0 %v2317
    %2359 = vmatpush.bf16.msra.mxu0 %v2316
    %2360 = vmatpush.bf16.msra.mxu0 %v2315
    %2361 = vmatmul.bf16.gmra.mxu0 %v2204
    %v2362 = vpop.f32.mrf.mxu0
    %v2363 = vadd.f32 %v2349, %v2362
    %v2364 = vpop.f32.mrf.mxu0
    %v2365 = vadd.f32 %v2351, %v2364
    %2366 = vdwg.mxu0
    %v2367 = vadd.f32 %v2363, %v1937
    %v2368 = vadd.f32 %v2365, %v1938
    %s2369 = scalar_lea.vmem %s14, 1
    %v2370 = vld [vmem:[%s2369] sm:$0x1]
    %s2371 = scalar_lea.vmem %s15, 1
    %v2372 = vld [vmem:[%s2371] sm:$0x1]
    %v2373 = vsel %vm80, %v2367, 0.0
    %2374 = vadd.xlane.f32.xlu0 %v2373
    %v2375 = vpop.xlane.xlu0 %2374
    %v2376 = vsel %vm80, %v2368, 0.0
    %2377 = vadd.xlane.f32.xlu0 %v2376
    %v2378 = vpop.xlane.xlu0 %2377
    %v2379 = vmul.f32 %v2375, %v93
    %v2380 = vmul.f32 %v2378, %v93
    %v2381 = vsub.f32 %v2367, %v2379
    %v2382 = vsub.f32 %v2368, %v2380
    %v2383 = vmul.f32 %v2381, %v2381
    %v2384 = vmul.f32 %v2382, %v2382
    %v2385 = vsel %vm80, %v2383, 0.0
    %2386 = vadd.xlane.f32.xlu0 %v2385
    %v2387 = vpop.xlane.xlu0 %2386
    %v2388 = vsel %vm80, %v2384, 0.0
    %2389 = vadd.xlane.f32.xlu0 %v2388
    %v2390 = vpop.xlane.xlu0 %2389
    %v2391 = vmul.f32 %v2387, %v93
    %v2392 = vmul.f32 %v2390, %v93
    %v2393 = vadd.f32 %v2391, 1e-12
    %v2394 = vadd.f32 %v2392, 1e-12
    %v2395 = vrsqrt.pop %v2393
    %v2396 = vmul.f32 %v2395, %v2393
    %v2397 = vmul.f32 %v2396, %v2395
    %v2398 = vmul.f32 0.5, %v2397
    %v2399 = vsub.f32 1.5, %v2398
    %v2400 = vmul.f32 %v2395, %v2399
    %vm2401 = vweird.f32 %v2393
    %vm2402 = vweird.f32 %v2395
    %vm2403 = vmor %vm2401, %vm2402
    %v2404 = vsel %vm2403, %v2395, %v2400
    %v2405 = vrsqrt.pop %v2394
    %v2406 = vmul.f32 %v2405, %v2394
    %v2407 = vmul.f32 %v2406, %v2405
    %v2408 = vmul.f32 0.5, %v2407
    %v2409 = vsub.f32 1.5, %v2408
    %v2410 = vmul.f32 %v2405, %v2409
    %vm2411 = vweird.f32 %v2394
    %vm2412 = vweird.f32 %v2405
    %vm2413 = vmor %vm2411, %vm2412
    %v2414 = vsel %vm2413, %v2405, %v2410
    %v2415 = vmul.f32 %v2381, %v2404
    %v2416 = vmul.f32 %v2382, %v2414
    %v2418 = vperm.slane %v2370, 0
    %v2420 = vmul.f32 %v2415, %v2418
    %v2421 = vmul.f32 %v2416, %v2418
    %v2423 = vperm.slane %v2372, 0
    %v2425 = vadd.f32 %v2420, %v2423
    %v2426 = vadd.f32 %v2421, %v2423
    %v2428 = vrot.slane %v2426, 7
    %vm2430 = vcmask 1040384
    %v2431 = vsel %vm2430, %v2425, %v2428
    %v2432 = vpack.c.bf16 %v2431, %v2431
    %v2433 = vld [vmem:[%s16] sm:$0xf]
    %v2434 = vld [vmem:[%s16 + $0x4] sm:$0xf]
    %v2435 = vld [vmem:[%s16 + $0x8] sm:$0xf]
    %v2436 = vld [vmem:[%s16 + $0xc] sm:$0xf]
    %v2437 = vld [vmem:[%s16 + $0x10] sm:$0xf]
    %v2438 = vld [vmem:[%s16 + $0x14] sm:$0xf]
    %v2439 = vld [vmem:[%s16 + $0x18] sm:$0xf]
    %v2440 = vld [vmem:[%s16 + $0x1c] sm:$0xf]
    %v2441 = vld [vmem:[%s17] sm:$0x1]
    %v2443 = vperm.slane %v2441, 0
    %v2453 = vunpack.c.l.b16 %v2433
    %v2454 = vunpack.c.l.b16 %v2434
    %v2455 = vunpack.c.l.b16 %v2435
    %v2456 = vunpack.c.l.b16 %v2436
    %v2457 = vunpack.c.l.b16 %v2437
    %v2458 = vunpack.c.l.b16 %v2438
    %v2459 = vunpack.c.l.b16 %v2439
    %v2460 = vunpack.c.l.b16 %v2440
    %v2461 = vpack.c.b16 %v2454, %v2453
    %v2462 = vpack.c.b16 %v2456, %v2455
    %v2463 = vpack.c.b16 %v2458, %v2457
    %v2464 = vpack.c.b16 %v2460, %v2459
    %v2470 = vsel %vm80, %v2432, 0
    %2472 = vmatpush.bf16.msra.mxu0 0
    %2473 = vmatpush.bf16.msra.mxu0 0
    %2474 = vmatpush.bf16.msra.mxu0 0
    %2475 = vmatpush.bf16.msra.mxu0 0
    %2476 = vmatpush.bf16.msra.mxu0 %v2464
    %2477 = vmatpush.bf16.msra.mxu0 %v2463
    %2478 = vmatpush.bf16.msra.mxu0 %v2462
    %2479 = vmatpush.bf16.msra.mxu0 %v2461
    %2480 = vmatmul.bf16.gmra.mxu0 %v2470
    %v2481 = vpop.f32.mrf.mxu0
    %v2482 = vadd.f32 %v2443, %v2481
    %v2483 = vpop.f32.mrf.mxu0
    %2484 = vdwg.mxu0
    %v2485 = vtanh.pop %v2482
    %v2486 = vpack.c.bf16 %v2485, %v2485
    %v2487 = vld [vmem:[%s18] sm:$0xf]
    %v2488 = vld [vmem:[%s18 + $0x4] sm:$0xf]
    %v2489 = vld [vmem:[%s18 + $0x8] sm:$0xf]
    %v2490 = vld [vmem:[%s18 + $0xc] sm:$0xf]
    %v2491 = vld [vmem:[%s18 + $0x10] sm:$0xf]
    %v2492 = vld [vmem:[%s18 + $0x14] sm:$0xf]
    %v2493 = vld [vmem:[%s18 + $0x18] sm:$0xf]
    %v2494 = vld [vmem:[%s18 + $0x1c] sm:$0xf]
    %v2495 = vld [vmem:[%s19] sm:$0x1]
    %v2497 = vperm.slane %v2495, 0
    %v2507 = vunpack.c.l.b16 %v2487
    %v2508 = vunpack.c.l.b16 %v2488
    %v2509 = vunpack.c.l.b16 %v2489
    %v2510 = vunpack.c.l.b16 %v2490
    %v2511 = vunpack.c.l.b16 %v2491
    %v2512 = vunpack.c.l.b16 %v2492
    %v2513 = vunpack.c.l.b16 %v2493
    %v2514 = vunpack.c.l.b16 %v2494
    %v2515 = vpack.c.b16 %v2508, %v2507
    %v2516 = vpack.c.b16 %v2510, %v2509
    %v2517 = vpack.c.b16 %v2512, %v2511
    %v2518 = vpack.c.b16 %v2514, %v2513
    %v2524 = vsel %vm80, %v2486, 0
    %2526 = vmatpush.bf16.msra.mxu0 0
    %2527 = vmatpush.bf16.msra.mxu0 0
    %2528 = vmatpush.bf16.msra.mxu0 0
    %2529 = vmatpush.bf16.msra.mxu0 0
    %2530 = vmatpush.bf16.msra.mxu0 %v2518
    %2531 = vmatpush.bf16.msra.mxu0 %v2517
    %2532 = vmatpush.bf16.msra.mxu0 %v2516
    %2533 = vmatpush.bf16.msra.mxu0 %v2515
    %2534 = vmatmul.bf16.gmra.mxu0 %v2524
    %v2535 = vpop.f32.mrf.mxu0
    %v2536 = vadd.f32 %v2497, %v2535
    %v2537 = vpop.f32.mrf.mxu0
    %2538 = vdwg.mxu0
    %2539 = vst [vmem:[#allocation2] sm:$0x3] %v2536
    %v2540 = vpack.c.bf16 %v2426, %v2425
    %v2541 = vld [vmem:[%s20] sm:$0xf]
    %v2542 = vld [vmem:[%s20 + $0x4] sm:$0xf]
    %v2543 = vld [vmem:[%s20 + $0x8] sm:$0xf]
    %v2544 = vld [vmem:[%s20 + $0xc] sm:$0xf]
    %v2545 = vld [vmem:[%s20 + $0x10] sm:$0xf]
    %v2546 = vld [vmem:[%s20 + $0x14] sm:$0xf]
    %v2547 = vld [vmem:[%s20 + $0x18] sm:$0xf]
    %v2548 = vld [vmem:[%s20 + $0x1c] sm:$0xf]
    %v2549 = vld [vmem:[%s21] sm:$0x1]
    %v2551 = vperm.slane %v2549, 0
    %v2561 = vunpack.c.l.b16 %v2541
    %v2562 = vunpack.c.l.b16 %v2542
    %v2563 = vunpack.c.l.b16 %v2543
    %v2564 = vunpack.c.l.b16 %v2544
    %v2565 = vunpack.c.l.b16 %v2545
    %v2566 = vunpack.c.l.b16 %v2546
    %v2567 = vunpack.c.l.b16 %v2547
    %v2568 = vunpack.c.l.b16 %v2548
    %v2569 = vpack.c.b16 %v2562, %v2561
    %v2570 = vpack.c.b16 %v2564, %v2563
    %v2571 = vpack.c.b16 %v2566, %v2565
    %v2572 = vpack.c.b16 %v2568, %v2567
    %v2578 = vsel %vm80, %v2540, 0
    %2580 = vmatpush.bf16.msra.mxu0 0
    %2581 = vmatpush.bf16.msra.mxu0 0
    %2582 = vmatpush.bf16.msra.mxu0 0
    %2583 = vmatpush.bf16.msra.mxu0 0
    %2584 = vmatpush.bf16.msra.mxu0 %v2572
    %2585 = vmatpush.bf16.msra.mxu0 %v2571
    %2586 = vmatpush.bf16.msra.mxu0 %v2570
    %2587 = vmatpush.bf16.msra.mxu0 %v2569
    %2588 = vmatmul.bf16.gmra.mxu0 %v2578
    %v2589 = vpop.f32.mrf.mxu0
    %v2590 = vadd.f32 %v2551, %v2589
    %v2591 = vpop.f32.mrf.mxu0
    %v2592 = vadd.f32 %v2551, %v2591
    %2593 = vdwg.mxu0
    %v2594 = vxor.u32 %v2590, 2147483648
    %v2595 = vxor.u32 %v2592, 2147483648
    %v2596 = vmul.f32 %v2594, 1.442695
    %v2597 = vpow.pop %v2596
    %v2598 = vmul.f32 %v2595, 1.442695
    %v2599 = vpow.pop %v2598
    %v2600 = vadd.f32 %v2597, 1.0
    %v2601 = vadd.f32 %v2599, 1.0
    %v2602 = vrcp.pop %v2600
    %v2603 = vmul.f32 %v2600, %v2602
    %v2604 = vsub.f32 1.0, %v2603
    %v2605 = vmul.f32 %v2602, %v2604
    %v2606 = vadd.f32 %v2602, %v2605
    %vm2607 = vweird.f32 %v2600
    %vm2608 = vweird.f32 %v2602
    %vm2609 = vmor %vm2607, %vm2608
    %v2610 = vsel %vm2609, %v2602, %v2606
    %v2611 = vand.u32 2147483647, %v2600
    %vm2612 = vcmp.eq.f32.partialorder %v2611, 8.507059e+37
    %v2613 = vand.u32 %v2600, 2147483648
    %v2614 = vor.u32 1.1754944e-38, %v2613
    %v2615 = vsel %vm2612, %v2614, %v2610
    %v2616 = vmul.f32 1.0, %v2615
    %v2617 = vrcp.pop %v2601
    %v2618 = vmul.f32 %v2601, %v2617
    %v2619 = vsub.f32 1.0, %v2618
    %v2620 = vmul.f32 %v2617, %v2619
    %v2621 = vadd.f32 %v2617, %v2620
    %vm2622 = vweird.f32 %v2601
    %vm2623 = vweird.f32 %v2617
    %vm2624 = vmor %vm2622, %vm2623
    %v2625 = vsel %vm2624, %v2617, %v2621
    %v2626 = vand.u32 2147483647, %v2601
    %vm2627 = vcmp.eq.f32.partialorder %v2626, 8.507059e+37
    %v2628 = vand.u32 %v2601, 2147483648
    %v2629 = vor.u32 1.1754944e-38, %v2628
    %v2630 = vsel %vm2627, %v2629, %v2625
    %v2631 = vmul.f32 1.0, %v2630
    %2632 = vst [vmem:[%s23] sm:$0xff] %v2616
    %2633 = vst [vmem:[%s23 + $0x8] sm:$0xff] %v2631
    // Predicated region
    $region90: #{bert_for_classification.1} parent=1 // pred_check
      _
    $region91: #{bert_for_classification.1} parent=1 // pred_check_branch
      %2635 = sbr.rel (0) target = $region93
    $region92: #{bert_for_classification.1} parent=1 // pred_region
      %2637 = vsyncadd [#allocation3], 0
      %s2639 = sshll.u32 [#allocation2], 4
      %s2640 = int_to_ptr.vmem [resolvable:$true] %s2639
      %s2641 = sshll.u32 %s22, 4
      %s2642 = int_to_ptr.hbm [resolvable:$true] %s2641
      %2644 = dma.vmem_to_hbm [thread:$0]  %s2640, 32, %s2642, [#allocation3]
    $region93: #{bert_for_classification.1} parent=1 // pred_fallthru
      _
    // Predicated region
    $region94: #{bert_for_classification.1} parent=1 // pred_check
      _
    $region95: #{bert_for_classification.1} parent=1 // pred_check_branch
      %2646 = sbr.rel (0) target = $region97
    $region96: #{bert_for_classification.1} parent=1 // pred_region
      _
    $region97: #{bert_for_classification.1} parent=1 // pred_fallthru
      _
    // Predicated region
    $region98: #{bert_for_classification.1} parent=1 // pred_check
      _
    $region99: #{bert_for_classification.1} parent=1 // pred_check_branch
      %2648 = sbr.rel (0) target = $region101
    $region100: #{bert_for_classification.1} parent=1 // pred_region
      %2650 = dma.done [#allocation3], 32
    $region101: #{bert_for_classification.1} parent=1 // pred_fallthru
      _
    // Predicated region
    $region102: #{bert_for_classification.1} parent=1 // pred_check
      _
    $region103: #{bert_for_classification.1} parent=1 // pred_check_branch
      %2652 = sbr.rel (0) target = $region105
    $region104: #{bert_for_classification.1} parent=1 // pred_region
      _
    $region105: #{bert_for_classification.1} parent=1 // pred_fallthru
      _
    %2653 = vsyncpa [#allocation3], 1

</llo_original>
